<compile_context>
chip_gen: v7x
topology: tpu7x:2x2x1
jax: 0.10.0
libtpu: 0.0.40
codegen_flags: <defaults>
</compile_context>

<pallas_src>
import functools

import jax
import jax.numpy as jnp
from jax import lax
from jax.experimental import pallas as pl
from jax.experimental.pallas import tpu as pltpu


# ----------------------------------------------------------------------------
# Kernel 1: fused bidirectional GRU layer with packed-sequence length masking
# ----------------------------------------------------------------------------
def bigru_kernel(x_ref, len_ref, wih_ref, bi_ref, whh_f_ref, bhh_nf_ref,
                 whh_b_ref, bhh_nb_ref, out_ref,
                 gif_scr, gib_scr, hf_scr, hb_scr, *, time_major_in: bool):
    """x_ref: [T,Bb,Ein] (time-major) or [Bb,T,Ein] (batch-major, first layer).
    len_ref: [Bb,1] i32.
    wih: [Ein,6H] bf16  (fwd r,z,n | bwd r,z,n columns).
    bi:  [1,6H] f32     (pre-folded: bih_r+bhh_r, bih_z+bhh_z, bih_n per dir).
    whh_f / whh_b: [H,3H] bf16.   bhh_nf / bhh_nb: [1,H] f32.
    out_ref: [T,Bb,2H] f32 (fwd | bwd concat; padded timesteps are 0).
    Gate order (r, z, n) matches torch.nn.GRU."""
    if time_major_in:
        T, Bb, Ein = x_ref.shape
    else:
        Bb, T, Ein = x_ref.shape
    H = bhh_nf_ref.shape[-1]
    G = 3 * H
    lens = len_ref[...]                                   # [Bb, 1] int32

    # ---- hoisted input projection: ONE big bf16 MXU matmul for all steps ----
    x = x_ref[...].astype(jnp.bfloat16)
    if time_major_in:
        x2 = x.reshape(T * Bb, Ein)                       # rows already time-major
    else:
        # build time-major rows (row = t*Bb + b) from the batch-major block;
        # static T keeps this a fixed set of VMEM slices (no HBM transpose).
        x2 = jnp.concatenate([x[:, t, :] for t in range(T)], axis=0)
    gi = jnp.dot(x2, wih_ref[...], preferred_element_type=jnp.float32) + bi_ref[...]
    gi = gi.reshape(T, Bb, 2 * G)
    gif_scr[...] = gi[:, :, :G]                           # forward-direction gates
    gib_scr[...] = gi[:, :, G:]                           # backward-direction gates

    whh_f = whh_f_ref[...]
    whh_b = whh_b_ref[...]
    bhh_nf = bhh_nf_ref[...]
    bhh_nb = bhh_nb_ref[...]

    def gru_cell(gi_t, h, whh, bhh_n):
        # one fused [Bb,H] x [H,3H] MXU push per direction per step (bf16 in, f32 acc)
        gh = jnp.dot(h.astype(jnp.bfloat16), whh, preferred_element_type=jnp.float32)
        r = jax.nn.sigmoid(gi_t[:, :H] + gh[:, :H])
        z = jax.nn.sigmoid(gi_t[:, H:2 * H] + gh[:, H:2 * H])
        n = jnp.tanh(gi_t[:, 2 * H:] + r * (gh[:, 2 * H:] + bhh_n))
        return (1.0 - z) * n + z * h

    def step(i, carry):
        h_f, h_b = carry
        t_f = i
        t_b = T - 1 - i
        hf_new = gru_cell(gif_scr[t_f], h_f, whh_f, bhh_nf)
        hb_new = gru_cell(gib_scr[t_b], h_b, whh_b, bhh_nb)
        m_f = (lens > t_f).astype(jnp.float32)            # [Bb, 1]
        m_b = (lens > t_b).astype(jnp.float32)
        hf_new = m_f * hf_new + (1.0 - m_f) * h_f         # freeze state on padding
        hb_new = m_b * hb_new + (1.0 - m_b) * h_b
        hf_scr[t_f] = hf_new * m_f                        # zero padded outputs
        hb_scr[t_b] = hb_new * m_b
        return hf_new, hb_new

    h0 = jnp.zeros((Bb, H), jnp.float32)
    unroll = True if T <= 32 else 8                       # LLO scheduler visibility
    lax.fori_loop(0, T, step, (h0, h0), unroll=unroll)

    # single lane-dense [T,Bb,2H] store (fwd | bwd), matching torch's cat order
    out_ref[...] = jnp.concatenate([hf_scr[...], hb_scr[...]],
                                   axis=-1).astype(out_ref.dtype)


def _batch_block(batch):
    """Batch block: whole batch if small, else a multiple-of-8 divisor."""
    if batch <= 128:
        return batch
    for bb in range(128, 7, -8):
        if batch % bb == 0:
            return bb
    return batch


def _full_spec(arr):
    n = arr.ndim
    return pl.BlockSpec(arr.shape, lambda b: (0,) * n)


def run_bigru(x, lens2d, layer, *, time_major_in):
    if time_major_in:
        T, B, Ein = x.shape
    else:
        B, T, Ein = x.shape
    H = layer['bhh_n_f'].shape[-1]
    G = 3 * H
    Bb = _batch_block(B)

    if time_major_in:
        x_spec = pl.BlockSpec((T, Bb, Ein), lambda b: (0, b, 0))
    else:
        x_spec = pl.BlockSpec((Bb, T, Ein), lambda b: (b, 0, 0))

    return pl.pallas_call(
        functools.partial(bigru_kernel, time_major_in=time_major_in),
        out_shape=jax.ShapeDtypeStruct((T, B, 2 * H), jnp.float32),
        grid=(B // Bb,),
        in_specs=[x_spec,
                  pl.BlockSpec((Bb, 1), lambda b: (b, 0)),
                  _full_spec(layer['wih_all']), _full_spec(layer['bi_all']),
                  _full_spec(layer['whh_f']), _full_spec(layer['bhh_n_f']),
                  _full_spec(layer['whh_b']), _full_spec(layer['bhh_n_b'])],
        out_specs=pl.BlockSpec((T, Bb, 2 * H), lambda b: (0, b, 0)),
        scratch_shapes=[pltpu.VMEM((T, Bb, G), jnp.float32),
                        pltpu.VMEM((T, Bb, G), jnp.float32),
                        pltpu.VMEM((T, Bb, H), jnp.float32),
                        pltpu.VMEM((T, Bb, H), jnp.float32)],
        compiler_params=pltpu.CompilerParams(
            dimension_semantics=("parallel",)),           # batch rows are independent
    )(x, lens2d, layer['wih_all'], layer['bi_all'], layer['whh_f'],
      layer['bhh_n_f'], layer['whh_b'], layer['bhh_n_b'])


# ----------------------------------------------------------------------------
# Kernel 2: fused LayerNorm + tanh attention MLP + masked softmax + pooling
# ----------------------------------------------------------------------------
def attn_pool_kernel(h_ref, len_ref, gamma_ref, beta_ref, watt_ref, batt_ref,
                     wvec_ref, blocks_ref, attw_ref):
    """h_ref:[T,Bb,D] time-major GRU output (D=2H, padded steps are 0)
    len_ref:[Bb,1] i32   gamma/beta:[1,D] f32
    watt:[D,Ap] bf16   batt:[1,Ap] f32   wvec:[1,Ap] f32 (zero-padded to Ap)
    blocks_ref:[Bb,D] f32   attw_ref:[Bb,T] f32 (lane-dense)."""
    T, Bb, D = h_ref.shape
    h = h_ref[...].astype(jnp.float32)

    # LayerNorm over features (eps = nn.LayerNorm default 1e-5)
    mu = jnp.mean(h, axis=-1, keepdims=True)
    var = jnp.mean(jnp.square(h - mu), axis=-1, keepdims=True)
    normed = (h - mu) * lax.rsqrt(var + 1e-5) * gamma_ref[...] + beta_ref[...]

    # attention MLP: one lane-dense [T*Bb, D] x [D, Ap] MXU matmul (bf16 in, f32 acc)
    a = jnp.tanh(jnp.dot(normed.reshape(T * Bb, D).astype(jnp.bfloat16),
                         watt_ref[...], preferred_element_type=jnp.float32)
                 + batt_ref[...])                                      # [T*Bb, Ap]
    logits = jnp.sum(a * wvec_ref[...], axis=-1,
                     keepdims=True).reshape(T, Bb, 1)

    # mask padded tokens (they do not exist in the packed sequence)
    t_ids = lax.broadcasted_iota(jnp.int32, (T, Bb, 1), 0)
    valid = t_ids < len_ref[...][None, :, :]                           # [T, Bb, 1]
    logits = jnp.where(valid, logits, -1e30)

    val = jnp.max(logits)              # stabilizer only; cancels in normalization
    e = jnp.where(valid, jnp.exp(logits - val), 0.0)                   # [T, Bb, 1]
    denom = jnp.sum(e, axis=0, keepdims=True)                          # [1, Bb, 1]
    denom = jnp.maximum(denom, 1e-30)  # guard zero-length rows against NaN
    w = e / denom                                                      # [T, Bb, 1]

    # weighted sum over time of the raw GRU outputs (VPU adds over the outer axis)
    blocks_ref[...] = jnp.sum(w * h, axis=0).astype(blocks_ref.dtype)  # [Bb, D]
    # lane-dense [Bb, T] attention-weight store
    attw_ref[...] = jnp.transpose(w.reshape(T, Bb)).astype(attw_ref.dtype)


def run_attn_pool(h_tm, lens2d, params):
    T, B, D = h_tm.shape
    Bb = _batch_block(B)
    return pl.pallas_call(
        attn_pool_kernel,
        out_shape=(jax.ShapeDtypeStruct((B, D), jnp.float32),
                   jax.ShapeDtypeStruct((B, T), jnp.float32)),
        grid=(B // Bb,),
        in_specs=[pl.BlockSpec((T, Bb, D), lambda b: (0, b, 0)),
                  pl.BlockSpec((Bb, 1), lambda b: (b, 0)),
                  _full_spec(params['ln_gamma']), _full_spec(params['ln_beta']),
                  _full_spec(params['w_att']), _full_spec(params['b_att']),
                  _full_spec(params['w_vec'])],
        out_specs=(pl.BlockSpec((Bb, D), lambda b: (b, 0)),
                   pl.BlockSpec((Bb, T), lambda b: (b, 0))),
        compiler_params=pltpu.CompilerParams(
            dimension_semantics=("parallel",)),
    )(h_tm, lens2d, params['ln_gamma'], params['ln_beta'],
      params['w_att'], params['b_att'], params['w_vec'])


# ----------------------------------------------------------------------------
# Parameter init (deterministic, synthetic) and forward wrapper
# ----------------------------------------------------------------------------
def init_params(key, vocab_size, embed_dim, H, num_layers, attention_dim):
    def u(k, shape, scale):
        return jax.random.uniform(k, shape, jnp.float32, -scale, scale)

    keys = iter(jax.random.split(key, 4 + 8 * num_layers))
    params = {}
    # TODO(synk): BertEmbeddings.from_pretrained('bert-base-uncased') replaced by
    # a deterministic random embedding table [vocab, embed_dim] (no checkpoint IO).
    params['emb'] = 0.02 * jax.random.normal(next(keys), (vocab_size, embed_dim),
                                             jnp.float32)

    scale = 1.0 / (H ** 0.5)
    layers = []
    in_dim = embed_dim
    for _ in range(num_layers):
        ws = {}
        for d in ('f', 'b'):
            ws[d] = dict(
                wih=u(next(keys), (in_dim, 3 * H), scale),   # columns = (r, z, n)
                whh=u(next(keys), (H, 3 * H), scale),
                bih=u(next(keys), (1, 3 * H), scale),
                bhh=u(next(keys), (1, 3 * H), scale),
            )

        def fold_bias(w):
            # bih_r+bhh_r, bih_z+bhh_z, bih_n (bhh_n stays separate for r*(gh_n+bhh_n))
            return jnp.concatenate(
                [w['bih'][:, :2 * H] + w['bhh'][:, :2 * H], w['bih'][:, 2 * H:]],
                axis=1)

        layers.append(dict(
            wih_all=jnp.concatenate([ws['f']['wih'], ws['b']['wih']],
                                    axis=1).astype(jnp.bfloat16),       # [in, 6H]
            bi_all=jnp.concatenate([fold_bias(ws['f']), fold_bias(ws['b'])],
                                   axis=1),                             # [1, 6H]
            whh_f=ws['f']['whh'].astype(jnp.bfloat16),                  # [H, 3H]
            whh_b=ws['b']['whh'].astype(jnp.bfloat16),
            bhh_n_f=ws['f']['bhh'][:, 2 * H:],                          # [1, H]
            bhh_n_b=ws['b']['bhh'][:, 2 * H:],
        ))
        in_dim = 2 * H
    params['gru_layers'] = layers

    D = 2 * H
    params['ln_gamma'] = jnp.ones((1, D), jnp.float32)
    params['ln_beta'] = jnp.zeros((1, D), jnp.float32)

    # pad attention dim to a multiple of 128 (zero padding -> identical logits)
    Ap = max(128, ((attention_dim + 127) // 128) * 128)
    a_scale = 1.0 / (D ** 0.5)
    v_scale = 1.0 / (attention_dim ** 0.5)
    w_att = u(next(keys), (D, attention_dim), a_scale)
    b_att = u(next(keys), (1, attention_dim), a_scale)
    w_vec = u(next(keys), (1, attention_dim), v_scale)   # block_vector weight (transposed)
    params['w_att'] = jnp.zeros((D, Ap), jnp.float32).at[:, :attention_dim] \
        .set(w_att).astype(jnp.bfloat16)
    params['b_att'] = jnp.zeros((1, Ap), jnp.float32).at[:, :attention_dim].set(b_att)
    params['w_vec'] = jnp.zeros((1, Ap), jnp.float32).at[:, :attention_dim].set(w_vec)
    return params


def word_attention_forward(params, blocks_ids, block_lengths, attention_mask=None):
    del attention_mask                      # not used by the reference forward()
    x = jnp.take(params['emb'], blocks_ids, axis=0)       # [B, T, E]
    # dropout: identity (eval mode)
    lens2d = block_lengths.astype(jnp.int32)[:, None]     # [B, 1]

    h = x
    time_major = False
    for layer in params['gru_layers']:
        h = run_bigru(h, lens2d, layer, time_major_in=time_major)   # [T, B, 2H]
        time_major = True

    blocks_out, att_w = run_attn_pool(h, lens2d, params)  # [B, 2H], [B, T]
    return blocks_out, att_w


if __name__ == "__main__":
    # WordAttention(vocab_size, embed_dim, gru_hidden_dim, gru_num_layers,
    #               dropout, attention_dim)
    vocab_size, embed_dim = 50, 32
    gru_hidden_dim, gru_num_layers = 64, 1
    dropout, attention_dim = 0.1, 64          # dropout is identity in eval
    B, T = 4, 8

    key = jax.random.PRNGKey(0)
    k_ids, k_params = jax.random.split(key)
    blocks = jax.random.randint(k_ids, (B, T), 0, vocab_size, dtype=jnp.int32)
    block_lengths = jnp.array([8, 5, 3, 6], dtype=jnp.int32)
    attention_mask = (jnp.arange(T)[None, :] < block_lengths[:, None]).astype(jnp.int32)

    params = init_params(k_params, vocab_size, embed_dim, gru_hidden_dim,
                         gru_num_layers, attention_dim)

    fwd = jax.jit(functools.partial(word_attention_forward, params))
    blocks_out, att_w = fwd(blocks, block_lengths, attention_mask)
    jax.block_until_ready((blocks_out, att_w))

    assert blocks_out.shape == (B, 2 * gru_hidden_dim)
    assert att_w.shape == (B, T)
    assert bool(jnp.all(jnp.isfinite(blocks_out)))
    assert bool(jnp.allclose(att_w.sum(axis=1), 1.0, atol=1e-5))
    # padded positions carry zero attention weight (matches pad_packed_sequence)
    pad_mask = jnp.arange(T)[None, :] >= block_lengths[:, None]
    assert bool(jnp.all(jnp.where(pad_mask, att_w, 0.0) == 0.0))
    print("KERNEL_OK")
</pallas_src>

<mosaic_0001>
module attributes {stable_mosaic.version = 11 : i64} {
  func.func @bigru_kernel(%arg0: i32, %arg1: memref<4x8x32xf32, #tpu.memory_space<vmem>>, %arg2: memref<4x1xi32, #tpu.memory_space<vmem>>, %arg3: memref<32x384xbf16, #tpu.memory_space<vmem>>, %arg4: memref<1x384xf32, #tpu.memory_space<vmem>>, %arg5: memref<64x192xbf16, #tpu.memory_space<vmem>>, %arg6: memref<1x64xf32, #tpu.memory_space<vmem>>, %arg7: memref<64x192xbf16, #tpu.memory_space<vmem>>, %arg8: memref<1x64xf32, #tpu.memory_space<vmem>>, %arg9: memref<8x4x128xf32, #tpu.memory_space<vmem>>, %arg10: memref<8x4x192xf32, #tpu.memory_space<vmem>>, %arg11: memref<8x4x192xf32, #tpu.memory_space<vmem>>, %arg12: memref<8x4x64xf32, #tpu.memory_space<vmem>>, %arg13: memref<8x4x64xf32, #tpu.memory_space<vmem>>) attributes {dimension_semantics = [#tpu.dimension_semantics<parallel>], iteration_bounds = array<i64: 1>, scalar_prefetch = 0 : i64, scratch_operands = 4 : i64, tpu.core_type = #tpu.core_type<tc>, window_params = [{transform_indices = @transform_0, window_bounds = array<i64: 4, 8, 32>}, {transform_indices = @transform_1, window_bounds = array<i64: 4, 1>}, {pipeline_mode = #tpu.pipeline_mode<synchronous>, transform_indices = @transform_2, window_bounds = array<i64: 32, 384>}, {pipeline_mode = #tpu.pipeline_mode<synchronous>, transform_indices = @transform_3, window_bounds = array<i64: 1, 384>}, {pipeline_mode = #tpu.pipeline_mode<synchronous>, transform_indices = @transform_4, window_bounds = array<i64: 64, 192>}, {pipeline_mode = #tpu.pipeline_mode<synchronous>, transform_indices = @transform_5, window_bounds = array<i64: 1, 64>}, {pipeline_mode = #tpu.pipeline_mode<synchronous>, transform_indices = @transform_6, window_bounds = array<i64: 64, 192>}, {pipeline_mode = #tpu.pipeline_mode<synchronous>, transform_indices = @transform_7, window_bounds = array<i64: 1, 64>}, {transform_indices = @transform_8, window_bounds = array<i64: 8, 4, 128>}]} {
    %c0 = arith.constant 0 : index
    %c0_0 = arith.constant 0 : index
    %0 = vector.load %arg2[%c0, %c0_0] : memref<4x1xi32, #tpu.memory_space<vmem>>, vector<4x1xi32>
    %c0_1 = arith.constant 0 : index
    %c0_2 = arith.constant 0 : index
    %c0_3 = arith.constant 0 : index
    %1 = vector.load %arg1[%c0_1, %c0_2, %c0_3] : memref<4x8x32xf32, #tpu.memory_space<vmem>>, vector<4x8x32xf32>
    %2 = arith.truncf %1 : vector<4x8x32xf32> to vector<4x8x32xbf16>
    %3 = vector.extract_strided_slice %2 {offsets = [0, 0, 0], sizes = [4, 1, 32], strides = [1, 1, 1]} : vector<4x8x32xbf16> to vector<4x1x32xbf16>
    %4 = vector.shape_cast %3 : vector<4x1x32xbf16> to vector<4x32xbf16>
    %5 = vector.extract_strided_slice %2 {offsets = [0, 1, 0], sizes = [4, 1, 32], strides = [1, 1, 1]} : vector<4x8x32xbf16> to vector<4x1x32xbf16>
    %6 = vector.shape_cast %5 : vector<4x1x32xbf16> to vector<4x32xbf16>
    %7 = vector.extract_strided_slice %2 {offsets = [0, 2, 0], sizes = [4, 1, 32], strides = [1, 1, 1]} : vector<4x8x32xbf16> to vector<4x1x32xbf16>
    %8 = vector.shape_cast %7 : vector<4x1x32xbf16> to vector<4x32xbf16>
    %9 = vector.extract_strided_slice %2 {offsets = [0, 3, 0], sizes = [4, 1, 32], strides = [1, 1, 1]} : vector<4x8x32xbf16> to vector<4x1x32xbf16>
    %10 = vector.shape_cast %9 : vector<4x1x32xbf16> to vector<4x32xbf16>
    %11 = vector.extract_strided_slice %2 {offsets = [0, 4, 0], sizes = [4, 1, 32], strides = [1, 1, 1]} : vector<4x8x32xbf16> to vector<4x1x32xbf16>
    %12 = vector.shape_cast %11 : vector<4x1x32xbf16> to vector<4x32xbf16>
    %13 = vector.extract_strided_slice %2 {offsets = [0, 5, 0], sizes = [4, 1, 32], strides = [1, 1, 1]} : vector<4x8x32xbf16> to vector<4x1x32xbf16>
    %14 = vector.shape_cast %13 : vector<4x1x32xbf16> to vector<4x32xbf16>
    %15 = vector.extract_strided_slice %2 {offsets = [0, 6, 0], sizes = [4, 1, 32], strides = [1, 1, 1]} : vector<4x8x32xbf16> to vector<4x1x32xbf16>
    %16 = vector.shape_cast %15 : vector<4x1x32xbf16> to vector<4x32xbf16>
    %17 = vector.extract_strided_slice %2 {offsets = [0, 7, 0], sizes = [4, 1, 32], strides = [1, 1, 1]} : vector<4x8x32xbf16> to vector<4x1x32xbf16>
    %18 = vector.shape_cast %17 : vector<4x1x32xbf16> to vector<4x32xbf16>
    %19 = tpu.concatenate %4, %6, %8, %10, %12, %14, %16, %18 in 0 : vector<4x32xbf16>, vector<4x32xbf16>, vector<4x32xbf16>, vector<4x32xbf16>, vector<4x32xbf16>, vector<4x32xbf16>, vector<4x32xbf16>, vector<4x32xbf16> -> vector<32x32xbf16>
    %c0_4 = arith.constant 0 : index
    %c0_5 = arith.constant 0 : index
    %20 = vector.load %arg3[%c0_4, %c0_5] : memref<32x384xbf16, #tpu.memory_space<vmem>>, vector<32x384xbf16>
    %cst = arith.constant dense<0.000000e+00> : vector<32x384xf32>
    %21 = tpu.matmul %19, %20, %cst {dimension_numbers = #tpu.dot_dimension_numbers<[1], [0], [0], [1], [0, 0, 1, 1], [], []>} : vector<32x32xbf16>, vector<32x384xbf16>, vector<32x384xf32> -> vector<32x384xf32>
    %c0_6 = arith.constant 0 : index
    %c0_7 = arith.constant 0 : index
    %22 = vector.load %arg4[%c0_6, %c0_7] : memref<1x384xf32, #tpu.memory_space<vmem>>, vector<1x384xf32>
    %23 = vector.broadcast %22 : vector<1x384xf32> to vector<32x384xf32>
    %24 = arith.addf %21, %23 : vector<32x384xf32>
    %25 = vector.shape_cast %24 : vector<32x384xf32> to vector<8x4x384xf32>
    %26 = vector.extract_strided_slice %25 {offsets = [0, 0, 0], sizes = [8, 4, 192], strides = [1, 1, 1]} : vector<8x4x384xf32> to vector<8x4x192xf32>
    %c0_8 = arith.constant 0 : index
    %c0_9 = arith.constant 0 : index
    %c0_10 = arith.constant 0 : index
    %27 = vector.load %arg10[%c0_8, %c0_9, %c0_10] : memref<8x4x192xf32, #tpu.memory_space<vmem>>, vector<8x4x192xf32>
    tpu.vector_store %arg10[%c0_8, %c0_9, %c0_10], %26 {strides = array<i32>} : memref<8x4x192xf32, #tpu.memory_space<vmem>>, vector<8x4x192xf32>,
    %28 = vector.extract_strided_slice %25 {offsets = [0, 0, 192], sizes = [8, 4, 192], strides = [1, 1, 1]} : vector<8x4x384xf32> to vector<8x4x192xf32>
    %c0_11 = arith.constant 0 : index
    %c0_12 = arith.constant 0 : index
    %c0_13 = arith.constant 0 : index
    %29 = vector.load %arg11[%c0_11, %c0_12, %c0_13] : memref<8x4x192xf32, #tpu.memory_space<vmem>>, vector<8x4x192xf32>
    tpu.vector_store %arg11[%c0_11, %c0_12, %c0_13], %28 {strides = array<i32>} : memref<8x4x192xf32, #tpu.memory_space<vmem>>, vector<8x4x192xf32>,
    %c0_14 = arith.constant 0 : index
    %c0_15 = arith.constant 0 : index
    %30 = vector.load %arg5[%c0_14, %c0_15] : memref<64x192xbf16, #tpu.memory_space<vmem>>, vector<64x192xbf16>
    %c0_16 = arith.constant 0 : index
    %c0_17 = arith.constant 0 : index
    %31 = vector.load %arg7[%c0_16, %c0_17] : memref<64x192xbf16, #tpu.memory_space<vmem>>, vector<64x192xbf16>
    %c0_18 = arith.constant 0 : index
    %c0_19 = arith.constant 0 : index
    %32 = vector.load %arg6[%c0_18, %c0_19] : memref<1x64xf32, #tpu.memory_space<vmem>>, vector<1x64xf32>
    %c0_20 = arith.constant 0 : index
    %c0_21 = arith.constant 0 : index
    %33 = vector.load %arg8[%c0_20, %c0_21] : memref<1x64xf32, #tpu.memory_space<vmem>>, vector<1x64xf32>
    %cst_22 = arith.constant 0.000000e+00 : f32
    %34 = vector.broadcast %cst_22 : f32 to vector<4x64xf32>
    %c0_i32 = arith.constant 0 : i32
    %c7_i32 = arith.constant 7 : i32
    %35 = arith.subi %c7_i32, %c0_i32 : i32
    %36 = arith.index_cast %c0_i32 : i32 to index
    %c0_23 = arith.constant 0 : index
    %c0_24 = arith.constant 0 : index
    %37 = vector.load %arg10[%36, %c0_23, %c0_24] : memref<8x4x192xf32, #tpu.memory_space<vmem>>, vector<1x4x192xf32>
    %38 = vector.shape_cast %37 : vector<1x4x192xf32> to vector<4x192xf32>
    %39 = arith.truncf %34 : vector<4x64xf32> to vector<4x64xbf16>
    %cst_25 = arith.constant dense<0.000000e+00> : vector<4x192xf32>
    %40 = tpu.matmul %39, %30, %cst_25 {dimension_numbers = #tpu.dot_dimension_numbers<[1], [0], [0], [1], [0, 0, 1, 1], [], []>} : vector<4x64xbf16>, vector<64x192xbf16>, vector<4x192xf32> -> vector<4x192xf32>
    %41 = vector.extract_strided_slice %38 {offsets = [0, 0], sizes = [4, 64], strides = [1, 1]} : vector<4x192xf32> to vector<4x64xf32>
    %42 = vector.extract_strided_slice %40 {offsets = [0, 0], sizes = [4, 64], strides = [1, 1]} : vector<4x192xf32> to vector<4x64xf32>
    %43 = arith.addf %41, %42 : vector<4x64xf32>
    %44 = arith.negf %43 : vector<4x64xf32>
    %45 = math.exp %44 : vector<4x64xf32>
    %cst_26 = arith.constant 1.000000e+00 : f32
    %46 = vector.broadcast %cst_26 : f32 to vector<4x64xf32>
    %47 = arith.addf %46, %45 : vector<4x64xf32>
    %48 = arith.divf %46, %47 : vector<4x64xf32>
    %49 = vector.extract_strided_slice %38 {offsets = [0, 64], sizes = [4, 64], strides = [1, 1]} : vector<4x192xf32> to vector<4x64xf32>
    %50 = vector.extract_strided_slice %40 {offsets = [0, 64], sizes = [4, 64], strides = [1, 1]} : vector<4x192xf32> to vector<4x64xf32>
    %51 = arith.addf %49, %50 : vector<4x64xf32>
    %52 = arith.negf %51 : vector<4x64xf32>
    %53 = math.exp %52 : vector<4x64xf32>
    %cst_27 = arith.constant 1.000000e+00 : f32
    %54 = vector.broadcast %cst_27 : f32 to vector<4x64xf32>
    %55 = arith.addf %54, %53 : vector<4x64xf32>
    %56 = arith.divf %54, %55 : vector<4x64xf32>
    %57 = vector.extract_strided_slice %38 {offsets = [0, 128], sizes = [4, 64], strides = [1, 1]} : vector<4x192xf32> to vector<4x64xf32>
    %58 = vector.extract_strided_slice %40 {offsets = [0, 128], sizes = [4, 64], strides = [1, 1]} : vector<4x192xf32> to vector<4x64xf32>
    %59 = vector.broadcast %32 : vector<1x64xf32> to vector<4x64xf32>
    %60 = arith.addf %58, %59 : vector<4x64xf32>
    %61 = arith.mulf %48, %60 : vector<4x64xf32>
    %62 = arith.addf %57, %61 : vector<4x64xf32>
    %63 = math.tanh %62 : vector<4x64xf32>
    %cst_28 = arith.constant 1.000000e+00 : f32
    %64 = vector.broadcast %cst_28 : f32 to vector<4x64xf32>
    %65 = arith.subf %64, %56 : vector<4x64xf32>
    %66 = arith.mulf %65, %63 : vector<4x64xf32>
    %67 = arith.mulf %56, %34 : vector<4x64xf32>
    %68 = arith.addf %66, %67 : vector<4x64xf32>
    %69 = arith.index_cast %35 : i32 to index
    %c0_29 = arith.constant 0 : index
    %c0_30 = arith.constant 0 : index
    %70 = vector.load %arg11[%69, %c0_29, %c0_30] : memref<8x4x192xf32, #tpu.memory_space<vmem>>, vector<1x4x192xf32>
    %71 = vector.shape_cast %70 : vector<1x4x192xf32> to vector<4x192xf32>
    %72 = arith.truncf %34 : vector<4x64xf32> to vector<4x64xbf16>
    %cst_31 = arith.constant dense<0.000000e+00> : vector<4x192xf32>
    %73 = tpu.matmul %72, %31, %cst_31 {dimension_numbers = #tpu.dot_dimension_numbers<[1], [0], [0], [1], [0, 0, 1, 1], [], []>} : vector<4x64xbf16>, vector<64x192xbf16>, vector<4x192xf32> -> vector<4x192xf32>
    %74 = vector.extract_strided_slice %71 {offsets = [0, 0], sizes = [4, 64], strides = [1, 1]} : vector<4x192xf32> to vector<4x64xf32>
    %75 = vector.extract_strided_slice %73 {offsets = [0, 0], sizes = [4, 64], strides = [1, 1]} : vector<4x192xf32> to vector<4x64xf32>
    %76 = arith.addf %74, %75 : vector<4x64xf32>
    %77 = arith.negf %76 : vector<4x64xf32>
    %78 = math.exp %77 : vector<4x64xf32>
    %cst_32 = arith.constant 1.000000e+00 : f32
    %79 = vector.broadcast %cst_32 : f32 to vector<4x64xf32>
    %80 = arith.addf %79, %78 : vector<4x64xf32>
    %81 = arith.divf %79, %80 : vector<4x64xf32>
    %82 = vector.extract_strided_slice %71 {offsets = [0, 64], sizes = [4, 64], strides = [1, 1]} : vector<4x192xf32> to vector<4x64xf32>
    %83 = vector.extract_strided_slice %73 {offsets = [0, 64], sizes = [4, 64], strides = [1, 1]} : vector<4x192xf32> to vector<4x64xf32>
    %84 = arith.addf %82, %83 : vector<4x64xf32>
    %85 = arith.negf %84 : vector<4x64xf32>
    %86 = math.exp %85 : vector<4x64xf32>
    %cst_33 = arith.constant 1.000000e+00 : f32
    %87 = vector.broadcast %cst_33 : f32 to vector<4x64xf32>
    %88 = arith.addf %87, %86 : vector<4x64xf32>
    %89 = arith.divf %87, %88 : vector<4x64xf32>
    %90 = vector.extract_strided_slice %71 {offsets = [0, 128], sizes = [4, 64], strides = [1, 1]} : vector<4x192xf32> to vector<4x64xf32>
    %91 = vector.extract_strided_slice %73 {offsets = [0, 128], sizes = [4, 64], strides = [1, 1]} : vector<4x192xf32> to vector<4x64xf32>
    %92 = vector.broadcast %33 : vector<1x64xf32> to vector<4x64xf32>
    %93 = arith.addf %91, %92 : vector<4x64xf32>
    %94 = arith.mulf %81, %93 : vector<4x64xf32>
    %95 = arith.addf %90, %94 : vector<4x64xf32>
    %96 = math.tanh %95 : vector<4x64xf32>
    %cst_34 = arith.constant 1.000000e+00 : f32
    %97 = vector.broadcast %cst_34 : f32 to vector<4x64xf32>
    %98 = arith.subf %97, %89 : vector<4x64xf32>
    %99 = arith.mulf %98, %96 : vector<4x64xf32>
    %100 = arith.mulf %89, %34 : vector<4x64xf32>
    %101 = arith.addf %99, %100 : vector<4x64xf32>
    %102 = vector.broadcast %c0_i32 : i32 to vector<4x1xi32>
    %103 = arith.cmpi sgt, %0, %102 : vector<4x1xi32>
    %104 = arith.extui %103 : vector<4x1xi1> to vector<4x1xi32>
    %105 = arith.sitofp %104 : vector<4x1xi32> to vector<4x1xf32>
    %106 = vector.broadcast %35 : i32 to vector<4x1xi32>
    %107 = arith.cmpi sgt, %0, %106 : vector<4x1xi32>
    %108 = arith.extui %107 : vector<4x1xi1> to vector<4x1xi32>
    %109 = arith.sitofp %108 : vector<4x1xi32> to vector<4x1xf32>
    %110 = vector.broadcast %105 : vector<4x1xf32> to vector<4x64xf32>
    %111 = arith.mulf %110, %68 : vector<4x64xf32>
    %cst_35 = arith.constant 1.000000e+00 : f32
    %112 = vector.broadcast %cst_35 : f32 to vector<4x1xf32>
    %113 = arith.subf %112, %105 : vector<4x1xf32>
    %114 = vector.broadcast %113 : vector<4x1xf32> to vector<4x64xf32>
    %115 = arith.mulf %114, %34 : vector<4x64xf32>
    %116 = arith.addf %111, %115 : vector<4x64xf32>
    %117 = vector.broadcast %109 : vector<4x1xf32> to vector<4x64xf32>
    %118 = arith.mulf %117, %101 : vector<4x64xf32>
    %cst_36 = arith.constant 1.000000e+00 : f32
    %119 = vector.broadcast %cst_36 : f32 to vector<4x1xf32>
    %120 = arith.subf %119, %109 : vector<4x1xf32>
    %121 = vector.broadcast %120 : vector<4x1xf32> to vector<4x64xf32>
    %122 = arith.mulf %121, %34 : vector<4x64xf32>
    %123 = arith.addf %118, %122 : vector<4x64xf32>
    %124 = vector.broadcast %105 : vector<4x1xf32> to vector<4x64xf32>
    %125 = arith.mulf %116, %124 : vector<4x64xf32>
    %126 = arith.index_cast %c0_i32 : i32 to index
    %c0_37 = arith.constant 0 : index
    %c0_38 = arith.constant 0 : index
    %127 = vector.load %arg12[%126, %c0_37, %c0_38] : memref<8x4x64xf32, #tpu.memory_space<vmem>>, vector<1x4x64xf32>
    %128 = vector.shape_cast %127 : vector<1x4x64xf32> to vector<4x64xf32>
    %129 = vector.shape_cast %125 : vector<4x64xf32> to vector<1x4x64xf32>
    tpu.vector_store %arg12[%126, %c0_37, %c0_38], %129 {strides = array<i32>} : memref<8x4x64xf32, #tpu.memory_space<vmem>>, vector<1x4x64xf32>,
    %130 = vector.broadcast %109 : vector<4x1xf32> to vector<4x64xf32>
    %131 = arith.mulf %123, %130 : vector<4x64xf32>
    %132 = arith.index_cast %35 : i32 to index
    %c0_39 = arith.constant 0 : index
    %c0_40 = arith.constant 0 : index
    %133 = vector.load %arg13[%132, %c0_39, %c0_40] : memref<8x4x64xf32, #tpu.memory_space<vmem>>, vector<1x4x64xf32>
    %134 = vector.shape_cast %133 : vector<1x4x64xf32> to vector<4x64xf32>
    %135 = vector.shape_cast %131 : vector<4x64xf32> to vector<1x4x64xf32>
    tpu.vector_store %arg13[%132, %c0_39, %c0_40], %135 {strides = array<i32>} : memref<8x4x64xf32, #tpu.memory_space<vmem>>, vector<1x4x64xf32>,
    %c1_i32 = arith.constant 1 : i32
    %c7_i32_41 = arith.constant 7 : i32
    %136 = arith.subi %c7_i32_41, %c1_i32 : i32
    %137 = arith.index_cast %c1_i32 : i32 to index
    %c0_42 = arith.constant 0 : index
    %c0_43 = arith.constant 0 : index
    %138 = vector.load %arg10[%137, %c0_42, %c0_43] : memref<8x4x192xf32, #tpu.memory_space<vmem>>, vector<1x4x192xf32>
    %139 = vector.shape_cast %138 : vector<1x4x192xf32> to vector<4x192xf32>
    %140 = arith.truncf %116 : vector<4x64xf32> to vector<4x64xbf16>
    %cst_44 = arith.constant dense<0.000000e+00> : vector<4x192xf32>
    %141 = tpu.matmul %140, %30, %cst_44 {dimension_numbers = #tpu.dot_dimension_numbers<[1], [0], [0], [1], [0, 0, 1, 1], [], []>} : vector<4x64xbf16>, vector<64x192xbf16>, vector<4x192xf32> -> vector<4x192xf32>
    %142 = vector.extract_strided_slice %139 {offsets = [0, 0], sizes = [4, 64], strides = [1, 1]} : vector<4x192xf32> to vector<4x64xf32>
    %143 = vector.extract_strided_slice %141 {offsets = [0, 0], sizes = [4, 64], strides = [1, 1]} : vector<4x192xf32> to vector<4x64xf32>
    %144 = arith.addf %142, %143 : vector<4x64xf32>
    %145 = arith.negf %144 : vector<4x64xf32>
    %146 = math.exp %145 : vector<4x64xf32>
    %cst_45 = arith.constant 1.000000e+00 : f32
    %147 = vector.broadcast %cst_45 : f32 to vector<4x64xf32>
    %148 = arith.addf %147, %146 : vector<4x64xf32>
    %149 = arith.divf %147, %148 : vector<4x64xf32>
    %150 = vector.extract_strided_slice %139 {offsets = [0, 64], sizes = [4, 64], strides = [1, 1]} : vector<4x192xf32> to vector<4x64xf32>
    %151 = vector.extract_strided_slice %141 {offsets = [0, 64], sizes = [4, 64], strides = [1, 1]} : vector<4x192xf32> to vector<4x64xf32>
    %152 = arith.addf %150, %151 : vector<4x64xf32>
    %153 = arith.negf %152 : vector<4x64xf32>
    %154 = math.exp %153 : vector<4x64xf32>
    %cst_46 = arith.constant 1.000000e+00 : f32
    %155 = vector.broadcast %cst_46 : f32 to vector<4x64xf32>
    %156 = arith.addf %155, %154 : vector<4x64xf32>
    %157 = arith.divf %155, %156 : vector<4x64xf32>
    %158 = vector.extract_strided_slice %139 {offsets = [0, 128], sizes = [4, 64], strides = [1, 1]} : vector<4x192xf32> to vector<4x64xf32>
    %159 = vector.extract_strided_slice %141 {offsets = [0, 128], sizes = [4, 64], strides = [1, 1]} : vector<4x192xf32> to vector<4x64xf32>
    %160 = vector.broadcast %32 : vector<1x64xf32> to vector<4x64xf32>
    %161 = arith.addf %159, %160 : vector<4x64xf32>
    %162 = arith.mulf %149, %161 : vector<4x64xf32>
    %163 = arith.addf %158, %162 : vector<4x64xf32>
    %164 = math.tanh %163 : vector<4x64xf32>
    %cst_47 = arith.constant 1.000000e+00 : f32
    %165 = vector.broadcast %cst_47 : f32 to vector<4x64xf32>
    %166 = arith.subf %165, %157 : vector<4x64xf32>
    %167 = arith.mulf %166, %164 : vector<4x64xf32>
    %168 = arith.mulf %157, %116 : vector<4x64xf32>
    %169 = arith.addf %167, %168 : vector<4x64xf32>
    %170 = arith.index_cast %136 : i32 to index
    %c0_48 = arith.constant 0 : index
    %c0_49 = arith.constant 0 : index
    %171 = vector.load %arg11[%170, %c0_48, %c0_49] : memref<8x4x192xf32, #tpu.memory_space<vmem>>, vector<1x4x192xf32>
    %172 = vector.shape_cast %171 : vector<1x4x192xf32> to vector<4x192xf32>
    %173 = arith.truncf %123 : vector<4x64xf32> to vector<4x64xbf16>
    %cst_50 = arith.constant dense<0.000000e+00> : vector<4x192xf32>
    %174 = tpu.matmul %173, %31, %cst_50 {dimension_numbers = #tpu.dot_dimension_numbers<[1], [0], [0], [1], [0, 0, 1, 1], [], []>} : vector<4x64xbf16>, vector<64x192xbf16>, vector<4x192xf32> -> vector<4x192xf32>
    %175 = vector.extract_strided_slice %172 {offsets = [0, 0], sizes = [4, 64], strides = [1, 1]} : vector<4x192xf32> to vector<4x64xf32>
    %176 = vector.extract_strided_slice %174 {offsets = [0, 0], sizes = [4, 64], strides = [1, 1]} : vector<4x192xf32> to vector<4x64xf32>
    %177 = arith.addf %175, %176 : vector<4x64xf32>
    %178 = arith.negf %177 : vector<4x64xf32>
    %179 = math.exp %178 : vector<4x64xf32>
    %cst_51 = arith.constant 1.000000e+00 : f32
    %180 = vector.broadcast %cst_51 : f32 to vector<4x64xf32>
    %181 = arith.addf %180, %179 : vector<4x64xf32>
    %182 = arith.divf %180, %181 : vector<4x64xf32>
    %183 = vector.extract_strided_slice %172 {offsets = [0, 64], sizes = [4, 64], strides = [1, 1]} : vector<4x192xf32> to vector<4x64xf32>
    %184 = vector.extract_strided_slice %174 {offsets = [0, 64], sizes = [4, 64], strides = [1, 1]} : vector<4x192xf32> to vector<4x64xf32>
    %185 = arith.addf %183, %184 : vector<4x64xf32>
    %186 = arith.negf %185 : vector<4x64xf32>
    %187 = math.exp %186 : vector<4x64xf32>
    %cst_52 = arith.constant 1.000000e+00 : f32
    %188 = vector.broadcast %cst_52 : f32 to vector<4x64xf32>
    %189 = arith.addf %188, %187 : vector<4x64xf32>
    %190 = arith.divf %188, %189 : vector<4x64xf32>
    %191 = vector.extract_strided_slice %172 {offsets = [0, 128], sizes = [4, 64], strides = [1, 1]} : vector<4x192xf32> to vector<4x64xf32>
    %192 = vector.extract_strided_slice %174 {offsets = [0, 128], sizes = [4, 64], strides = [1, 1]} : vector<4x192xf32> to vector<4x64xf32>
    %193 = vector.broadcast %33 : vector<1x64xf32> to vector<4x64xf32>
    %194 = arith.addf %192, %193 : vector<4x64xf32>
    %195 = arith.mulf %182, %194 : vector<4x64xf32>
    %196 = arith.addf %191, %195 : vector<4x64xf32>
    %197 = math.tanh %196 : vector<4x64xf32>
    %cst_53 = arith.constant 1.000000e+00 : f32
    %198 = vector.broadcast %cst_53 : f32 to vector<4x64xf32>
    %199 = arith.subf %198, %190 : vector<4x64xf32>
    %200 = arith.mulf %199, %197 : vector<4x64xf32>
    %201 = arith.mulf %190, %123 : vector<4x64xf32>
    %202 = arith.addf %200, %201 : vector<4x64xf32>
    %203 = vector.broadcast %c1_i32 : i32 to vector<4x1xi32>
    %204 = arith.cmpi sgt, %0, %203 : vector<4x1xi32>
    %205 = arith.extui %204 : vector<4x1xi1> to vector<4x1xi32>
    %206 = arith.sitofp %205 : vector<4x1xi32> to vector<4x1xf32>
    %207 = vector.broadcast %136 : i32 to vector<4x1xi32>
    %208 = arith.cmpi sgt, %0, %207 : vector<4x1xi32>
    %209 = arith.extui %208 : vector<4x1xi1> to vector<4x1xi32>
    %210 = arith.sitofp %209 : vector<4x1xi32> to vector<4x1xf32>
    %211 = vector.broadcast %206 : vector<4x1xf32> to vector<4x64xf32>
    %212 = arith.mulf %211, %169 : vector<4x64xf32>
    %cst_54 = arith.constant 1.000000e+00 : f32
    %213 = vector.broadcast %cst_54 : f32 to vector<4x1xf32>
    %214 = arith.subf %213, %206 : vector<4x1xf32>
    %215 = vector.broadcast %214 : vector<4x1xf32> to vector<4x64xf32>
    %216 = arith.mulf %215, %116 : vector<4x64xf32>
    %217 = arith.addf %212, %216 : vector<4x64xf32>
    %218 = vector.broadcast %210 : vector<4x1xf32> to vector<4x64xf32>
    %219 = arith.mulf %218, %202 : vector<4x64xf32>
    %cst_55 = arith.constant 1.000000e+00 : f32
    %220 = vector.broadcast %cst_55 : f32 to vector<4x1xf32>
    %221 = arith.subf %220, %210 : vector<4x1xf32>
    %222 = vector.broadcast %221 : vector<4x1xf32> to vector<4x64xf32>
    %223 = arith.mulf %222, %123 : vector<4x64xf32>
    %224 = arith.addf %219, %223 : vector<4x64xf32>
    %225 = vector.broadcast %206 : vector<4x1xf32> to vector<4x64xf32>
    %226 = arith.mulf %217, %225 : vector<4x64xf32>
    %227 = arith.index_cast %c1_i32 : i32 to index
    %c0_56 = arith.constant 0 : index
    %c0_57 = arith.constant 0 : index
    %228 = vector.load %arg12[%227, %c0_56, %c0_57] : memref<8x4x64xf32, #tpu.memory_space<vmem>>, vector<1x4x64xf32>
    %229 = vector.shape_cast %228 : vector<1x4x64xf32> to vector<4x64xf32>
    %230 = vector.shape_cast %226 : vector<4x64xf32> to vector<1x4x64xf32>
    tpu.vector_store %arg12[%227, %c0_56, %c0_57], %230 {strides = array<i32>} : memref<8x4x64xf32, #tpu.memory_space<vmem>>, vector<1x4x64xf32>,
    %231 = vector.broadcast %210 : vector<4x1xf32> to vector<4x64xf32>
    %232 = arith.mulf %224, %231 : vector<4x64xf32>
    %233 = arith.index_cast %136 : i32 to index
    %c0_58 = arith.constant 0 : index
    %c0_59 = arith.constant 0 : index
    %234 = vector.load %arg13[%233, %c0_58, %c0_59] : memref<8x4x64xf32, #tpu.memory_space<vmem>>, vector<1x4x64xf32>
    %235 = vector.shape_cast %234 : vector<1x4x64xf32> to vector<4x64xf32>
    %236 = vector.shape_cast %232 : vector<4x64xf32> to vector<1x4x64xf32>
    tpu.vector_store %arg13[%233, %c0_58, %c0_59], %236 {strides = array<i32>} : memref<8x4x64xf32, #tpu.memory_space<vmem>>, vector<1x4x64xf32>,
    %c2_i32 = arith.constant 2 : i32
    %c7_i32_60 = arith.constant 7 : i32
    %237 = arith.subi %c7_i32_60, %c2_i32 : i32
    %238 = arith.index_cast %c2_i32 : i32 to index
    %c0_61 = arith.constant 0 : index
    %c0_62 = arith.constant 0 : index
    %239 = vector.load %arg10[%238, %c0_61, %c0_62] : memref<8x4x192xf32, #tpu.memory_space<vmem>>, vector<1x4x192xf32>
    %240 = vector.shape_cast %239 : vector<1x4x192xf32> to vector<4x192xf32>
    %241 = arith.truncf %217 : vector<4x64xf32> to vector<4x64xbf16>
    %cst_63 = arith.constant dense<0.000000e+00> : vector<4x192xf32>
    %242 = tpu.matmul %241, %30, %cst_63 {dimension_numbers = #tpu.dot_dimension_numbers<[1], [0], [0], [1], [0, 0, 1, 1], [], []>} : vector<4x64xbf16>, vector<64x192xbf16>, vector<4x192xf32> -> vector<4x192xf32>
    %243 = vector.extract_strided_slice %240 {offsets = [0, 0], sizes = [4, 64], strides = [1, 1]} : vector<4x192xf32> to vector<4x64xf32>
    %244 = vector.extract_strided_slice %242 {offsets = [0, 0], sizes = [4, 64], strides = [1, 1]} : vector<4x192xf32> to vector<4x64xf32>
    %245 = arith.addf %243, %244 : vector<4x64xf32>
    %246 = arith.negf %245 : vector<4x64xf32>
    %247 = math.exp %246 : vector<4x64xf32>
    %cst_64 = arith.constant 1.000000e+00 : f32
    %248 = vector.broadcast %cst_64 : f32 to vector<4x64xf32>
    %249 = arith.addf %248, %247 : vector<4x64xf32>
    %250 = arith.divf %248, %249 : vector<4x64xf32>
    %251 = vector.extract_strided_slice %240 {offsets = [0, 64], sizes = [4, 64], strides = [1, 1]} : vector<4x192xf32> to vector<4x64xf32>
    %252 = vector.extract_strided_slice %242 {offsets = [0, 64], sizes = [4, 64], strides = [1, 1]} : vector<4x192xf32> to vector<4x64xf32>
    %253 = arith.addf %251, %252 : vector<4x64xf32>
    %254 = arith.negf %253 : vector<4x64xf32>
    %255 = math.exp %254 : vector<4x64xf32>
    %cst_65 = arith.constant 1.000000e+00 : f32
    %256 = vector.broadcast %cst_65 : f32 to vector<4x64xf32>
    %257 = arith.addf %256, %255 : vector<4x64xf32>
    %258 = arith.divf %256, %257 : vector<4x64xf32>
    %259 = vector.extract_strided_slice %240 {offsets = [0, 128], sizes = [4, 64], strides = [1, 1]} : vector<4x192xf32> to vector<4x64xf32>
    %260 = vector.extract_strided_slice %242 {offsets = [0, 128], sizes = [4, 64], strides = [1, 1]} : vector<4x192xf32> to vector<4x64xf32>
    %261 = vector.broadcast %32 : vector<1x64xf32> to vector<4x64xf32>
    %262 = arith.addf %260, %261 : vector<4x64xf32>
    %263 = arith.mulf %250, %262 : vector<4x64xf32>
    %264 = arith.addf %259, %263 : vector<4x64xf32>
    %265 = math.tanh %264 : vector<4x64xf32>
    %cst_66 = arith.constant 1.000000e+00 : f32
    %266 = vector.broadcast %cst_66 : f32 to vector<4x64xf32>
    %267 = arith.subf %266, %258 : vector<4x64xf32>
    %268 = arith.mulf %267, %265 : vector<4x64xf32>
    %269 = arith.mulf %258, %217 : vector<4x64xf32>
    %270 = arith.addf %268, %269 : vector<4x64xf32>
    %271 = arith.index_cast %237 : i32 to index
    %c0_67 = arith.constant 0 : index
    %c0_68 = arith.constant 0 : index
    %272 = vector.load %arg11[%271, %c0_67, %c0_68] : memref<8x4x192xf32, #tpu.memory_space<vmem>>, vector<1x4x192xf32>
    %273 = vector.shape_cast %272 : vector<1x4x192xf32> to vector<4x192xf32>
    %274 = arith.truncf %224 : vector<4x64xf32> to vector<4x64xbf16>
    %cst_69 = arith.constant dense<0.000000e+00> : vector<4x192xf32>
    %275 = tpu.matmul %274, %31, %cst_69 {dimension_numbers = #tpu.dot_dimension_numbers<[1], [0], [0], [1], [0, 0, 1, 1], [], []>} : vector<4x64xbf16>, vector<64x192xbf16>, vector<4x192xf32> -> vector<4x192xf32>
    %276 = vector.extract_strided_slice %273 {offsets = [0, 0], sizes = [4, 64], strides = [1, 1]} : vector<4x192xf32> to vector<4x64xf32>
    %277 = vector.extract_strided_slice %275 {offsets = [0, 0], sizes = [4, 64], strides = [1, 1]} : vector<4x192xf32> to vector<4x64xf32>
    %278 = arith.addf %276, %277 : vector<4x64xf32>
    %279 = arith.negf %278 : vector<4x64xf32>
    %280 = math.exp %279 : vector<4x64xf32>
    %cst_70 = arith.constant 1.000000e+00 : f32
    %281 = vector.broadcast %cst_70 : f32 to vector<4x64xf32>
    %282 = arith.addf %281, %280 : vector<4x64xf32>
    %283 = arith.divf %281, %282 : vector<4x64xf32>
    %284 = vector.extract_strided_slice %273 {offsets = [0, 64], sizes = [4, 64], strides = [1, 1]} : vector<4x192xf32> to vector<4x64xf32>
    %285 = vector.extract_strided_slice %275 {offsets = [0, 64], sizes = [4, 64], strides = [1, 1]} : vector<4x192xf32> to vector<4x64xf32>
    %286 = arith.addf %284, %285 : vector<4x64xf32>
    %287 = arith.negf %286 : vector<4x64xf32>
    %288 = math.exp %287 : vector<4x64xf32>
    %cst_71 = arith.constant 1.000000e+00 : f32
    %289 = vector.broadcast %cst_71 : f32 to vector<4x64xf32>
    %290 = arith.addf %289, %288 : vector<4x64xf32>
    %291 = arith.divf %289, %290 : vector<4x64xf32>
    %292 = vector.extract_strided_slice %273 {offsets = [0, 128], sizes = [4, 64], strides = [1, 1]} : vector<4x192xf32> to vector<4x64xf32>
    %293 = vector.extract_strided_slice %275 {offsets = [0, 128], sizes = [4, 64], strides = [1, 1]} : vector<4x192xf32> to vector<4x64xf32>
    %294 = vector.broadcast %33 : vector<1x64xf32> to vector<4x64xf32>
    %295 = arith.addf %293, %294 : vector<4x64xf32>
    %296 = arith.mulf %283, %295 : vector<4x64xf32>
    %297 = arith.addf %292, %296 : vector<4x64xf32>
    %298 = math.tanh %297 : vector<4x64xf32>
    %cst_72 = arith.constant 1.000000e+00 : f32
    %299 = vector.broadcast %cst_72 : f32 to vector<4x64xf32>
    %300 = arith.subf %299, %291 : vector<4x64xf32>
    %301 = arith.mulf %300, %298 : vector<4x64xf32>
    %302 = arith.mulf %291, %224 : vector<4x64xf32>
    %303 = arith.addf %301, %302 : vector<4x64xf32>
    %304 = vector.broadcast %c2_i32 : i32 to vector<4x1xi32>
    %305 = arith.cmpi sgt, %0, %304 : vector<4x1xi32>
    %306 = arith.extui %305 : vector<4x1xi1> to vector<4x1xi32>
    %307 = arith.sitofp %306 : vector<4x1xi32> to vector<4x1xf32>
    %308 = vector.broadcast %237 : i32 to vector<4x1xi32>
    %309 = arith.cmpi sgt, %0, %308 : vector<4x1xi32>
    %310 = arith.extui %309 : vector<4x1xi1> to vector<4x1xi32>
    %311 = arith.sitofp %310 : vector<4x1xi32> to vector<4x1xf32>
    %312 = vector.broadcast %307 : vector<4x1xf32> to vector<4x64xf32>
    %313 = arith.mulf %312, %270 : vector<4x64xf32>
    %cst_73 = arith.constant 1.000000e+00 : f32
    %314 = vector.broadcast %cst_73 : f32 to vector<4x1xf32>
    %315 = arith.subf %314, %307 : vector<4x1xf32>
    %316 = vector.broadcast %315 : vector<4x1xf32> to vector<4x64xf32>
    %317 = arith.mulf %316, %217 : vector<4x64xf32>
    %318 = arith.addf %313, %317 : vector<4x64xf32>
    %319 = vector.broadcast %311 : vector<4x1xf32> to vector<4x64xf32>
    %320 = arith.mulf %319, %303 : vector<4x64xf32>
    %cst_74 = arith.constant 1.000000e+00 : f32
    %321 = vector.broadcast %cst_74 : f32 to vector<4x1xf32>
    %322 = arith.subf %321, %311 : vector<4x1xf32>
    %323 = vector.broadcast %322 : vector<4x1xf32> to vector<4x64xf32>
    %324 = arith.mulf %323, %224 : vector<4x64xf32>
    %325 = arith.addf %320, %324 : vector<4x64xf32>
    %326 = vector.broadcast %307 : vector<4x1xf32> to vector<4x64xf32>
    %327 = arith.mulf %318, %326 : vector<4x64xf32>
    %328 = arith.index_cast %c2_i32 : i32 to index
    %c0_75 = arith.constant 0 : index
    %c0_76 = arith.constant 0 : index
    %329 = vector.load %arg12[%328, %c0_75, %c0_76] : memref<8x4x64xf32, #tpu.memory_space<vmem>>, vector<1x4x64xf32>
    %330 = vector.shape_cast %329 : vector<1x4x64xf32> to vector<4x64xf32>
    %331 = vector.shape_cast %327 : vector<4x64xf32> to vector<1x4x64xf32>
    tpu.vector_store %arg12[%328, %c0_75, %c0_76], %331 {strides = array<i32>} : memref<8x4x64xf32, #tpu.memory_space<vmem>>, vector<1x4x64xf32>,
    %332 = vector.broadcast %311 : vector<4x1xf32> to vector<4x64xf32>
    %333 = arith.mulf %325, %332 : vector<4x64xf32>
    %334 = arith.index_cast %237 : i32 to index
    %c0_77 = arith.constant 0 : index
    %c0_78 = arith.constant 0 : index
    %335 = vector.load %arg13[%334, %c0_77, %c0_78] : memref<8x4x64xf32, #tpu.memory_space<vmem>>, vector<1x4x64xf32>
    %336 = vector.shape_cast %335 : vector<1x4x64xf32> to vector<4x64xf32>
    %337 = vector.shape_cast %333 : vector<4x64xf32> to vector<1x4x64xf32>
    tpu.vector_store %arg13[%334, %c0_77, %c0_78], %337 {strides = array<i32>} : memref<8x4x64xf32, #tpu.memory_space<vmem>>, vector<1x4x64xf32>,
    %c3_i32 = arith.constant 3 : i32
    %c7_i32_79 = arith.constant 7 : i32
    %338 = arith.subi %c7_i32_79, %c3_i32 : i32
    %339 = arith.index_cast %c3_i32 : i32 to index
    %c0_80 = arith.constant 0 : index
    %c0_81 = arith.constant 0 : index
    %340 = vector.load %arg10[%339, %c0_80, %c0_81] : memref<8x4x192xf32, #tpu.memory_space<vmem>>, vector<1x4x192xf32>
    %341 = vector.shape_cast %340 : vector<1x4x192xf32> to vector<4x192xf32>
    %342 = arith.truncf %318 : vector<4x64xf32> to vector<4x64xbf16>
    %cst_82 = arith.constant dense<0.000000e+00> : vector<4x192xf32>
    %343 = tpu.matmul %342, %30, %cst_82 {dimension_numbers = #tpu.dot_dimension_numbers<[1], [0], [0], [1], [0, 0, 1, 1], [], []>} : vector<4x64xbf16>, vector<64x192xbf16>, vector<4x192xf32> -> vector<4x192xf32>
    %344 = vector.extract_strided_slice %341 {offsets = [0, 0], sizes = [4, 64], strides = [1, 1]} : vector<4x192xf32> to vector<4x64xf32>
    %345 = vector.extract_strided_slice %343 {offsets = [0, 0], sizes = [4, 64], strides = [1, 1]} : vector<4x192xf32> to vector<4x64xf32>
    %346 = arith.addf %344, %345 : vector<4x64xf32>
    %347 = arith.negf %346 : vector<4x64xf32>
    %348 = math.exp %347 : vector<4x64xf32>
    %cst_83 = arith.constant 1.000000e+00 : f32
    %349 = vector.broadcast %cst_83 : f32 to vector<4x64xf32>
    %350 = arith.addf %349, %348 : vector<4x64xf32>
    %351 = arith.divf %349, %350 : vector<4x64xf32>
    %352 = vector.extract_strided_slice %341 {offsets = [0, 64], sizes = [4, 64], strides = [1, 1]} : vector<4x192xf32> to vector<4x64xf32>
    %353 = vector.extract_strided_slice %343 {offsets = [0, 64], sizes = [4, 64], strides = [1, 1]} : vector<4x192xf32> to vector<4x64xf32>
    %354 = arith.addf %352, %353 : vector<4x64xf32>
    %355 = arith.negf %354 : vector<4x64xf32>
    %356 = math.exp %355 : vector<4x64xf32>
    %cst_84 = arith.constant 1.000000e+00 : f32
    %357 = vector.broadcast %cst_84 : f32 to vector<4x64xf32>
    %358 = arith.addf %357, %356 : vector<4x64xf32>
    %359 = arith.divf %357, %358 : vector<4x64xf32>
    %360 = vector.extract_strided_slice %341 {offsets = [0, 128], sizes = [4, 64], strides = [1, 1]} : vector<4x192xf32> to vector<4x64xf32>
    %361 = vector.extract_strided_slice %343 {offsets = [0, 128], sizes = [4, 64], strides = [1, 1]} : vector<4x192xf32> to vector<4x64xf32>
    %362 = vector.broadcast %32 : vector<1x64xf32> to vector<4x64xf32>
    %363 = arith.addf %361, %362 : vector<4x64xf32>
    %364 = arith.mulf %351, %363 : vector<4x64xf32>
    %365 = arith.addf %360, %364 : vector<4x64xf32>
    %366 = math.tanh %365 : vector<4x64xf32>
    %cst_85 = arith.constant 1.000000e+00 : f32
    %367 = vector.broadcast %cst_85 : f32 to vector<4x64xf32>
    %368 = arith.subf %367, %359 : vector<4x64xf32>
    %369 = arith.mulf %368, %366 : vector<4x64xf32>
    %370 = arith.mulf %359, %318 : vector<4x64xf32>
    %371 = arith.addf %369, %370 : vector<4x64xf32>
    %372 = arith.index_cast %338 : i32 to index
    %c0_86 = arith.constant 0 : index
    %c0_87 = arith.constant 0 : index
    %373 = vector.load %arg11[%372, %c0_86, %c0_87] : memref<8x4x192xf32, #tpu.memory_space<vmem>>, vector<1x4x192xf32>
    %374 = vector.shape_cast %373 : vector<1x4x192xf32> to vector<4x192xf32>
    %375 = arith.truncf %325 : vector<4x64xf32> to vector<4x64xbf16>
    %cst_88 = arith.constant dense<0.000000e+00> : vector<4x192xf32>
    %376 = tpu.matmul %375, %31, %cst_88 {dimension_numbers = #tpu.dot_dimension_numbers<[1], [0], [0], [1], [0, 0, 1, 1], [], []>} : vector<4x64xbf16>, vector<64x192xbf16>, vector<4x192xf32> -> vector<4x192xf32>
    %377 = vector.extract_strided_slice %374 {offsets = [0, 0], sizes = [4, 64], strides = [1, 1]} : vector<4x192xf32> to vector<4x64xf32>
    %378 = vector.extract_strided_slice %376 {offsets = [0, 0], sizes = [4, 64], strides = [1, 1]} : vector<4x192xf32> to vector<4x64xf32>
    %379 = arith.addf %377, %378 : vector<4x64xf32>
    %380 = arith.negf %379 : vector<4x64xf32>
    %381 = math.exp %380 : vector<4x64xf32>
    %cst_89 = arith.constant 1.000000e+00 : f32
    %382 = vector.broadcast %cst_89 : f32 to vector<4x64xf32>
    %383 = arith.addf %382, %381 : vector<4x64xf32>
    %384 = arith.divf %382, %383 : vector<4x64xf32>
    %385 = vector.extract_strided_slice %374 {offsets = [0, 64], sizes = [4, 64], strides = [1, 1]} : vector<4x192xf32> to vector<4x64xf32>
    %386 = vector.extract_strided_slice %376 {offsets = [0, 64], sizes = [4, 64], strides = [1, 1]} : vector<4x192xf32> to vector<4x64xf32>
    %387 = arith.addf %385, %386 : vector<4x64xf32>
    %388 = arith.negf %387 : vector<4x64xf32>
    %389 = math.exp %388 : vector<4x64xf32>
    %cst_90 = arith.constant 1.000000e+00 : f32
    %390 = vector.broadcast %cst_90 : f32 to vector<4x64xf32>
    %391 = arith.addf %390, %389 : vector<4x64xf32>
    %392 = arith.divf %390, %391 : vector<4x64xf32>
    %393 = vector.extract_strided_slice %374 {offsets = [0, 128], sizes = [4, 64], strides = [1, 1]} : vector<4x192xf32> to vector<4x64xf32>
    %394 = vector.extract_strided_slice %376 {offsets = [0, 128], sizes = [4, 64], strides = [1, 1]} : vector<4x192xf32> to vector<4x64xf32>
    %395 = vector.broadcast %33 : vector<1x64xf32> to vector<4x64xf32>
    %396 = arith.addf %394, %395 : vector<4x64xf32>
    %397 = arith.mulf %384, %396 : vector<4x64xf32>
    %398 = arith.addf %393, %397 : vector<4x64xf32>
    %399 = math.tanh %398 : vector<4x64xf32>
    %cst_91 = arith.constant 1.000000e+00 : f32
    %400 = vector.broadcast %cst_91 : f32 to vector<4x64xf32>
    %401 = arith.subf %400, %392 : vector<4x64xf32>
    %402 = arith.mulf %401, %399 : vector<4x64xf32>
    %403 = arith.mulf %392, %325 : vector<4x64xf32>
    %404 = arith.addf %402, %403 : vector<4x64xf32>
    %405 = vector.broadcast %c3_i32 : i32 to vector<4x1xi32>
    %406 = arith.cmpi sgt, %0, %405 : vector<4x1xi32>
    %407 = arith.extui %406 : vector<4x1xi1> to vector<4x1xi32>
    %408 = arith.sitofp %407 : vector<4x1xi32> to vector<4x1xf32>
    %409 = vector.broadcast %338 : i32 to vector<4x1xi32>
    %410 = arith.cmpi sgt, %0, %409 : vector<4x1xi32>
    %411 = arith.extui %410 : vector<4x1xi1> to vector<4x1xi32>
    %412 = arith.sitofp %411 : vector<4x1xi32> to vector<4x1xf32>
    %413 = vector.broadcast %408 : vector<4x1xf32> to vector<4x64xf32>
    %414 = arith.mulf %413, %371 : vector<4x64xf32>
    %cst_92 = arith.constant 1.000000e+00 : f32
    %415 = vector.broadcast %cst_92 : f32 to vector<4x1xf32>
    %416 = arith.subf %415, %408 : vector<4x1xf32>
    %417 = vector.broadcast %416 : vector<4x1xf32> to vector<4x64xf32>
    %418 = arith.mulf %417, %318 : vector<4x64xf32>
    %419 = arith.addf %414, %418 : vector<4x64xf32>
    %420 = vector.broadcast %412 : vector<4x1xf32> to vector<4x64xf32>
    %421 = arith.mulf %420, %404 : vector<4x64xf32>
    %cst_93 = arith.constant 1.000000e+00 : f32
    %422 = vector.broadcast %cst_93 : f32 to vector<4x1xf32>
    %423 = arith.subf %422, %412 : vector<4x1xf32>
    %424 = vector.broadcast %423 : vector<4x1xf32> to vector<4x64xf32>
    %425 = arith.mulf %424, %325 : vector<4x64xf32>
    %426 = arith.addf %421, %425 : vector<4x64xf32>
    %427 = vector.broadcast %408 : vector<4x1xf32> to vector<4x64xf32>
    %428 = arith.mulf %419, %427 : vector<4x64xf32>
    %429 = arith.index_cast %c3_i32 : i32 to index
    %c0_94 = arith.constant 0 : index
    %c0_95 = arith.constant 0 : index
    %430 = vector.load %arg12[%429, %c0_94, %c0_95] : memref<8x4x64xf32, #tpu.memory_space<vmem>>, vector<1x4x64xf32>
    %431 = vector.shape_cast %430 : vector<1x4x64xf32> to vector<4x64xf32>
    %432 = vector.shape_cast %428 : vector<4x64xf32> to vector<1x4x64xf32>
    tpu.vector_store %arg12[%429, %c0_94, %c0_95], %432 {strides = array<i32>} : memref<8x4x64xf32, #tpu.memory_space<vmem>>, vector<1x4x64xf32>,
    %433 = vector.broadcast %412 : vector<4x1xf32> to vector<4x64xf32>
    %434 = arith.mulf %426, %433 : vector<4x64xf32>
    %435 = arith.index_cast %338 : i32 to index
    %c0_96 = arith.constant 0 : index
    %c0_97 = arith.constant 0 : index
    %436 = vector.load %arg13[%435, %c0_96, %c0_97] : memref<8x4x64xf32, #tpu.memory_space<vmem>>, vector<1x4x64xf32>
    %437 = vector.shape_cast %436 : vector<1x4x64xf32> to vector<4x64xf32>
    %438 = vector.shape_cast %434 : vector<4x64xf32> to vector<1x4x64xf32>
    tpu.vector_store %arg13[%435, %c0_96, %c0_97], %438 {strides = array<i32>} : memref<8x4x64xf32, #tpu.memory_space<vmem>>, vector<1x4x64xf32>,
    %c4_i32 = arith.constant 4 : i32
    %c7_i32_98 = arith.constant 7 : i32
    %439 = arith.subi %c7_i32_98, %c4_i32 : i32
    %440 = arith.index_cast %c4_i32 : i32 to index
    %c0_99 = arith.constant 0 : index
    %c0_100 = arith.constant 0 : index
    %441 = vector.load %arg10[%440, %c0_99, %c0_100] : memref<8x4x192xf32, #tpu.memory_space<vmem>>, vector<1x4x192xf32>
    %442 = vector.shape_cast %441 : vector<1x4x192xf32> to vector<4x192xf32>
    %443 = arith.truncf %419 : vector<4x64xf32> to vector<4x64xbf16>
    %cst_101 = arith.constant dense<0.000000e+00> : vector<4x192xf32>
    %444 = tpu.matmul %443, %30, %cst_101 {dimension_numbers = #tpu.dot_dimension_numbers<[1], [0], [0], [1], [0, 0, 1, 1], [], []>} : vector<4x64xbf16>, vector<64x192xbf16>, vector<4x192xf32> -> vector<4x192xf32>
    %445 = vector.extract_strided_slice %442 {offsets = [0, 0], sizes = [4, 64], strides = [1, 1]} : vector<4x192xf32> to vector<4x64xf32>
    %446 = vector.extract_strided_slice %444 {offsets = [0, 0], sizes = [4, 64], strides = [1, 1]} : vector<4x192xf32> to vector<4x64xf32>
    %447 = arith.addf %445, %446 : vector<4x64xf32>
    %448 = arith.negf %447 : vector<4x64xf32>
    %449 = math.exp %448 : vector<4x64xf32>
    %cst_102 = arith.constant 1.000000e+00 : f32
    %450 = vector.broadcast %cst_102 : f32 to vector<4x64xf32>
    %451 = arith.addf %450, %449 : vector<4x64xf32>
    %452 = arith.divf %450, %451 : vector<4x64xf32>
    %453 = vector.extract_strided_slice %442 {offsets = [0, 64], sizes = [4, 64], strides = [1, 1]} : vector<4x192xf32> to vector<4x64xf32>
    %454 = vector.extract_strided_slice %444 {offsets = [0, 64], sizes = [4, 64], strides = [1, 1]} : vector<4x192xf32> to vector<4x64xf32>
    %455 = arith.addf %453, %454 : vector<4x64xf32>
    %456 = arith.negf %455 : vector<4x64xf32>
    %457 = math.exp %456 : vector<4x64xf32>
    %cst_103 = arith.constant 1.000000e+00 : f32
    %458 = vector.broadcast %cst_103 : f32 to vector<4x64xf32>
    %459 = arith.addf %458, %457 : vector<4x64xf32>
    %460 = arith.divf %458, %459 : vector<4x64xf32>
    %461 = vector.extract_strided_slice %442 {offsets = [0, 128], sizes = [4, 64], strides = [1, 1]} : vector<4x192xf32> to vector<4x64xf32>
    %462 = vector.extract_strided_slice %444 {offsets = [0, 128], sizes = [4, 64], strides = [1, 1]} : vector<4x192xf32> to vector<4x64xf32>
    %463 = vector.broadcast %32 : vector<1x64xf32> to vector<4x64xf32>
    %464 = arith.addf %462, %463 : vector<4x64xf32>
    %465 = arith.mulf %452, %464 : vector<4x64xf32>
    %466 = arith.addf %461, %465 : vector<4x64xf32>
    %467 = math.tanh %466 : vector<4x64xf32>
    %cst_104 = arith.constant 1.000000e+00 : f32
    %468 = vector.broadcast %cst_104 : f32 to vector<4x64xf32>
    %469 = arith.subf %468, %460 : vector<4x64xf32>
    %470 = arith.mulf %469, %467 : vector<4x64xf32>
    %471 = arith.mulf %460, %419 : vector<4x64xf32>
    %472 = arith.addf %470, %471 : vector<4x64xf32>
    %473 = arith.index_cast %439 : i32 to index
    %c0_105 = arith.constant 0 : index
    %c0_106 = arith.constant 0 : index
    %474 = vector.load %arg11[%473, %c0_105, %c0_106] : memref<8x4x192xf32, #tpu.memory_space<vmem>>, vector<1x4x192xf32>
    %475 = vector.shape_cast %474 : vector<1x4x192xf32> to vector<4x192xf32>
    %476 = arith.truncf %426 : vector<4x64xf32> to vector<4x64xbf16>
    %cst_107 = arith.constant dense<0.000000e+00> : vector<4x192xf32>
    %477 = tpu.matmul %476, %31, %cst_107 {dimension_numbers = #tpu.dot_dimension_numbers<[1], [0], [0], [1], [0, 0, 1, 1], [], []>} : vector<4x64xbf16>, vector<64x192xbf16>, vector<4x192xf32> -> vector<4x192xf32>
    %478 = vector.extract_strided_slice %475 {offsets = [0, 0], sizes = [4, 64], strides = [1, 1]} : vector<4x192xf32> to vector<4x64xf32>
    %479 = vector.extract_strided_slice %477 {offsets = [0, 0], sizes = [4, 64], strides = [1, 1]} : vector<4x192xf32> to vector<4x64xf32>
    %480 = arith.addf %478, %479 : vector<4x64xf32>
    %481 = arith.negf %480 : vector<4x64xf32>
    %482 = math.exp %481 : vector<4x64xf32>
    %cst_108 = arith.constant 1.000000e+00 : f32
    %483 = vector.broadcast %cst_108 : f32 to vector<4x64xf32>
    %484 = arith.addf %483, %482 : vector<4x64xf32>
    %485 = arith.divf %483, %484 : vector<4x64xf32>
    %486 = vector.extract_strided_slice %475 {offsets = [0, 64], sizes = [4, 64], strides = [1, 1]} : vector<4x192xf32> to vector<4x64xf32>
    %487 = vector.extract_strided_slice %477 {offsets = [0, 64], sizes = [4, 64], strides = [1, 1]} : vector<4x192xf32> to vector<4x64xf32>
    %488 = arith.addf %486, %487 : vector<4x64xf32>
    %489 = arith.negf %488 : vector<4x64xf32>
    %490 = math.exp %489 : vector<4x64xf32>
    %cst_109 = arith.constant 1.000000e+00 : f32
    %491 = vector.broadcast %cst_109 : f32 to vector<4x64xf32>
    %492 = arith.addf %491, %490 : vector<4x64xf32>
    %493 = arith.divf %491, %492 : vector<4x64xf32>
    %494 = vector.extract_strided_slice %475 {offsets = [0, 128], sizes = [4, 64], strides = [1, 1]} : vector<4x192xf32> to vector<4x64xf32>
    %495 = vector.extract_strided_slice %477 {offsets = [0, 128], sizes = [4, 64], strides = [1, 1]} : vector<4x192xf32> to vector<4x64xf32>
    %496 = vector.broadcast %33 : vector<1x64xf32> to vector<4x64xf32>
    %497 = arith.addf %495, %496 : vector<4x64xf32>
    %498 = arith.mulf %485, %497 : vector<4x64xf32>
    %499 = arith.addf %494, %498 : vector<4x64xf32>
    %500 = math.tanh %499 : vector<4x64xf32>
    %cst_110 = arith.constant 1.000000e+00 : f32
    %501 = vector.broadcast %cst_110 : f32 to vector<4x64xf32>
    %502 = arith.subf %501, %493 : vector<4x64xf32>
    %503 = arith.mulf %502, %500 : vector<4x64xf32>
    %504 = arith.mulf %493, %426 : vector<4x64xf32>
    %505 = arith.addf %503, %504 : vector<4x64xf32>
    %506 = vector.broadcast %c4_i32 : i32 to vector<4x1xi32>
    %507 = arith.cmpi sgt, %0, %506 : vector<4x1xi32>
    %508 = arith.extui %507 : vector<4x1xi1> to vector<4x1xi32>
    %509 = arith.sitofp %508 : vector<4x1xi32> to vector<4x1xf32>
    %510 = vector.broadcast %439 : i32 to vector<4x1xi32>
    %511 = arith.cmpi sgt, %0, %510 : vector<4x1xi32>
    %512 = arith.extui %511 : vector<4x1xi1> to vector<4x1xi32>
    %513 = arith.sitofp %512 : vector<4x1xi32> to vector<4x1xf32>
    %514 = vector.broadcast %509 : vector<4x1xf32> to vector<4x64xf32>
    %515 = arith.mulf %514, %472 : vector<4x64xf32>
    %cst_111 = arith.constant 1.000000e+00 : f32
    %516 = vector.broadcast %cst_111 : f32 to vector<4x1xf32>
    %517 = arith.subf %516, %509 : vector<4x1xf32>
    %518 = vector.broadcast %517 : vector<4x1xf32> to vector<4x64xf32>
    %519 = arith.mulf %518, %419 : vector<4x64xf32>
    %520 = arith.addf %515, %519 : vector<4x64xf32>
    %521 = vector.broadcast %513 : vector<4x1xf32> to vector<4x64xf32>
    %522 = arith.mulf %521, %505 : vector<4x64xf32>
    %cst_112 = arith.constant 1.000000e+00 : f32
    %523 = vector.broadcast %cst_112 : f32 to vector<4x1xf32>
    %524 = arith.subf %523, %513 : vector<4x1xf32>
    %525 = vector.broadcast %524 : vector<4x1xf32> to vector<4x64xf32>
    %526 = arith.mulf %525, %426 : vector<4x64xf32>
    %527 = arith.addf %522, %526 : vector<4x64xf32>
    %528 = vector.broadcast %509 : vector<4x1xf32> to vector<4x64xf32>
    %529 = arith.mulf %520, %528 : vector<4x64xf32>
    %530 = arith.index_cast %c4_i32 : i32 to index
    %c0_113 = arith.constant 0 : index
    %c0_114 = arith.constant 0 : index
    %531 = vector.load %arg12[%530, %c0_113, %c0_114] : memref<8x4x64xf32, #tpu.memory_space<vmem>>, vector<1x4x64xf32>
    %532 = vector.shape_cast %531 : vector<1x4x64xf32> to vector<4x64xf32>
    %533 = vector.shape_cast %529 : vector<4x64xf32> to vector<1x4x64xf32>
    tpu.vector_store %arg12[%530, %c0_113, %c0_114], %533 {strides = array<i32>} : memref<8x4x64xf32, #tpu.memory_space<vmem>>, vector<1x4x64xf32>,
    %534 = vector.broadcast %513 : vector<4x1xf32> to vector<4x64xf32>
    %535 = arith.mulf %527, %534 : vector<4x64xf32>
    %536 = arith.index_cast %439 : i32 to index
    %c0_115 = arith.constant 0 : index
    %c0_116 = arith.constant 0 : index
    %537 = vector.load %arg13[%536, %c0_115, %c0_116] : memref<8x4x64xf32, #tpu.memory_space<vmem>>, vector<1x4x64xf32>
    %538 = vector.shape_cast %537 : vector<1x4x64xf32> to vector<4x64xf32>
    %539 = vector.shape_cast %535 : vector<4x64xf32> to vector<1x4x64xf32>
    tpu.vector_store %arg13[%536, %c0_115, %c0_116], %539 {strides = array<i32>} : memref<8x4x64xf32, #tpu.memory_space<vmem>>, vector<1x4x64xf32>,
    %c5_i32 = arith.constant 5 : i32
    %c7_i32_117 = arith.constant 7 : i32
    %540 = arith.subi %c7_i32_117, %c5_i32 : i32
    %541 = arith.index_cast %c5_i32 : i32 to index
    %c0_118 = arith.constant 0 : index
    %c0_119 = arith.constant 0 : index
    %542 = vector.load %arg10[%541, %c0_118, %c0_119] : memref<8x4x192xf32, #tpu.memory_space<vmem>>, vector<1x4x192xf32>
    %543 = vector.shape_cast %542 : vector<1x4x192xf32> to vector<4x192xf32>
    %544 = arith.truncf %520 : vector<4x64xf32> to vector<4x64xbf16>
    %cst_120 = arith.constant dense<0.000000e+00> : vector<4x192xf32>
    %545 = tpu.matmul %544, %30, %cst_120 {dimension_numbers = #tpu.dot_dimension_numbers<[1], [0], [0], [1], [0, 0, 1, 1], [], []>} : vector<4x64xbf16>, vector<64x192xbf16>, vector<4x192xf32> -> vector<4x192xf32>
    %546 = vector.extract_strided_slice %543 {offsets = [0, 0], sizes = [4, 64], strides = [1, 1]} : vector<4x192xf32> to vector<4x64xf32>
    %547 = vector.extract_strided_slice %545 {offsets = [0, 0], sizes = [4, 64], strides = [1, 1]} : vector<4x192xf32> to vector<4x64xf32>
    %548 = arith.addf %546, %547 : vector<4x64xf32>
    %549 = arith.negf %548 : vector<4x64xf32>
    %550 = math.exp %549 : vector<4x64xf32>
    %cst_121 = arith.constant 1.000000e+00 : f32
    %551 = vector.broadcast %cst_121 : f32 to vector<4x64xf32>
    %552 = arith.addf %551, %550 : vector<4x64xf32>
    %553 = arith.divf %551, %552 : vector<4x64xf32>
    %554 = vector.extract_strided_slice %543 {offsets = [0, 64], sizes = [4, 64], strides = [1, 1]} : vector<4x192xf32> to vector<4x64xf32>
    %555 = vector.extract_strided_slice %545 {offsets = [0, 64], sizes = [4, 64], strides = [1, 1]} : vector<4x192xf32> to vector<4x64xf32>
    %556 = arith.addf %554, %555 : vector<4x64xf32>
    %557 = arith.negf %556 : vector<4x64xf32>
    %558 = math.exp %557 : vector<4x64xf32>
    %cst_122 = arith.constant 1.000000e+00 : f32
    %559 = vector.broadcast %cst_122 : f32 to vector<4x64xf32>
    %560 = arith.addf %559, %558 : vector<4x64xf32>
    %561 = arith.divf %559, %560 : vector<4x64xf32>
    %562 = vector.extract_strided_slice %543 {offsets = [0, 128], sizes = [4, 64], strides = [1, 1]} : vector<4x192xf32> to vector<4x64xf32>
    %563 = vector.extract_strided_slice %545 {offsets = [0, 128], sizes = [4, 64], strides = [1, 1]} : vector<4x192xf32> to vector<4x64xf32>
    %564 = vector.broadcast %32 : vector<1x64xf32> to vector<4x64xf32>
    %565 = arith.addf %563, %564 : vector<4x64xf32>
    %566 = arith.mulf %553, %565 : vector<4x64xf32>
    %567 = arith.addf %562, %566 : vector<4x64xf32>
    %568 = math.tanh %567 : vector<4x64xf32>
    %cst_123 = arith.constant 1.000000e+00 : f32
    %569 = vector.broadcast %cst_123 : f32 to vector<4x64xf32>
    %570 = arith.subf %569, %561 : vector<4x64xf32>
    %571 = arith.mulf %570, %568 : vector<4x64xf32>
    %572 = arith.mulf %561, %520 : vector<4x64xf32>
    %573 = arith.addf %571, %572 : vector<4x64xf32>
    %574 = arith.index_cast %540 : i32 to index
    %c0_124 = arith.constant 0 : index
    %c0_125 = arith.constant 0 : index
    %575 = vector.load %arg11[%574, %c0_124, %c0_125] : memref<8x4x192xf32, #tpu.memory_space<vmem>>, vector<1x4x192xf32>
    %576 = vector.shape_cast %575 : vector<1x4x192xf32> to vector<4x192xf32>
    %577 = arith.truncf %527 : vector<4x64xf32> to vector<4x64xbf16>
    %cst_126 = arith.constant dense<0.000000e+00> : vector<4x192xf32>
    %578 = tpu.matmul %577, %31, %cst_126 {dimension_numbers = #tpu.dot_dimension_numbers<[1], [0], [0], [1], [0, 0, 1, 1], [], []>} : vector<4x64xbf16>, vector<64x192xbf16>, vector<4x192xf32> -> vector<4x192xf32>
    %579 = vector.extract_strided_slice %576 {offsets = [0, 0], sizes = [4, 64], strides = [1, 1]} : vector<4x192xf32> to vector<4x64xf32>
    %580 = vector.extract_strided_slice %578 {offsets = [0, 0], sizes = [4, 64], strides = [1, 1]} : vector<4x192xf32> to vector<4x64xf32>
    %581 = arith.addf %579, %580 : vector<4x64xf32>
    %582 = arith.negf %581 : vector<4x64xf32>
    %583 = math.exp %582 : vector<4x64xf32>
    %cst_127 = arith.constant 1.000000e+00 : f32
    %584 = vector.broadcast %cst_127 : f32 to vector<4x64xf32>
    %585 = arith.addf %584, %583 : vector<4x64xf32>
    %586 = arith.divf %584, %585 : vector<4x64xf32>
    %587 = vector.extract_strided_slice %576 {offsets = [0, 64], sizes = [4, 64], strides = [1, 1]} : vector<4x192xf32> to vector<4x64xf32>
    %588 = vector.extract_strided_slice %578 {offsets = [0, 64], sizes = [4, 64], strides = [1, 1]} : vector<4x192xf32> to vector<4x64xf32>
    %589 = arith.addf %587, %588 : vector<4x64xf32>
    %590 = arith.negf %589 : vector<4x64xf32>
    %591 = math.exp %590 : vector<4x64xf32>
    %cst_128 = arith.constant 1.000000e+00 : f32
    %592 = vector.broadcast %cst_128 : f32 to vector<4x64xf32>
    %593 = arith.addf %592, %591 : vector<4x64xf32>
    %594 = arith.divf %592, %593 : vector<4x64xf32>
    %595 = vector.extract_strided_slice %576 {offsets = [0, 128], sizes = [4, 64], strides = [1, 1]} : vector<4x192xf32> to vector<4x64xf32>
    %596 = vector.extract_strided_slice %578 {offsets = [0, 128], sizes = [4, 64], strides = [1, 1]} : vector<4x192xf32> to vector<4x64xf32>
    %597 = vector.broadcast %33 : vector<1x64xf32> to vector<4x64xf32>
    %598 = arith.addf %596, %597 : vector<4x64xf32>
    %599 = arith.mulf %586, %598 : vector<4x64xf32>
    %600 = arith.addf %595, %599 : vector<4x64xf32>
    %601 = math.tanh %600 : vector<4x64xf32>
    %cst_129 = arith.constant 1.000000e+00 : f32
    %602 = vector.broadcast %cst_129 : f32 to vector<4x64xf32>
    %603 = arith.subf %602, %594 : vector<4x64xf32>
    %604 = arith.mulf %603, %601 : vector<4x64xf32>
    %605 = arith.mulf %594, %527 : vector<4x64xf32>
    %606 = arith.addf %604, %605 : vector<4x64xf32>
    %607 = vector.broadcast %c5_i32 : i32 to vector<4x1xi32>
    %608 = arith.cmpi sgt, %0, %607 : vector<4x1xi32>
    %609 = arith.extui %608 : vector<4x1xi1> to vector<4x1xi32>
    %610 = arith.sitofp %609 : vector<4x1xi32> to vector<4x1xf32>
    %611 = vector.broadcast %540 : i32 to vector<4x1xi32>
    %612 = arith.cmpi sgt, %0, %611 : vector<4x1xi32>
    %613 = arith.extui %612 : vector<4x1xi1> to vector<4x1xi32>
    %614 = arith.sitofp %613 : vector<4x1xi32> to vector<4x1xf32>
    %615 = vector.broadcast %610 : vector<4x1xf32> to vector<4x64xf32>
    %616 = arith.mulf %615, %573 : vector<4x64xf32>
    %cst_130 = arith.constant 1.000000e+00 : f32
    %617 = vector.broadcast %cst_130 : f32 to vector<4x1xf32>
    %618 = arith.subf %617, %610 : vector<4x1xf32>
    %619 = vector.broadcast %618 : vector<4x1xf32> to vector<4x64xf32>
    %620 = arith.mulf %619, %520 : vector<4x64xf32>
    %621 = arith.addf %616, %620 : vector<4x64xf32>
    %622 = vector.broadcast %614 : vector<4x1xf32> to vector<4x64xf32>
    %623 = arith.mulf %622, %606 : vector<4x64xf32>
    %cst_131 = arith.constant 1.000000e+00 : f32
    %624 = vector.broadcast %cst_131 : f32 to vector<4x1xf32>
    %625 = arith.subf %624, %614 : vector<4x1xf32>
    %626 = vector.broadcast %625 : vector<4x1xf32> to vector<4x64xf32>
    %627 = arith.mulf %626, %527 : vector<4x64xf32>
    %628 = arith.addf %623, %627 : vector<4x64xf32>
    %629 = vector.broadcast %610 : vector<4x1xf32> to vector<4x64xf32>
    %630 = arith.mulf %621, %629 : vector<4x64xf32>
    %631 = arith.index_cast %c5_i32 : i32 to index
    %c0_132 = arith.constant 0 : index
    %c0_133 = arith.constant 0 : index
    %632 = vector.load %arg12[%631, %c0_132, %c0_133] : memref<8x4x64xf32, #tpu.memory_space<vmem>>, vector<1x4x64xf32>
    %633 = vector.shape_cast %632 : vector<1x4x64xf32> to vector<4x64xf32>
    %634 = vector.shape_cast %630 : vector<4x64xf32> to vector<1x4x64xf32>
    tpu.vector_store %arg12[%631, %c0_132, %c0_133], %634 {strides = array<i32>} : memref<8x4x64xf32, #tpu.memory_space<vmem>>, vector<1x4x64xf32>,
    %635 = vector.broadcast %614 : vector<4x1xf32> to vector<4x64xf32>
    %636 = arith.mulf %628, %635 : vector<4x64xf32>
    %637 = arith.index_cast %540 : i32 to index
    %c0_134 = arith.constant 0 : index
    %c0_135 = arith.constant 0 : index
    %638 = vector.load %arg13[%637, %c0_134, %c0_135] : memref<8x4x64xf32, #tpu.memory_space<vmem>>, vector<1x4x64xf32>
    %639 = vector.shape_cast %638 : vector<1x4x64xf32> to vector<4x64xf32>
    %640 = vector.shape_cast %636 : vector<4x64xf32> to vector<1x4x64xf32>
    tpu.vector_store %arg13[%637, %c0_134, %c0_135], %640 {strides = array<i32>} : memref<8x4x64xf32, #tpu.memory_space<vmem>>, vector<1x4x64xf32>,
    %c6_i32 = arith.constant 6 : i32
    %c7_i32_136 = arith.constant 7 : i32
    %641 = arith.subi %c7_i32_136, %c6_i32 : i32
    %642 = arith.index_cast %c6_i32 : i32 to index
    %c0_137 = arith.constant 0 : index
    %c0_138 = arith.constant 0 : index
    %643 = vector.load %arg10[%642, %c0_137, %c0_138] : memref<8x4x192xf32, #tpu.memory_space<vmem>>, vector<1x4x192xf32>
    %644 = vector.shape_cast %643 : vector<1x4x192xf32> to vector<4x192xf32>
    %645 = arith.truncf %621 : vector<4x64xf32> to vector<4x64xbf16>
    %cst_139 = arith.constant dense<0.000000e+00> : vector<4x192xf32>
    %646 = tpu.matmul %645, %30, %cst_139 {dimension_numbers = #tpu.dot_dimension_numbers<[1], [0], [0], [1], [0, 0, 1, 1], [], []>} : vector<4x64xbf16>, vector<64x192xbf16>, vector<4x192xf32> -> vector<4x192xf32>
    %647 = vector.extract_strided_slice %644 {offsets = [0, 0], sizes = [4, 64], strides = [1, 1]} : vector<4x192xf32> to vector<4x64xf32>
    %648 = vector.extract_strided_slice %646 {offsets = [0, 0], sizes = [4, 64], strides = [1, 1]} : vector<4x192xf32> to vector<4x64xf32>
    %649 = arith.addf %647, %648 : vector<4x64xf32>
    %650 = arith.negf %649 : vector<4x64xf32>
    %651 = math.exp %650 : vector<4x64xf32>
    %cst_140 = arith.constant 1.000000e+00 : f32
    %652 = vector.broadcast %cst_140 : f32 to vector<4x64xf32>
    %653 = arith.addf %652, %651 : vector<4x64xf32>
    %654 = arith.divf %652, %653 : vector<4x64xf32>
    %655 = vector.extract_strided_slice %644 {offsets = [0, 64], sizes = [4, 64], strides = [1, 1]} : vector<4x192xf32> to vector<4x64xf32>
    %656 = vector.extract_strided_slice %646 {offsets = [0, 64], sizes = [4, 64], strides = [1, 1]} : vector<4x192xf32> to vector<4x64xf32>
    %657 = arith.addf %655, %656 : vector<4x64xf32>
    %658 = arith.negf %657 : vector<4x64xf32>
    %659 = math.exp %658 : vector<4x64xf32>
    %cst_141 = arith.constant 1.000000e+00 : f32
    %660 = vector.broadcast %cst_141 : f32 to vector<4x64xf32>
    %661 = arith.addf %660, %659 : vector<4x64xf32>
    %662 = arith.divf %660, %661 : vector<4x64xf32>
    %663 = vector.extract_strided_slice %644 {offsets = [0, 128], sizes = [4, 64], strides = [1, 1]} : vector<4x192xf32> to vector<4x64xf32>
    %664 = vector.extract_strided_slice %646 {offsets = [0, 128], sizes = [4, 64], strides = [1, 1]} : vector<4x192xf32> to vector<4x64xf32>
    %665 = vector.broadcast %32 : vector<1x64xf32> to vector<4x64xf32>
    %666 = arith.addf %664, %665 : vector<4x64xf32>
    %667 = arith.mulf %654, %666 : vector<4x64xf32>
    %668 = arith.addf %663, %667 : vector<4x64xf32>
    %669 = math.tanh %668 : vector<4x64xf32>
    %cst_142 = arith.constant 1.000000e+00 : f32
    %670 = vector.broadcast %cst_142 : f32 to vector<4x64xf32>
    %671 = arith.subf %670, %662 : vector<4x64xf32>
    %672 = arith.mulf %671, %669 : vector<4x64xf32>
    %673 = arith.mulf %662, %621 : vector<4x64xf32>
    %674 = arith.addf %672, %673 : vector<4x64xf32>
    %675 = arith.index_cast %641 : i32 to index
    %c0_143 = arith.constant 0 : index
    %c0_144 = arith.constant 0 : index
    %676 = vector.load %arg11[%675, %c0_143, %c0_144] : memref<8x4x192xf32, #tpu.memory_space<vmem>>, vector<1x4x192xf32>
    %677 = vector.shape_cast %676 : vector<1x4x192xf32> to vector<4x192xf32>
    %678 = arith.truncf %628 : vector<4x64xf32> to vector<4x64xbf16>
    %cst_145 = arith.constant dense<0.000000e+00> : vector<4x192xf32>
    %679 = tpu.matmul %678, %31, %cst_145 {dimension_numbers = #tpu.dot_dimension_numbers<[1], [0], [0], [1], [0, 0, 1, 1], [], []>} : vector<4x64xbf16>, vector<64x192xbf16>, vector<4x192xf32> -> vector<4x192xf32>
    %680 = vector.extract_strided_slice %677 {offsets = [0, 0], sizes = [4, 64], strides = [1, 1]} : vector<4x192xf32> to vector<4x64xf32>
    %681 = vector.extract_strided_slice %679 {offsets = [0, 0], sizes = [4, 64], strides = [1, 1]} : vector<4x192xf32> to vector<4x64xf32>
    %682 = arith.addf %680, %681 : vector<4x64xf32>
    %683 = arith.negf %682 : vector<4x64xf32>
    %684 = math.exp %683 : vector<4x64xf32>
    %cst_146 = arith.constant 1.000000e+00 : f32
    %685 = vector.broadcast %cst_146 : f32 to vector<4x64xf32>
    %686 = arith.addf %685, %684 : vector<4x64xf32>
    %687 = arith.divf %685, %686 : vector<4x64xf32>
    %688 = vector.extract_strided_slice %677 {offsets = [0, 64], sizes = [4, 64], strides = [1, 1]} : vector<4x192xf32> to vector<4x64xf32>
    %689 = vector.extract_strided_slice %679 {offsets = [0, 64], sizes = [4, 64], strides = [1, 1]} : vector<4x192xf32> to vector<4x64xf32>
    %690 = arith.addf %688, %689 : vector<4x64xf32>
    %691 = arith.negf %690 : vector<4x64xf32>
    %692 = math.exp %691 : vector<4x64xf32>
    %cst_147 = arith.constant 1.000000e+00 : f32
    %693 = vector.broadcast %cst_147 : f32 to vector<4x64xf32>
    %694 = arith.addf %693, %692 : vector<4x64xf32>
    %695 = arith.divf %693, %694 : vector<4x64xf32>
    %696 = vector.extract_strided_slice %677 {offsets = [0, 128], sizes = [4, 64], strides = [1, 1]} : vector<4x192xf32> to vector<4x64xf32>
    %697 = vector.extract_strided_slice %679 {offsets = [0, 128], sizes = [4, 64], strides = [1, 1]} : vector<4x192xf32> to vector<4x64xf32>
    %698 = vector.broadcast %33 : vector<1x64xf32> to vector<4x64xf32>
    %699 = arith.addf %697, %698 : vector<4x64xf32>
    %700 = arith.mulf %687, %699 : vector<4x64xf32>
    %701 = arith.addf %696, %700 : vector<4x64xf32>
    %702 = math.tanh %701 : vector<4x64xf32>
    %cst_148 = arith.constant 1.000000e+00 : f32
    %703 = vector.broadcast %cst_148 : f32 to vector<4x64xf32>
    %704 = arith.subf %703, %695 : vector<4x64xf32>
    %705 = arith.mulf %704, %702 : vector<4x64xf32>
    %706 = arith.mulf %695, %628 : vector<4x64xf32>
    %707 = arith.addf %705, %706 : vector<4x64xf32>
    %708 = vector.broadcast %c6_i32 : i32 to vector<4x1xi32>
    %709 = arith.cmpi sgt, %0, %708 : vector<4x1xi32>
    %710 = arith.extui %709 : vector<4x1xi1> to vector<4x1xi32>
    %711 = arith.sitofp %710 : vector<4x1xi32> to vector<4x1xf32>
    %712 = vector.broadcast %641 : i32 to vector<4x1xi32>
    %713 = arith.cmpi sgt, %0, %712 : vector<4x1xi32>
    %714 = arith.extui %713 : vector<4x1xi1> to vector<4x1xi32>
    %715 = arith.sitofp %714 : vector<4x1xi32> to vector<4x1xf32>
    %716 = vector.broadcast %711 : vector<4x1xf32> to vector<4x64xf32>
    %717 = arith.mulf %716, %674 : vector<4x64xf32>
    %cst_149 = arith.constant 1.000000e+00 : f32
    %718 = vector.broadcast %cst_149 : f32 to vector<4x1xf32>
    %719 = arith.subf %718, %711 : vector<4x1xf32>
    %720 = vector.broadcast %719 : vector<4x1xf32> to vector<4x64xf32>
    %721 = arith.mulf %720, %621 : vector<4x64xf32>
    %722 = arith.addf %717, %721 : vector<4x64xf32>
    %723 = vector.broadcast %715 : vector<4x1xf32> to vector<4x64xf32>
    %724 = arith.mulf %723, %707 : vector<4x64xf32>
    %cst_150 = arith.constant 1.000000e+00 : f32
    %725 = vector.broadcast %cst_150 : f32 to vector<4x1xf32>
    %726 = arith.subf %725, %715 : vector<4x1xf32>
    %727 = vector.broadcast %726 : vector<4x1xf32> to vector<4x64xf32>
    %728 = arith.mulf %727, %628 : vector<4x64xf32>
    %729 = arith.addf %724, %728 : vector<4x64xf32>
    %730 = vector.broadcast %711 : vector<4x1xf32> to vector<4x64xf32>
    %731 = arith.mulf %722, %730 : vector<4x64xf32>
    %732 = arith.index_cast %c6_i32 : i32 to index
    %c0_151 = arith.constant 0 : index
    %c0_152 = arith.constant 0 : index
    %733 = vector.load %arg12[%732, %c0_151, %c0_152] : memref<8x4x64xf32, #tpu.memory_space<vmem>>, vector<1x4x64xf32>
    %734 = vector.shape_cast %733 : vector<1x4x64xf32> to vector<4x64xf32>
    %735 = vector.shape_cast %731 : vector<4x64xf32> to vector<1x4x64xf32>
    tpu.vector_store %arg12[%732, %c0_151, %c0_152], %735 {strides = array<i32>} : memref<8x4x64xf32, #tpu.memory_space<vmem>>, vector<1x4x64xf32>,
    %736 = vector.broadcast %715 : vector<4x1xf32> to vector<4x64xf32>
    %737 = arith.mulf %729, %736 : vector<4x64xf32>
    %738 = arith.index_cast %641 : i32 to index
    %c0_153 = arith.constant 0 : index
    %c0_154 = arith.constant 0 : index
    %739 = vector.load %arg13[%738, %c0_153, %c0_154] : memref<8x4x64xf32, #tpu.memory_space<vmem>>, vector<1x4x64xf32>
    %740 = vector.shape_cast %739 : vector<1x4x64xf32> to vector<4x64xf32>
    %741 = vector.shape_cast %737 : vector<4x64xf32> to vector<1x4x64xf32>
    tpu.vector_store %arg13[%738, %c0_153, %c0_154], %741 {strides = array<i32>} : memref<8x4x64xf32, #tpu.memory_space<vmem>>, vector<1x4x64xf32>,
    %c7_i32_155 = arith.constant 7 : i32
    %c7_i32_156 = arith.constant 7 : i32
    %742 = arith.subi %c7_i32_156, %c7_i32_155 : i32
    %743 = arith.index_cast %c7_i32_155 : i32 to index
    %c0_157 = arith.constant 0 : index
    %c0_158 = arith.constant 0 : index
    %744 = vector.load %arg10[%743, %c0_157, %c0_158] : memref<8x4x192xf32, #tpu.memory_space<vmem>>, vector<1x4x192xf32>
    %745 = vector.shape_cast %744 : vector<1x4x192xf32> to vector<4x192xf32>
    %746 = arith.truncf %722 : vector<4x64xf32> to vector<4x64xbf16>
    %cst_159 = arith.constant dense<0.000000e+00> : vector<4x192xf32>
    %747 = tpu.matmul %746, %30, %cst_159 {dimension_numbers = #tpu.dot_dimension_numbers<[1], [0], [0], [1], [0, 0, 1, 1], [], []>} : vector<4x64xbf16>, vector<64x192xbf16>, vector<4x192xf32> -> vector<4x192xf32>
    %748 = vector.extract_strided_slice %745 {offsets = [0, 0], sizes = [4, 64], strides = [1, 1]} : vector<4x192xf32> to vector<4x64xf32>
    %749 = vector.extract_strided_slice %747 {offsets = [0, 0], sizes = [4, 64], strides = [1, 1]} : vector<4x192xf32> to vector<4x64xf32>
    %750 = arith.addf %748, %749 : vector<4x64xf32>
    %751 = arith.negf %750 : vector<4x64xf32>
    %752 = math.exp %751 : vector<4x64xf32>
    %cst_160 = arith.constant 1.000000e+00 : f32
    %753 = vector.broadcast %cst_160 : f32 to vector<4x64xf32>
    %754 = arith.addf %753, %752 : vector<4x64xf32>
    %755 = arith.divf %753, %754 : vector<4x64xf32>
    %756 = vector.extract_strided_slice %745 {offsets = [0, 64], sizes = [4, 64], strides = [1, 1]} : vector<4x192xf32> to vector<4x64xf32>
    %757 = vector.extract_strided_slice %747 {offsets = [0, 64], sizes = [4, 64], strides = [1, 1]} : vector<4x192xf32> to vector<4x64xf32>
    %758 = arith.addf %756, %757 : vector<4x64xf32>
    %759 = arith.negf %758 : vector<4x64xf32>
    %760 = math.exp %759 : vector<4x64xf32>
    %cst_161 = arith.constant 1.000000e+00 : f32
    %761 = vector.broadcast %cst_161 : f32 to vector<4x64xf32>
    %762 = arith.addf %761, %760 : vector<4x64xf32>
    %763 = arith.divf %761, %762 : vector<4x64xf32>
    %764 = vector.extract_strided_slice %745 {offsets = [0, 128], sizes = [4, 64], strides = [1, 1]} : vector<4x192xf32> to vector<4x64xf32>
    %765 = vector.extract_strided_slice %747 {offsets = [0, 128], sizes = [4, 64], strides = [1, 1]} : vector<4x192xf32> to vector<4x64xf32>
    %766 = vector.broadcast %32 : vector<1x64xf32> to vector<4x64xf32>
    %767 = arith.addf %765, %766 : vector<4x64xf32>
    %768 = arith.mulf %755, %767 : vector<4x64xf32>
    %769 = arith.addf %764, %768 : vector<4x64xf32>
    %770 = math.tanh %769 : vector<4x64xf32>
    %cst_162 = arith.constant 1.000000e+00 : f32
    %771 = vector.broadcast %cst_162 : f32 to vector<4x64xf32>
    %772 = arith.subf %771, %763 : vector<4x64xf32>
    %773 = arith.mulf %772, %770 : vector<4x64xf32>
    %774 = arith.mulf %763, %722 : vector<4x64xf32>
    %775 = arith.addf %773, %774 : vector<4x64xf32>
    %776 = arith.index_cast %742 : i32 to index
    %c0_163 = arith.constant 0 : index
    %c0_164 = arith.constant 0 : index
    %777 = vector.load %arg11[%776, %c0_163, %c0_164] : memref<8x4x192xf32, #tpu.memory_space<vmem>>, vector<1x4x192xf32>
    %778 = vector.shape_cast %777 : vector<1x4x192xf32> to vector<4x192xf32>
    %779 = arith.truncf %729 : vector<4x64xf32> to vector<4x64xbf16>
    %cst_165 = arith.constant dense<0.000000e+00> : vector<4x192xf32>
    %780 = tpu.matmul %779, %31, %cst_165 {dimension_numbers = #tpu.dot_dimension_numbers<[1], [0], [0], [1], [0, 0, 1, 1], [], []>} : vector<4x64xbf16>, vector<64x192xbf16>, vector<4x192xf32> -> vector<4x192xf32>
    %781 = vector.extract_strided_slice %778 {offsets = [0, 0], sizes = [4, 64], strides = [1, 1]} : vector<4x192xf32> to vector<4x64xf32>
    %782 = vector.extract_strided_slice %780 {offsets = [0, 0], sizes = [4, 64], strides = [1, 1]} : vector<4x192xf32> to vector<4x64xf32>
    %783 = arith.addf %781, %782 : vector<4x64xf32>
    %784 = arith.negf %783 : vector<4x64xf32>
    %785 = math.exp %784 : vector<4x64xf32>
    %cst_166 = arith.constant 1.000000e+00 : f32
    %786 = vector.broadcast %cst_166 : f32 to vector<4x64xf32>
    %787 = arith.addf %786, %785 : vector<4x64xf32>
    %788 = arith.divf %786, %787 : vector<4x64xf32>
    %789 = vector.extract_strided_slice %778 {offsets = [0, 64], sizes = [4, 64], strides = [1, 1]} : vector<4x192xf32> to vector<4x64xf32>
    %790 = vector.extract_strided_slice %780 {offsets = [0, 64], sizes = [4, 64], strides = [1, 1]} : vector<4x192xf32> to vector<4x64xf32>
    %791 = arith.addf %789, %790 : vector<4x64xf32>
    %792 = arith.negf %791 : vector<4x64xf32>
    %793 = math.exp %792 : vector<4x64xf32>
    %cst_167 = arith.constant 1.000000e+00 : f32
    %794 = vector.broadcast %cst_167 : f32 to vector<4x64xf32>
    %795 = arith.addf %794, %793 : vector<4x64xf32>
    %796 = arith.divf %794, %795 : vector<4x64xf32>
    %797 = vector.extract_strided_slice %778 {offsets = [0, 128], sizes = [4, 64], strides = [1, 1]} : vector<4x192xf32> to vector<4x64xf32>
    %798 = vector.extract_strided_slice %780 {offsets = [0, 128], sizes = [4, 64], strides = [1, 1]} : vector<4x192xf32> to vector<4x64xf32>
    %799 = vector.broadcast %33 : vector<1x64xf32> to vector<4x64xf32>
    %800 = arith.addf %798, %799 : vector<4x64xf32>
    %801 = arith.mulf %788, %800 : vector<4x64xf32>
    %802 = arith.addf %797, %801 : vector<4x64xf32>
    %803 = math.tanh %802 : vector<4x64xf32>
    %cst_168 = arith.constant 1.000000e+00 : f32
    %804 = vector.broadcast %cst_168 : f32 to vector<4x64xf32>
    %805 = arith.subf %804, %796 : vector<4x64xf32>
    %806 = arith.mulf %805, %803 : vector<4x64xf32>
    %807 = arith.mulf %796, %729 : vector<4x64xf32>
    %808 = arith.addf %806, %807 : vector<4x64xf32>
    %809 = vector.broadcast %c7_i32_155 : i32 to vector<4x1xi32>
    %810 = arith.cmpi sgt, %0, %809 : vector<4x1xi32>
    %811 = arith.extui %810 : vector<4x1xi1> to vector<4x1xi32>
    %812 = arith.sitofp %811 : vector<4x1xi32> to vector<4x1xf32>
    %813 = vector.broadcast %742 : i32 to vector<4x1xi32>
    %814 = arith.cmpi sgt, %0, %813 : vector<4x1xi32>
    %815 = arith.extui %814 : vector<4x1xi1> to vector<4x1xi32>
    %816 = arith.sitofp %815 : vector<4x1xi32> to vector<4x1xf32>
    %817 = vector.broadcast %812 : vector<4x1xf32> to vector<4x64xf32>
    %818 = arith.mulf %817, %775 : vector<4x64xf32>
    %cst_169 = arith.constant 1.000000e+00 : f32
    %819 = vector.broadcast %cst_169 : f32 to vector<4x1xf32>
    %820 = arith.subf %819, %812 : vector<4x1xf32>
    %821 = vector.broadcast %820 : vector<4x1xf32> to vector<4x64xf32>
    %822 = arith.mulf %821, %722 : vector<4x64xf32>
    %823 = arith.addf %818, %822 : vector<4x64xf32>
    %824 = vector.broadcast %816 : vector<4x1xf32> to vector<4x64xf32>
    %825 = arith.mulf %824, %808 : vector<4x64xf32>
    %cst_170 = arith.constant 1.000000e+00 : f32
    %826 = vector.broadcast %cst_170 : f32 to vector<4x1xf32>
    %827 = arith.subf %826, %816 : vector<4x1xf32>
    %828 = vector.broadcast %827 : vector<4x1xf32> to vector<4x64xf32>
    %829 = arith.mulf %828, %729 : vector<4x64xf32>
    %830 = arith.addf %825, %829 : vector<4x64xf32>
    %831 = vector.broadcast %812 : vector<4x1xf32> to vector<4x64xf32>
    %832 = arith.mulf %823, %831 : vector<4x64xf32>
    %833 = arith.index_cast %c7_i32_155 : i32 to index
    %c0_171 = arith.constant 0 : index
    %c0_172 = arith.constant 0 : index
    %834 = vector.load %arg12[%833, %c0_171, %c0_172] : memref<8x4x64xf32, #tpu.memory_space<vmem>>, vector<1x4x64xf32>
    %835 = vector.shape_cast %834 : vector<1x4x64xf32> to vector<4x64xf32>
    %836 = vector.shape_cast %832 : vector<4x64xf32> to vector<1x4x64xf32>
    tpu.vector_store %arg12[%833, %c0_171, %c0_172], %836 {strides = array<i32>} : memref<8x4x64xf32, #tpu.memory_space<vmem>>, vector<1x4x64xf32>,
    %837 = vector.broadcast %816 : vector<4x1xf32> to vector<4x64xf32>
    %838 = arith.mulf %830, %837 : vector<4x64xf32>
    %839 = arith.index_cast %742 : i32 to index
    %c0_173 = arith.constant 0 : index
    %c0_174 = arith.constant 0 : index
    %840 = vector.load %arg13[%839, %c0_173, %c0_174] : memref<8x4x64xf32, #tpu.memory_space<vmem>>, vector<1x4x64xf32>
    %841 = vector.shape_cast %840 : vector<1x4x64xf32> to vector<4x64xf32>
    %842 = vector.shape_cast %838 : vector<4x64xf32> to vector<1x4x64xf32>
    tpu.vector_store %arg13[%839, %c0_173, %c0_174], %842 {strides = array<i32>} : memref<8x4x64xf32, #tpu.memory_space<vmem>>, vector<1x4x64xf32>,
    %c8_i32 = arith.constant 8 : i32
    %c0_175 = arith.constant 0 : index
    %c0_176 = arith.constant 0 : index
    %c0_177 = arith.constant 0 : index
    %843 = vector.load %arg12[%c0_175, %c0_176, %c0_177] : memref<8x4x64xf32, #tpu.memory_space<vmem>>, vector<8x4x64xf32>
    %c0_178 = arith.constant 0 : index
    %c0_179 = arith.constant 0 : index
    %c0_180 = arith.constant 0 : index
    %844 = vector.load %arg13[%c0_178, %c0_179, %c0_180] : memref<8x4x64xf32, #tpu.memory_space<vmem>>, vector<8x4x64xf32>
    %845 = tpu.concatenate %843, %844 in 2 : vector<8x4x64xf32>, vector<8x4x64xf32> -> vector<8x4x128xf32>
    %c0_181 = arith.constant 0 : index
    %c0_182 = arith.constant 0 : index
    %c0_183 = arith.constant 0 : index
    %846 = vector.load %arg9[%c0_181, %c0_182, %c0_183] : memref<8x4x128xf32, #tpu.memory_space<vmem>>, vector<8x4x128xf32>
    tpu.vector_store %arg9[%c0_181, %c0_182, %c0_183], %845 {strides = array<i32>} : memref<8x4x128xf32, #tpu.memory_space<vmem>>, vector<8x4x128xf32>,
    return
  }
  func.func @transform_0(%arg0: i32) -> (i32, i32, i32) {
    %c0_i32 = arith.constant 0 : i32
    %c0_i32_0 = arith.constant 0 : i32
    %c0_i32_1 = arith.constant 0 : i32
    return %arg0, %c0_i32, %c0_i32_0 : i32, i32, i32
  }
  func.func @transform_1(%arg0: i32) -> (i32, i32) {
    %c0_i32 = arith.constant 0 : i32
    %c0_i32_0 = arith.constant 0 : i32
    return %arg0, %c0_i32 : i32, i32
  }
  func.func @transform_2(%arg0: i32) -> (i32, i32) {
    %c0_i32 = arith.constant 0 : i32
    %c0_i32_0 = arith.constant 0 : i32
    %c0_i32_1 = arith.constant 0 : i32
    return %c0_i32, %c0_i32_0 : i32, i32
  }
  func.func @transform_3(%arg0: i32) -> (i32, i32) {
    %c0_i32 = arith.constant 0 : i32
    %c0_i32_0 = arith.constant 0 : i32
    %c0_i32_1 = arith.constant 0 : i32
    return %c0_i32, %c0_i32_0 : i32, i32
  }
  func.func @transform_4(%arg0: i32) -> (i32, i32) {
    %c0_i32 = arith.constant 0 : i32
    %c0_i32_0 = arith.constant 0 : i32
    %c0_i32_1 = arith.constant 0 : i32
    return %c0_i32, %c0_i32_0 : i32, i32
  }
  func.func @transform_5(%arg0: i32) -> (i32, i32) {
    %c0_i32 = arith.constant 0 : i32
    %c0_i32_0 = arith.constant 0 : i32
    %c0_i32_1 = arith.constant 0 : i32
    return %c0_i32, %c0_i32_0 : i32, i32
  }
  func.func @transform_6(%arg0: i32) -> (i32, i32) {
    %c0_i32 = arith.constant 0 : i32
    %c0_i32_0 = arith.constant 0 : i32
    %c0_i32_1 = arith.constant 0 : i32
    return %c0_i32, %c0_i32_0 : i32, i32
  }
  func.func @transform_7(%arg0: i32) -> (i32, i32) {
    %c0_i32 = arith.constant 0 : i32
    %c0_i32_0 = arith.constant 0 : i32
    %c0_i32_1 = arith.constant 0 : i32
    return %c0_i32, %c0_i32_0 : i32, i32
  }
  func.func @transform_8(%arg0: i32) -> (i32, i32, i32) {
    %c0_i32 = arith.constant 0 : i32
    %c0_i32_0 = arith.constant 0 : i32
    %c0_i32_1 = arith.constant 0 : i32
    return %c0_i32, %arg0, %c0_i32_0 : i32, i32, i32
  }
}

module attributes {stable_mosaic.version = 11 : i64} {
  func.func @attn_pool_kernel(%arg0: i32, %arg1: memref<8x4x128xf32, #tpu.memory_space<vmem>>, %arg2: memref<4x1xi32, #tpu.memory_space<vmem>>, %arg3: memref<1x128xf32, #tpu.memory_space<vmem>>, %arg4: memref<1x128xf32, #tpu.memory_space<vmem>>, %arg5: memref<128x128xbf16, #tpu.memory_space<vmem>>, %arg6: memref<1x128xf32, #tpu.memory_space<vmem>>, %arg7: memref<1x128xf32, #tpu.memory_space<vmem>>, %arg8: memref<4x128xf32, #tpu.memory_space<vmem>>, %arg9: memref<4x8xf32, #tpu.memory_space<vmem>>) attributes {dimension_semantics = [#tpu.dimension_semantics<parallel>], iteration_bounds = array<i64: 1>, scalar_prefetch = 0 : i64, scratch_operands = 0 : i64, tpu.core_type = #tpu.core_type<tc>, window_params = [{transform_indices = @transform_0, window_bounds = array<i64: 8, 4, 128>}, {transform_indices = @transform_1, window_bounds = array<i64: 4, 1>}, {pipeline_mode = #tpu.pipeline_mode<synchronous>, transform_indices = @transform_2, window_bounds = array<i64: 1, 128>}, {pipeline_mode = #tpu.pipeline_mode<synchronous>, transform_indices = @transform_3, window_bounds = array<i64: 1, 128>}, {pipeline_mode = #tpu.pipeline_mode<synchronous>, transform_indices = @transform_4, window_bounds = array<i64: 128, 128>}, {pipeline_mode = #tpu.pipeline_mode<synchronous>, transform_indices = @transform_5, window_bounds = array<i64: 1, 128>}, {pipeline_mode = #tpu.pipeline_mode<synchronous>, transform_indices = @transform_6, window_bounds = array<i64: 1, 128>}, {transform_indices = @transform_7, window_bounds = array<i64: 4, 128>}, {transform_indices = @transform_8, window_bounds = array<i64: 4, 8>}]} {
    %c0 = arith.constant 0 : index
    %c0_0 = arith.constant 0 : index
    %c0_1 = arith.constant 0 : index
    %0 = vector.load %arg1[%c0, %c0_0, %c0_1] : memref<8x4x128xf32, #tpu.memory_space<vmem>>, vector<8x4x128xf32>
    %cst = arith.constant dense<0.000000e+00> : vector<8x4xf32>
    %1 = vector.multi_reduction <add>, %0, %cst [2] : vector<8x4x128xf32> to vector<8x4xf32>
    %2 = vector.shape_cast %1 : vector<8x4xf32> to vector<8x4x1xf32>
    %cst_2 = arith.constant 1.280000e+02 : f32
    %3 = vector.broadcast %cst_2 : f32 to vector<8x4x1xf32>
    %4 = arith.divf %2, %3 : vector<8x4x1xf32>
    %5 = vector.broadcast %4 : vector<8x4x1xf32> to vector<8x4x128xf32>
    %6 = arith.subf %0, %5 : vector<8x4x128xf32>
    %7 = arith.mulf %6, %6 : vector<8x4x128xf32>
    %cst_3 = arith.constant dense<0.000000e+00> : vector<8x4xf32>
    %8 = vector.multi_reduction <add>, %7, %cst_3 [2] : vector<8x4x128xf32> to vector<8x4xf32>
    %9 = vector.shape_cast %8 : vector<8x4xf32> to vector<8x4x1xf32>
    %cst_4 = arith.constant 1.280000e+02 : f32
    %10 = vector.broadcast %cst_4 : f32 to vector<8x4x1xf32>
    %11 = arith.divf %9, %10 : vector<8x4x1xf32>
    %12 = vector.broadcast %4 : vector<8x4x1xf32> to vector<8x4x128xf32>
    %13 = arith.subf %0, %12 : vector<8x4x128xf32>
    %cst_5 = arith.constant 9.99999974E-6 : f32
    %14 = vector.broadcast %cst_5 : f32 to vector<8x4x1xf32>
    %15 = arith.addf %11, %14 : vector<8x4x1xf32>
    %16 = math.rsqrt %15 : vector<8x4x1xf32>
    %17 = vector.broadcast %16 : vector<8x4x1xf32> to vector<8x4x128xf32>
    %18 = arith.mulf %13, %17 : vector<8x4x128xf32>
    %c0_6 = arith.constant 0 : index
    %c0_7 = arith.constant 0 : index
    %19 = vector.load %arg3[%c0_6, %c0_7] : memref<1x128xf32, #tpu.memory_space<vmem>>, vector<1x128xf32>
    %20 = vector.shape_cast %19 : vector<1x128xf32> to vector<1x1x128xf32>
    %21 = vector.broadcast %20 : vector<1x1x128xf32> to vector<8x4x128xf32>
    %22 = arith.mulf %18, %21 : vector<8x4x128xf32>
    %c0_8 = arith.constant 0 : index
    %c0_9 = arith.constant 0 : index
    %23 = vector.load %arg4[%c0_8, %c0_9] : memref<1x128xf32, #tpu.memory_space<vmem>>, vector<1x128xf32>
    %24 = vector.shape_cast %23 : vector<1x128xf32> to vector<1x1x128xf32>
    %25 = vector.broadcast %24 : vector<1x1x128xf32> to vector<8x4x128xf32>
    %26 = arith.addf %22, %25 : vector<8x4x128xf32>
    %27 = vector.shape_cast %26 : vector<8x4x128xf32> to vector<32x128xf32>
    %28 = arith.truncf %27 : vector<32x128xf32> to vector<32x128xbf16>
    %c0_10 = arith.constant 0 : index
    %c0_11 = arith.constant 0 : index
    %29 = vector.load %arg5[%c0_10, %c0_11] : memref<128x128xbf16, #tpu.memory_space<vmem>>, vector<128x128xbf16>
    %cst_12 = arith.constant dense<0.000000e+00> : vector<32x128xf32>
    %30 = tpu.matmul %28, %29, %cst_12 {dimension_numbers = #tpu.dot_dimension_numbers<[1], [0], [0], [1], [0, 0, 1, 1], [], []>} : vector<32x128xbf16>, vector<128x128xbf16>, vector<32x128xf32> -> vector<32x128xf32>
    %c0_13 = arith.constant 0 : index
    %c0_14 = arith.constant 0 : index
    %31 = vector.load %arg6[%c0_13, %c0_14] : memref<1x128xf32, #tpu.memory_space<vmem>>, vector<1x128xf32>
    %32 = vector.broadcast %31 : vector<1x128xf32> to vector<32x128xf32>
    %33 = arith.addf %30, %32 : vector<32x128xf32>
    %34 = math.tanh %33 : vector<32x128xf32>
    %c0_15 = arith.constant 0 : index
    %c0_16 = arith.constant 0 : index
    %35 = vector.load %arg7[%c0_15, %c0_16] : memref<1x128xf32, #tpu.memory_space<vmem>>, vector<1x128xf32>
    %36 = vector.broadcast %35 : vector<1x128xf32> to vector<32x128xf32>
    %37 = arith.mulf %34, %36 : vector<32x128xf32>
    %cst_17 = arith.constant dense<0.000000e+00> : vector<32xf32>
    %38 = vector.multi_reduction <add>, %37, %cst_17 [1] : vector<32x128xf32> to vector<32xf32>
    %39 = vector.shape_cast %38 : vector<32xf32> to vector<32x1xf32>
    %40 = vector.shape_cast %39 : vector<32x1xf32> to vector<8x4x1xf32>
    %41 = tpu.iota {dimensions = array<i32: 0>} : vector<8x4x1xi32>
    %c0_18 = arith.constant 0 : index
    %c0_19 = arith.constant 0 : index
    %42 = vector.load %arg2[%c0_18, %c0_19] : memref<4x1xi32, #tpu.memory_space<vmem>>, vector<4x1xi32>
    %43 = vector.shape_cast %42 : vector<4x1xi32> to vector<1x4x1xi32>
    %44 = vector.broadcast %43 : vector<1x4x1xi32> to vector<8x4x1xi32>
    %45 = arith.cmpi slt, %41, %44 : vector<8x4x1xi32>
    %cst_20 = arith.constant -1.000000e+30 : f32
    %46 = vector.broadcast %cst_20 : f32 to vector<8x4x1xf32>
    %47 = arith.select %45, %40, %46 : vector<8x4x1xi1>, vector<8x4x1xf32>
    %48 = vector.shape_cast %47 : vector<8x4x1xf32> to vector<1x8x4x1xf32>
    %cst_21 = arith.constant dense<0xFF800000> : vector<1xf32>
    %49 = vector.multi_reduction <maximumf>, %48, %cst_21 [1, 2, 3] : vector<1x8x4x1xf32> to vector<1xf32>
    %50 = vector.shape_cast %49 : vector<1xf32> to vector<1x1x1x1xf32>
    %51 = vector.extract %50[0, 0, 0, 0] : f32 from vector<1x1x1x1xf32>
    %52 = vector.broadcast %51 : f32 to vector<8x4x1xf32>
    %53 = arith.subf %47, %52 : vector<8x4x1xf32>
    %54 = math.exp %53 : vector<8x4x1xf32>
    %cst_22 = arith.constant 0.000000e+00 : f32
    %55 = vector.broadcast %cst_22 : f32 to vector<8x4x1xf32>
    %56 = arith.select %45, %54, %55 : vector<8x4x1xi1>, vector<8x4x1xf32>
    %cst_23 = arith.constant dense<0.000000e+00> : vector<4x1xf32>
    %57 = vector.multi_reduction <add>, %56, %cst_23 [0] : vector<8x4x1xf32> to vector<4x1xf32>
    %58 = vector.shape_cast %57 : vector<4x1xf32> to vector<1x4x1xf32>
    %cst_24 = arith.constant 1.000000e-30 : f32
    %59 = vector.broadcast %cst_24 : f32 to vector<1x4x1xf32>
    %60 = arith.maximumf %58, %59 : vector<1x4x1xf32>
    %61 = vector.broadcast %60 : vector<1x4x1xf32> to vector<8x4x1xf32>
    %62 = arith.divf %56, %61 : vector<8x4x1xf32>
    %63 = vector.broadcast %62 : vector<8x4x1xf32> to vector<8x4x128xf32>
    %64 = arith.mulf %63, %0 : vector<8x4x128xf32>
    %cst_25 = arith.constant dense<0.000000e+00> : vector<4x128xf32>
    %65 = vector.multi_reduction <add>, %64, %cst_25 [0] : vector<8x4x128xf32> to vector<4x128xf32>
    %c0_26 = arith.constant 0 : index
    %c0_27 = arith.constant 0 : index
    %66 = vector.load %arg8[%c0_26, %c0_27] : memref<4x128xf32, #tpu.memory_space<vmem>>, vector<4x128xf32>
    tpu.vector_store %arg8[%c0_26, %c0_27], %65 {strides = array<i32>} : memref<4x128xf32, #tpu.memory_space<vmem>>, vector<4x128xf32>,
    %67 = vector.shape_cast %62 : vector<8x4x1xf32> to vector<8x4xf32>
    %68 = tpu.transpose %67, [1, 0] : vector<8x4xf32> -> vector<4x8xf32>
    %c0_28 = arith.constant 0 : index
    %c0_29 = arith.constant 0 : index
    %69 = vector.load %arg9[%c0_28, %c0_29] : memref<4x8xf32, #tpu.memory_space<vmem>>, vector<4x8xf32>
    tpu.vector_store %arg9[%c0_28, %c0_29], %68 {strides = array<i32>} : memref<4x8xf32, #tpu.memory_space<vmem>>, vector<4x8xf32>,
    return
  }
  func.func @transform_0(%arg0: i32) -> (i32, i32, i32) {
    %c0_i32 = arith.constant 0 : i32
    %c0_i32_0 = arith.constant 0 : i32
    %c0_i32_1 = arith.constant 0 : i32
    return %c0_i32, %arg0, %c0_i32_0 : i32, i32, i32
  }
  func.func @transform_1(%arg0: i32) -> (i32, i32) {
    %c0_i32 = arith.constant 0 : i32
    %c0_i32_0 = arith.constant 0 : i32
    return %arg0, %c0_i32 : i32, i32
  }
  func.func @transform_2(%arg0: i32) -> (i32, i32) {
    %c0_i32 = arith.constant 0 : i32
    %c0_i32_0 = arith.constant 0 : i32
    %c0_i32_1 = arith.constant 0 : i32
    return %c0_i32, %c0_i32_0 : i32, i32
  }
  func.func @transform_3(%arg0: i32) -> (i32, i32) {
    %c0_i32 = arith.constant 0 : i32
    %c0_i32_0 = arith.constant 0 : i32
    %c0_i32_1 = arith.constant 0 : i32
    return %c0_i32, %c0_i32_0 : i32, i32
  }
  func.func @transform_4(%arg0: i32) -> (i32, i32) {
    %c0_i32 = arith.constant 0 : i32
    %c0_i32_0 = arith.constant 0 : i32
    %c0_i32_1 = arith.constant 0 : i32
    return %c0_i32, %c0_i32_0 : i32, i32
  }
  func.func @transform_5(%arg0: i32) -> (i32, i32) {
    %c0_i32 = arith.constant 0 : i32
    %c0_i32_0 = arith.constant 0 : i32
    %c0_i32_1 = arith.constant 0 : i32
    return %c0_i32, %c0_i32_0 : i32, i32
  }
  func.func @transform_6(%arg0: i32) -> (i32, i32) {
    %c0_i32 = arith.constant 0 : i32
    %c0_i32_0 = arith.constant 0 : i32
    %c0_i32_1 = arith.constant 0 : i32
    return %c0_i32, %c0_i32_0 : i32, i32
  }
  func.func @transform_7(%arg0: i32) -> (i32, i32) {
    %c0_i32 = arith.constant 0 : i32
    %c0_i32_0 = arith.constant 0 : i32
    return %arg0, %c0_i32 : i32, i32
  }
  func.func @transform_8(%arg0: i32) -> (i32, i32) {
    %c0_i32 = arith.constant 0 : i32
    %c0_i32_0 = arith.constant 0 : i32
    return %arg0, %c0_i32 : i32, i32
  }
}

</mosaic_0001>

<llo_original>
// kernel: word_attention_forward.3
$region0: #{word_attention_forward.3}
  #allocation0 [shape = 'u32[]', space=smem, size = 0x4, offset = 0x4, fixed_abs, tag = 'smem constant byte address 0x4 - core index']
  #allocation1 [shape = 'u32[144,128]{1,0:T(1,128)}', space=vmem, size = 0x12000, scoped, tag = 'internal scratch']
  %s0 = inlined_call_operand.vmem [shape: f32[8,4,128], index: 0, kind: input, shape index: {}]
  %s1 = inlined_call_operand.vmem [shape: s32[4,1], index: 1, kind: input, shape index: {}]
  %s2 = inlined_call_operand.vmem [shape: f32[1,128], index: 2, kind: input, shape index: {}]
  %s3 = inlined_call_operand.vmem [shape: f32[1,128], index: 3, kind: input, shape index: {}]
  %s4 = inlined_call_operand.vmem [shape: bf16[128,128], index: 4, kind: input, shape index: {}]
  %s5 = inlined_call_operand.vmem [shape: f32[1,128], index: 5, kind: input, shape index: {}]
  %s6 = inlined_call_operand.vmem [shape: f32[1,128], index: 6, kind: input, shape index: {}]
  %s7 = inlined_call_operand.hbm [shape: f32[4,128], index: 7, kind: output, shape index: {0}]
  %s8 = inlined_call_operand.hbm [shape: f32[4,8], index: 8, kind: output, shape index: {1}]
  %9 = xla_tuple %s7, %s8
  %s10 = sld [smem:[#allocation0]]
  $region46: #{word_attention_forward.3} parent=0
    _
  %s12 = ssub.s32 1, %s10
  %s13 = scalar_select 0, %s12, %s10
  $region1: #{word_attention_forward.3} parent=0
    #allocation2 [shape = 'u8[2048]{0}', space=vmem, size = 0x800, scoped, tag = 'output window, operand 0, single buffered']
    #allocation3 [shape = 's32[1]{0}', space=sflag, size = 0x4, scoped, tag = 'scoped memory for word_attention_forward.3']
    #allocation4 [shape = 'u8[2048]{0}', space=vmem, size = 0x800, scoped, tag = 'output window, operand 1, single buffered']
    #allocation5 [shape = 's32[1]{0}', space=sflag, size = 0x4, scoped, tag = 'scoped memory for word_attention_forward.3']
    %14 = vsyncpa [#allocation3], 0
    %15 = vsyncpa [#allocation5], 0
    // Predicated region
    $region2: #{word_attention_forward.3} parent=1 // pred_check
      _
    $region3: #{word_attention_forward.3} parent=1 // pred_check_branch
      %17 = sbr.rel (0) target = $region5
    $region4: #{word_attention_forward.3} parent=1 // pred_region
      _
    $region5: #{word_attention_forward.3} parent=1 // pred_fallthru
      _
    // Predicated region
    $region6: #{word_attention_forward.3} parent=1 // pred_check
      _
    $region7: #{word_attention_forward.3} parent=1 // pred_check_branch
      %19 = sbr.rel (0) target = $region9
    $region8: #{word_attention_forward.3} parent=1 // pred_region
      _
    $region9: #{word_attention_forward.3} parent=1 // pred_fallthru
      _
    // Predicated region
    $region10: #{word_attention_forward.3} parent=1 // pred_check
      _
    $region11: #{word_attention_forward.3} parent=1 // pred_check_branch
      %21 = sbr.rel (0) target = $region13
    $region12: #{word_attention_forward.3} parent=1 // pred_region
      _
    $region13: #{word_attention_forward.3} parent=1 // pred_fallthru
      _
    // Predicated region
    $region14: #{word_attention_forward.3} parent=1 // pred_check
      _
    $region15: #{word_attention_forward.3} parent=1 // pred_check_branch
      %23 = sbr.rel (0) target = $region17
    $region16: #{word_attention_forward.3} parent=1 // pred_region
      _
    $region17: #{word_attention_forward.3} parent=1 // pred_fallthru
      _
    // Predicated region
    $region18: #{word_attention_forward.3} parent=1 // pred_check
      _
    $region19: #{word_attention_forward.3} parent=1 // pred_check_branch
      %25 = sbr.rel (0) target = $region21
    $region20: #{word_attention_forward.3} parent=1 // pred_region
      _
    $region21: #{word_attention_forward.3} parent=1 // pred_fallthru
      _
    // Predicated region
    $region22: #{word_attention_forward.3} parent=1 // pred_check
      _
    $region23: #{word_attention_forward.3} parent=1 // pred_check_branch
      %27 = sbr.rel (0) target = $region25
    $region24: #{word_attention_forward.3} parent=1 // pred_region
      _
    $region25: #{word_attention_forward.3} parent=1 // pred_fallthru
      _
    // Predicated region
    $region26: #{word_attention_forward.3} parent=1 // pred_check
      _
    $region27: #{word_attention_forward.3} parent=1 // pred_check_branch
      %29 = sbr.rel (0) target = $region29
    $region28: #{word_attention_forward.3} parent=1 // pred_region
      _
    $region29: #{word_attention_forward.3} parent=1 // pred_fallthru
      _
    %v31 = vld [vmem:[%s0] sm:$0xf]
    %v32 = vld [vmem:[%s0 + $0x4] sm:$0xf]
    %v33 = vld [vmem:[%s0 + $0x8] sm:$0xf]
    %v34 = vld [vmem:[%s0 + $0xc] sm:$0xf]
    %v35 = vld [vmem:[%s0 + $0x10] sm:$0xf]
    %v36 = vld [vmem:[%s0 + $0x14] sm:$0xf]
    %v37 = vld [vmem:[%s0 + $0x18] sm:$0xf]
    %v38 = vld [vmem:[%s0 + $0x1c] sm:$0xf]
    %vm39 = vcmask 1043456
    %v40 = vsel %vm39, %v31, 0.0
    %41 = vadd.xlane.f32.xlu0 %v40
    %v42 = vpop.xlane.xlu0 %41
    %v43 = vsel %vm39, %v32, 0.0
    %44 = vadd.xlane.f32.xlu0 %v43
    %v45 = vpop.xlane.xlu0 %44
    %v46 = vsel %vm39, %v33, 0.0
    %47 = vadd.xlane.f32.xlu0 %v46
    %v48 = vpop.xlane.xlu0 %47
    %v49 = vsel %vm39, %v34, 0.0
    %50 = vadd.xlane.f32.xlu0 %v49
    %v51 = vpop.xlane.xlu0 %50
    %v52 = vsel %vm39, %v35, 0.0
    %53 = vadd.xlane.f32.xlu0 %v52
    %v54 = vpop.xlane.xlu0 %53
    %v55 = vsel %vm39, %v36, 0.0
    %56 = vadd.xlane.f32.xlu0 %v55
    %v57 = vpop.xlane.xlu0 %56
    %v58 = vsel %vm39, %v37, 0.0
    %59 = vadd.xlane.f32.xlu0 %v58
    %v60 = vpop.xlane.xlu0 %59
    %v61 = vsel %vm39, %v38, 0.0
    %62 = vadd.xlane.f32.xlu0 %v61
    %v63 = vpop.xlane.xlu0 %62
    %v64 = vrcp.pop 128.0
    %v65 = vmul.f32 %v42, %v64
    %v66 = vmul.f32 %v45, %v64
    %v67 = vmul.f32 %v48, %v64
    %v68 = vmul.f32 %v51, %v64
    %v69 = vmul.f32 %v54, %v64
    %v70 = vmul.f32 %v57, %v64
    %v71 = vmul.f32 %v60, %v64
    %v72 = vmul.f32 %v63, %v64
    %v73 = vsub.f32 %v31, %v65
    %v74 = vsub.f32 %v32, %v66
    %v75 = vsub.f32 %v33, %v67
    %v76 = vsub.f32 %v34, %v68
    %v77 = vsub.f32 %v35, %v69
    %v78 = vsub.f32 %v36, %v70
    %v79 = vsub.f32 %v37, %v71
    %v80 = vsub.f32 %v38, %v72
    %v81 = vmul.f32 %v73, %v73
    %v82 = vmul.f32 %v74, %v74
    %v83 = vmul.f32 %v75, %v75
    %v84 = vmul.f32 %v76, %v76
    %v85 = vmul.f32 %v77, %v77
    %v86 = vmul.f32 %v78, %v78
    %v87 = vmul.f32 %v79, %v79
    %v88 = vmul.f32 %v80, %v80
    %v89 = vsel %vm39, %v81, 0.0
    %90 = vadd.xlane.f32.xlu0 %v89
    %v91 = vpop.xlane.xlu0 %90
    %v92 = vsel %vm39, %v82, 0.0
    %93 = vadd.xlane.f32.xlu0 %v92
    %v94 = vpop.xlane.xlu0 %93
    %v95 = vsel %vm39, %v83, 0.0
    %96 = vadd.xlane.f32.xlu0 %v95
    %v97 = vpop.xlane.xlu0 %96
    %v98 = vsel %vm39, %v84, 0.0
    %99 = vadd.xlane.f32.xlu0 %v98
    %v100 = vpop.xlane.xlu0 %99
    %v101 = vsel %vm39, %v85, 0.0
    %102 = vadd.xlane.f32.xlu0 %v101
    %v103 = vpop.xlane.xlu0 %102
    %v104 = vsel %vm39, %v86, 0.0
    %105 = vadd.xlane.f32.xlu0 %v104
    %v106 = vpop.xlane.xlu0 %105
    %v107 = vsel %vm39, %v87, 0.0
    %108 = vadd.xlane.f32.xlu0 %v107
    %v109 = vpop.xlane.xlu0 %108
    %v110 = vsel %vm39, %v88, 0.0
    %111 = vadd.xlane.f32.xlu0 %v110
    %v112 = vpop.xlane.xlu0 %111
    %v113 = vmul.f32 %v91, %v64
    %v114 = vmul.f32 %v94, %v64
    %v115 = vmul.f32 %v97, %v64
    %v116 = vmul.f32 %v100, %v64
    %v117 = vmul.f32 %v103, %v64
    %v118 = vmul.f32 %v106, %v64
    %v119 = vmul.f32 %v109, %v64
    %v120 = vmul.f32 %v112, %v64
    %v121 = vadd.f32 %v113, 1e-05
    %v122 = vadd.f32 %v114, 1e-05
    %v123 = vadd.f32 %v115, 1e-05
    %v124 = vadd.f32 %v116, 1e-05
    %v125 = vadd.f32 %v117, 1e-05
    %v126 = vadd.f32 %v118, 1e-05
    %v127 = vadd.f32 %v119, 1e-05
    %v128 = vadd.f32 %v120, 1e-05
    %v129 = vrsqrt.pop %v121
    %v130 = vrsqrt.pop %v122
    %v131 = vrsqrt.pop %v123
    %v132 = vrsqrt.pop %v124
    %v133 = vrsqrt.pop %v125
    %v134 = vrsqrt.pop %v126
    %v135 = vrsqrt.pop %v127
    %v136 = vrsqrt.pop %v128
    %v137 = vmul.f32 %v73, %v129
    %v138 = vmul.f32 %v74, %v130
    %v139 = vmul.f32 %v75, %v131
    %v140 = vmul.f32 %v76, %v132
    %v141 = vmul.f32 %v77, %v133
    %v142 = vmul.f32 %v78, %v134
    %v143 = vmul.f32 %v79, %v135
    %v144 = vmul.f32 %v80, %v136
    %v145 = vld [vmem:[%s2] sm:$0x1]
    %v147 = vlaneseq
    %v148 = vshrl.u32 %v147, 7
    %v149 = vsub.s32 0, %v148
    %v150 = vrot.slane %v145, %v149
    %v152 = vmul.f32 %v137, %v150
    %v153 = vmul.f32 %v138, %v150
    %v154 = vmul.f32 %v139, %v150
    %v155 = vmul.f32 %v140, %v150
    %v156 = vmul.f32 %v141, %v150
    %v157 = vmul.f32 %v142, %v150
    %v158 = vmul.f32 %v143, %v150
    %v159 = vmul.f32 %v144, %v150
    %v160 = vld [vmem:[%s3] sm:$0x1]
    %v162 = vlaneseq
    %v163 = vshrl.u32 %v162, 7
    %v164 = vsub.s32 0, %v163
    %v165 = vrot.slane %v160, %v164
    %v167 = vadd.f32 %v152, %v165
    %v168 = vadd.f32 %v153, %v165
    %v169 = vadd.f32 %v154, %v165
    %v170 = vadd.f32 %v155, %v165
    %v171 = vadd.f32 %v156, %v165
    %v172 = vadd.f32 %v157, %v165
    %v173 = vadd.f32 %v158, %v165
    %v174 = vadd.f32 %v159, %v165
    %v183 = vcombine.low %v167, %v168
    %v184 = vcombine.low %v169, %v170
    %v185 = vcombine.low %v171, %v172
    %v186 = vcombine.low %v173, %v174
    %v191 = vpack.c.bf16 %v184, %v183
    %v192 = vpack.c.bf16 %v186, %v185
    %v193 = vld [vmem:[%s4] sm:$0xf]
    %v194 = vld [vmem:[%s4 + $0x4] sm:$0xf]
    %v195 = vld [vmem:[%s4 + $0x8] sm:$0xf]
    %v196 = vld [vmem:[%s4 + $0xc] sm:$0xf]
    %v197 = vld [vmem:[%s4 + $0x10] sm:$0xf]
    %v198 = vld [vmem:[%s4 + $0x14] sm:$0xf]
    %v199 = vld [vmem:[%s4 + $0x18] sm:$0xf]
    %v200 = vld [vmem:[%s4 + $0x1c] sm:$0xf]
    %v201 = vld [vmem:[%s4 + $0x20] sm:$0xf]
    %v202 = vld [vmem:[%s4 + $0x24] sm:$0xf]
    %v203 = vld [vmem:[%s4 + $0x28] sm:$0xf]
    %v204 = vld [vmem:[%s4 + $0x2c] sm:$0xf]
    %v205 = vld [vmem:[%s4 + $0x30] sm:$0xf]
    %v206 = vld [vmem:[%s4 + $0x34] sm:$0xf]
    %v207 = vld [vmem:[%s4 + $0x38] sm:$0xf]
    %v208 = vld [vmem:[%s4 + $0x3c] sm:$0xf]
    %v209 = vld [vmem:[%s5] sm:$0x1]
    %v211 = vlaneseq
    %v212 = vshrl.u32 %v211, 7
    %v213 = vsub.s32 0, %v212
    %v214 = vrot.slane %v209, %v213
    %v232 = vunpack.c.l.b16 %v193
    %v233 = vunpack.c.l.b16 %v194
    %v234 = vunpack.c.l.b16 %v195
    %v235 = vunpack.c.l.b16 %v196
    %v236 = vunpack.c.l.b16 %v197
    %v237 = vunpack.c.l.b16 %v198
    %v238 = vunpack.c.l.b16 %v199
    %v239 = vunpack.c.l.b16 %v200
    %v240 = vunpack.c.l.b16 %v201
    %v241 = vunpack.c.l.b16 %v202
    %v242 = vunpack.c.l.b16 %v203
    %v243 = vunpack.c.l.b16 %v204
    %v244 = vunpack.c.l.b16 %v205
    %v245 = vunpack.c.l.b16 %v206
    %v246 = vunpack.c.l.b16 %v207
    %v247 = vunpack.c.l.b16 %v208
    %v248 = vpack.c.b16 %v233, %v232
    %v249 = vpack.c.b16 %v235, %v234
    %v250 = vpack.c.b16 %v237, %v236
    %v251 = vpack.c.b16 %v239, %v238
    %v252 = vpack.c.b16 %v241, %v240
    %v253 = vpack.c.b16 %v243, %v242
    %v254 = vpack.c.b16 %v245, %v244
    %v255 = vpack.c.b16 %v247, %v246
    %264 = vmatprep.subr.bf16.mxu0 0
    %265 = vmatpush1.bf16.msra.mxu0 %v248
    %266 = vmatprep.subr.bf16.mxu0 0
    %267 = vmatpush1.bf16.msra.mxu0 %v249
    %268 = vmatprep.subr.bf16.mxu0 0
    %269 = vmatpush1.bf16.msra.mxu0 %v250
    %270 = vmatprep.subr.bf16.mxu0 0
    %271 = vmatpush1.bf16.msra.mxu0 %v251
    %272 = vmatprep.subr.bf16.mxu0 0
    %273 = vmatpush1.bf16.msra.mxu0 %v252
    %274 = vmatprep.subr.bf16.mxu0 0
    %275 = vmatpush1.bf16.msra.mxu0 %v253
    %276 = vmatprep.subr.bf16.mxu0 0
    %277 = vmatpush1.bf16.msra.mxu0 %v254
    %278 = vmatprep.subr.bf16.mxu0 0
    %279 = vmatpush1.bf16.msra.mxu0 %v255
    %280 = vmatprep.subr.bf16.mxu0 0
    %281 = vmatpush1.bf16.msra.mxu0 0
    %282 = vmatprep.subr.bf16.mxu0 0
    %283 = vmatpush1.bf16.msra.mxu0 0
    %284 = vmatprep.subr.bf16.mxu0 0
    %285 = vmatpush1.bf16.msra.mxu0 0
    %286 = vmatprep.subr.bf16.mxu0 0
    %287 = vmatpush1.bf16.msra.mxu0 0
    %288 = vmatprep.subr.bf16.mxu0 0
    %289 = vmatpush1.bf16.msra.mxu0 0
    %290 = vmatprep.subr.bf16.mxu0 0
    %291 = vmatpush1.bf16.msra.mxu0 0
    %292 = vmatprep.subr.bf16.mxu0 0
    %293 = vmatpush1.bf16.msra.mxu0 0
    %294 = vmatprep.subr.bf16.mxu0 0
    %295 = vmatpush1.bf16.msra.mxu0 0
    %296 = vmatprep.mubr.bf16.mxu0 0
    %297 = vmatmul.mubr.bf16.gmra.mrb[0].mxu0 %v191
    %v298 = vpop.f32.mrb[0].mxu0
    %v299 = vadd.f32 %v214, %v298
    %v300 = vpop.f32.mrb[0].mxu0
    %v301 = vpop.f32.mrb[0].mxu0
    %v302 = vadd.f32 %v214, %v301
    %v303 = vpop.f32.mrb[0].mxu0
    %304 = vmatprep.mubr.bf16.mxu0 0
    %305 = vmatmul.mubr.bf16.gmra.mrb[0].mxu0 %v192
    %v306 = vpop.f32.mrb[0].mxu0
    %v307 = vadd.f32 %v214, %v306
    %v308 = vpop.f32.mrb[0].mxu0
    %v309 = vpop.f32.mrb[0].mxu0
    %v310 = vadd.f32 %v214, %v309
    %v311 = vpop.f32.mrb[0].mxu0
    %312 = vdwg.mxu0
    %v313 = vtanh.pop %v299
    %v314 = vtanh.pop %v302
    %v315 = vtanh.pop %v307
    %v316 = vtanh.pop %v310
    %v317 = vld [vmem:[%s6] sm:$0x1]
    %v319 = vlaneseq
    %v320 = vshrl.u32 %v319, 7
    %v321 = vsub.s32 0, %v320
    %v322 = vrot.slane %v317, %v321
    %v324 = vmul.f32 %v313, %v322
    %v325 = vmul.f32 %v314, %v322
    %v326 = vmul.f32 %v315, %v322
    %v327 = vmul.f32 %v316, %v322
    %328 = vadd.xlane.f32.xlu0 %v324
    %v329 = vpop.xlane.xlu0 %328
    %330 = vadd.xlane.f32.xlu0 %v325
    %v331 = vpop.xlane.xlu0 %330
    %332 = vadd.xlane.f32.xlu0 %v326
    %v333 = vpop.xlane.xlu0 %332
    %334 = vadd.xlane.f32.xlu0 %v327
    %v335 = vpop.xlane.xlu0 %334
    %v341 = vunpack.c.l.s4 839922192
    %v342 = vunpack.c.0.s8 %v341
    %v343 = vlaneseq
    %v344 = vshrl.u32 %v343, 7
    %v345 = vsub.s32 %v342, %v344
    %v346 = vrot.slane %v329, %v345
    %v348 = vunpack.c.l.s4 1985246804
    %v349 = vunpack.c.0.s8 %v348
    %v350 = vlaneseq
    %v351 = vshrl.u32 %v350, 7
    %v352 = vsub.s32 %v349, %v351
    %v353 = vrot.slane %v329, %v352
    %v355 = vunpack.c.l.s4 839922192
    %v356 = vunpack.c.0.s8 %v355
    %v357 = vlaneseq
    %v358 = vshrl.u32 %v357, 7
    %v359 = vsub.s32 %v356, %v358
    %v360 = vrot.slane %v331, %v359
    %v362 = vunpack.c.l.s4 1985246804
    %v363 = vunpack.c.0.s8 %v362
    %v364 = vlaneseq
    %v365 = vshrl.u32 %v364, 7
    %v366 = vsub.s32 %v363, %v365
    %v367 = vrot.slane %v331, %v366
    %v369 = vunpack.c.l.s4 839922192
    %v370 = vunpack.c.0.s8 %v369
    %v371 = vlaneseq
    %v372 = vshrl.u32 %v371, 7
    %v373 = vsub.s32 %v370, %v372
    %v374 = vrot.slane %v333, %v373
    %v376 = vunpack.c.l.s4 1985246804
    %v377 = vunpack.c.0.s8 %v376
    %v378 = vlaneseq
    %v379 = vshrl.u32 %v378, 7
    %v380 = vsub.s32 %v377, %v379
    %v381 = vrot.slane %v333, %v380
    %v383 = vunpack.c.l.s4 839922192
    %v384 = vunpack.c.0.s8 %v383
    %v385 = vlaneseq
    %v386 = vshrl.u32 %v385, 7
    %v387 = vsub.s32 %v384, %v386
    %v388 = vrot.slane %v335, %v387
    %v390 = vunpack.c.l.s4 1985246804
    %v391 = vunpack.c.0.s8 %v390
    %v392 = vlaneseq
    %v393 = vshrl.u32 %v392, 7
    %v394 = vsub.s32 %v391, %v393
    %v395 = vrot.slane %v335, %v394
    %v404 = vld [vmem:[%s1] sm:$0xf]
    %vm405 = vcmp.gt.s32.totalorder %v404, 0
    %vm406 = vcmp.gt.s32.totalorder %v404, 1
    %vm407 = vcmp.gt.s32.totalorder %v404, 2
    %vm408 = vcmp.gt.s32.totalorder %v404, 3
    %vm409 = vcmp.gt.s32.totalorder %v404, 4
    %vm410 = vcmp.gt.s32.totalorder %v404, 5
    %vm411 = vcmp.gt.s32.totalorder %v404, 6
    %vm412 = vcmp.gt.s32.totalorder %v404, 7
    %v413 = vsel %vm405, %v346, -1e+30
    %v414 = vsel %vm406, %v353, -1e+30
    %v415 = vsel %vm407, %v360, -1e+30
    %v416 = vsel %vm408, %v367, -1e+30
    %v417 = vsel %vm409, %v374, -1e+30
    %v418 = vsel %vm410, %v381, -1e+30
    %v419 = vsel %vm411, %v388, -1e+30
    %v420 = vsel %vm412, %v395, -1e+30
    %vm421 = vcmask 3072
    %v422 = vsel %vm421, %v413, -inf
    %v423 = vsel %vm421, %v414, -inf
    %v424 = vsel %vm421, %v415, -inf
    %v425 = vsel %vm421, %v416, -inf
    %v426 = vsel %vm421, %v417, -inf
    %v427 = vmax.f32 %v422, %v426
    %v428 = vsel %vm421, %v418, -inf
    %v429 = vmax.f32 %v423, %v428
    %v430 = vsel %vm421, %v419, -inf
    %v431 = vmax.f32 %v424, %v430
    %v432 = vsel %vm421, %v420, -inf
    %v433 = vmax.f32 %v425, %v432
    %v434 = vmax.f32 %v427, %v429
    %v435 = vmax.f32 %v431, %v433
    %v436 = vmax.f32 %v434, %v435
    %437 = vmax.xlane.f32.xlu0 %v436
    %v438 = vpop.xlane.xlu0 %437
    %v439 = vrot.slane %v438, 4
    %v440 = vmax.f32 %v438, %v439
    %v441 = vrot.slane %v440, 2
    %v442 = vmax.f32 %v440, %v441
    %v443 = vrot.slane %v442, 1
    %v444 = vmax.f32 %v442, %v443
    %s445 = vtos %v444
    %v446 = vstv %s445
    %v447 = vsub.f32 %v413, %v446
    %v448 = vsub.f32 %v414, %v446
    %v449 = vsub.f32 %v415, %v446
    %v450 = vsub.f32 %v416, %v446
    %v451 = vsub.f32 %v417, %v446
    %v452 = vsub.f32 %v418, %v446
    %v453 = vsub.f32 %v419, %v446
    %v454 = vsub.f32 %v420, %v446
    %v455 = vmul.f32 %v447, 1.442695
    %v456 = vpow.pop %v455
    %v457 = vmul.f32 %v448, 1.442695
    %v458 = vpow.pop %v457
    %v459 = vmul.f32 %v449, 1.442695
    %v460 = vpow.pop %v459
    %v461 = vmul.f32 %v450, 1.442695
    %v462 = vpow.pop %v461
    %v463 = vmul.f32 %v451, 1.442695
    %v464 = vpow.pop %v463
    %v465 = vmul.f32 %v452, 1.442695
    %v466 = vpow.pop %v465
    %v467 = vmul.f32 %v453, 1.442695
    %v468 = vpow.pop %v467
    %v469 = vmul.f32 %v454, 1.442695
    %v470 = vpow.pop %v469
    %v471 = vsel %vm405, %v456, 0.0
    %v472 = vsel %vm406, %v458, 0.0
    %v473 = vsel %vm407, %v460, 0.0
    %v474 = vsel %vm408, %v462, 0.0
    %v475 = vsel %vm409, %v464, 0.0
    %v476 = vsel %vm410, %v466, 0.0
    %v477 = vsel %vm411, %v468, 0.0
    %v478 = vsel %vm412, %v470, 0.0
    %v479 = vsel %vm421, %v471, 0.0
    %v480 = vsel %vm421, %v472, 0.0
    %v481 = vadd.f32 %v479, %v480
    %v482 = vsel %vm421, %v473, 0.0
    %v483 = vadd.f32 %v481, %v482
    %v484 = vsel %vm421, %v474, 0.0
    %v485 = vadd.f32 %v483, %v484
    %v486 = vsel %vm421, %v475, 0.0
    %v487 = vadd.f32 %v485, %v486
    %v488 = vsel %vm421, %v476, 0.0
    %v489 = vadd.f32 %v487, %v488
    %v490 = vsel %vm421, %v477, 0.0
    %v491 = vadd.f32 %v489, %v490
    %v492 = vsel %vm421, %v478, 0.0
    %v493 = vadd.f32 %v491, %v492
    %v494 = vmax.f32 %v493, 1e-30
    %v495 = vrcp.pop %v494
    %v496 = vmul.f32 %v471, %v495
    %v497 = vmul.f32 %v472, %v495
    %v498 = vmul.f32 %v473, %v495
    %v499 = vmul.f32 %v474, %v495
    %v500 = vmul.f32 %v475, %v495
    %v501 = vmul.f32 %v476, %v495
    %v502 = vmul.f32 %v477, %v495
    %v503 = vmul.f32 %v478, %v495
    %505 = vset.pattern.permute.xlu0 0
    %506 = vperm.xlu0 %505, %v496
    %v507 = vpop.permute.xlu0 %506
    %510 = vset.pattern.permute.xlu0 0
    %511 = vperm.xlu0 %510, %v497
    %v512 = vpop.permute.xlu0 %511
    %515 = vset.pattern.permute.xlu0 0
    %516 = vperm.xlu0 %515, %v498
    %v517 = vpop.permute.xlu0 %516
    %520 = vset.pattern.permute.xlu0 0
    %521 = vperm.xlu0 %520, %v499
    %v522 = vpop.permute.xlu0 %521
    %525 = vset.pattern.permute.xlu0 0
    %526 = vperm.xlu0 %525, %v500
    %v527 = vpop.permute.xlu0 %526
    %530 = vset.pattern.permute.xlu0 0
    %531 = vperm.xlu0 %530, %v501
    %v532 = vpop.permute.xlu0 %531
    %535 = vset.pattern.permute.xlu0 0
    %536 = vperm.xlu0 %535, %v502
    %v537 = vpop.permute.xlu0 %536
    %540 = vset.pattern.permute.xlu0 0
    %541 = vperm.xlu0 %540, %v503
    %v542 = vpop.permute.xlu0 %541
    %v544 = vmul.f32 %v507, %v31
    %v545 = vmul.f32 %v512, %v32
    %v546 = vmul.f32 %v517, %v33
    %v547 = vmul.f32 %v522, %v34
    %v548 = vmul.f32 %v527, %v35
    %v549 = vmul.f32 %v532, %v36
    %v550 = vmul.f32 %v537, %v37
    %v551 = vmul.f32 %v542, %v38
    %v552 = vsel %vm39, %v544, 0.0
    %v553 = vsel %vm39, %v545, 0.0
    %v554 = vadd.f32 %v552, %v553
    %v555 = vsel %vm39, %v546, 0.0
    %v556 = vadd.f32 %v554, %v555
    %v557 = vsel %vm39, %v547, 0.0
    %v558 = vadd.f32 %v556, %v557
    %v559 = vsel %vm39, %v548, 0.0
    %v560 = vadd.f32 %v558, %v559
    %v561 = vsel %vm39, %v549, 0.0
    %v562 = vadd.f32 %v560, %v561
    %v563 = vsel %vm39, %v550, 0.0
    %v564 = vadd.f32 %v562, %v563
    %v565 = vsel %vm39, %v551, 0.0
    %v566 = vadd.f32 %v564, %v565
    %567 = vst [vmem:[#allocation2] sm:$0xf] %v566
    %v568 = vlaneseq
    %v569 = vand.u32 %v568, 127
    %v570 = vlaneseq
    %v571 = vshrl.u32 %v570, 7
    %v572 = vsub.s32 %v569, %v571
    %v573 = vrot.slane %v507, %v572
    %v574 = vlaneseq
    %v575 = vshrl.u32 %v574, 7
    %v576 = vsub.s32 %v569, %v575
    %v577 = vrot.slane %v512, %v576
    %v578 = vlaneseq
    %v579 = vshrl.u32 %v578, 7
    %v580 = vsub.s32 %v569, %v579
    %v581 = vrot.slane %v517, %v580
    %v582 = vlaneseq
    %v583 = vshrl.u32 %v582, 7
    %v584 = vsub.s32 %v569, %v583
    %v585 = vrot.slane %v522, %v584
    %v586 = vlaneseq
    %v587 = vshrl.u32 %v586, 7
    %v588 = vsub.s32 %v569, %v587
    %v589 = vrot.slane %v527, %v588
    %v590 = vlaneseq
    %v591 = vshrl.u32 %v590, 7
    %v592 = vsub.s32 %v569, %v591
    %v593 = vrot.slane %v532, %v592
    %v594 = vlaneseq
    %v595 = vshrl.u32 %v594, 7
    %v596 = vsub.s32 %v569, %v595
    %v597 = vrot.slane %v537, %v596
    %v598 = vlaneseq
    %v599 = vshrl.u32 %v598, 7
    %v600 = vsub.s32 %v569, %v599
    %v601 = vrot.slane %v542, %v600
    %vm602 = vcmask 1041409
    %v603 = vsel %vm602, %v577, %v573
    %vm604 = vcmask 1042434
    %v605 = vsel %vm604, %v581, %v603
    %vm606 = vcmask 1043459
    %v607 = vsel %vm606, %v585, %v605
    %vm608 = vcmask 1044484
    %v609 = vsel %vm608, %v589, %v607
    %vm610 = vcmask 1045509
    %v611 = vsel %vm610, %v593, %v609
    %vm612 = vcmask 1046534
    %v613 = vsel %vm612, %v597, %v611
    %vm614 = vcmask 1047559
    %v615 = vsel %vm614, %v601, %v613
    %617 = vxpose.xlu0.b32.start [1/16] %v615, 128
    %618 = vxpose.xlu0.b32.cont [2/16] 0.0, 128
    %619 = vxpose.xlu0.b32.cont [3/16] 0.0, 128
    %620 = vxpose.xlu0.b32.cont [4/16] 0.0, 128
    %621 = vxpose.xlu0.b32.cont [5/16] 0.0, 128
    %622 = vxpose.xlu0.b32.cont [6/16] 0.0, 128
    %623 = vxpose.xlu0.b32.cont [7/16] 0.0, 128
    %624 = vxpose.xlu0.b32.cont [8/16] 0.0, 128
    %625 = vxpose.xlu0.b32.cont [9/16] 0.0, 128
    %626 = vxpose.xlu0.b32.cont [10/16] 0.0, 128
    %627 = vxpose.xlu0.b32.cont [11/16] 0.0, 128
    %628 = vxpose.xlu0.b32.cont [12/16] 0.0, 128
    %629 = vxpose.xlu0.b32.cont [13/16] 0.0, 128
    %630 = vxpose.xlu0.b32.cont [14/16] 0.0, 128
    %631 = vxpose.xlu0.b32.cont [15/16] 0.0, 128
    %632 = vxpose.xlu0.b32.end [16/16] 0.0, 128
    %v633 = vpop.trf.xlu0
    %v634 = vpop.trf.xlu0
    %v635 = vpop.trf.xlu0
    %v636 = vpop.trf.xlu0
    %v637 = vpop.trf.xlu0
    %v638 = vpop.trf.xlu0
    %v639 = vpop.trf.xlu0
    %v640 = vpop.trf.xlu0
    %v641 = vpop.trf.xlu0
    %v642 = vpop.trf.xlu0
    %v643 = vpop.trf.xlu0
    %v644 = vpop.trf.xlu0
    %v645 = vpop.trf.xlu0
    %v646 = vpop.trf.xlu0
    %v647 = vpop.trf.xlu0
    %v648 = vpop.trf.xlu0
    %vm649 = vcmask 60416
    %650 = vst.msk [vmem:[#allocation4] sm:$0xf] %vm649, %v633
    // Predicated region
    $region30: #{word_attention_forward.3} parent=1 // pred_check
      _
    $region31: #{word_attention_forward.3} parent=1 // pred_check_branch
      %652 = sbr.rel (0) target = $region33
    $region32: #{word_attention_forward.3} parent=1 // pred_region
      %s654 = ssub.s32 64, 64
      %655 = vsyncadd [#allocation3], %s654
      %s657 = sshll.u32 [#allocation2], 4
      %s658 = int_to_ptr.vmem [resolvable:$true] %s657
      %660 = dma.vmem_to_hbm [thread:$0]  %s658, 64, %s7, [#allocation3]
    $region33: #{word_attention_forward.3} parent=1 // pred_fallthru
      _
    // Predicated region
    $region34: #{word_attention_forward.3} parent=1 // pred_check
      _
    $region35: #{word_attention_forward.3} parent=1 // pred_check_branch
      %662 = sbr.rel (0) target = $region37
    $region36: #{word_attention_forward.3} parent=1 // pred_region
      %s664 = ssub.s32 64, 64
      %665 = vsyncadd [#allocation5], %s664
      %s667 = sshll.u32 [#allocation4], 4
      %s668 = int_to_ptr.vmem [resolvable:$true] %s667
      %670 = dma.vmem_to_hbm [thread:$0]  %s668, 64, %s8, [#allocation5]
    $region37: #{word_attention_forward.3} parent=1 // pred_fallthru
      _
    // Predicated region
    $region38: #{word_attention_forward.3} parent=1 // pred_check
      _
    $region39: #{word_attention_forward.3} parent=1 // pred_check_branch
      %672 = sbr.rel (0) target = $region41
    $region40: #{word_attention_forward.3} parent=1 // pred_region
      %673 = dma.done [#allocation3], 64
    $region41: #{word_attention_forward.3} parent=1 // pred_fallthru
      _
    // Predicated region
    $region42: #{word_attention_forward.3} parent=1 // pred_check
      _
    $region43: #{word_attention_forward.3} parent=1 // pred_check_branch
      %675 = sbr.rel (0) target = $region45
    $region44: #{word_attention_forward.3} parent=1 // pred_region
      %676 = dma.done [#allocation5], 64
    $region45: #{word_attention_forward.3} parent=1 // pred_fallthru
      _
    %677 = vsyncpa [#allocation3], 1
    %678 = vsyncpa [#allocation5], 1

// kernel: word_attention_forward.2
$region0: #{word_attention_forward.2}
  #allocation0 [shape = 'u32[]', space=smem, size = 0x4, offset = 0x4, fixed_abs, tag = 'smem constant byte address 0x4 - core index']
  #allocation1 [shape = 'u32[144,128]{1,0:T(1,128)}', space=vmem, size = 0x12000, scoped, tag = 'internal scratch']
  #allocation2 [shape = 'f32[8,4,192]{2,1,0:T(4,128)}', space=vmem, size = 0x8000, scoped, tag = 'scratch operand']
  #allocation3 [shape = 'f32[8,4,192]{2,1,0:T(4,128)}', space=vmem, size = 0x8000, scoped, tag = 'scratch operand']
  #allocation4 [shape = 'f32[8,4,64]{2,1,0:T(4,128)}', space=vmem, size = 0x4000, scoped, tag = 'scratch operand']
  #allocation5 [shape = 'f32[8,4,64]{2,1,0:T(4,128)}', space=vmem, size = 0x4000, scoped, tag = 'scratch operand']
  %s0 = inlined_call_operand.vmem [shape: f32[4,8,32], index: 0, kind: input, shape index: {}]
  %s1 = inlined_call_operand.vmem [shape: s32[4,1], index: 1, kind: input, shape index: {}]
  %s2 = inlined_call_operand.vmem [shape: bf16[32,384], index: 2, kind: input, shape index: {}]
  %s3 = inlined_call_operand.vmem [shape: f32[1,384], index: 3, kind: input, shape index: {}]
  %s4 = inlined_call_operand.vmem [shape: bf16[64,192], index: 4, kind: input, shape index: {}]
  %s5 = inlined_call_operand.vmem [shape: f32[1,64], index: 5, kind: input, shape index: {}]
  %s6 = inlined_call_operand.vmem [shape: bf16[64,192], index: 6, kind: input, shape index: {}]
  %s7 = inlined_call_operand.vmem [shape: f32[1,64], index: 7, kind: input, shape index: {}]
  %s8 = inlined_call_operand.vmem [shape: f32[8,4,128], index: 8, kind: output, shape index: {}]
  %s9 = sld [smem:[#allocation0]]
  $region42: #{word_attention_forward.2} parent=0
    _
  %s11 = ssub.s32 1, %s9
  %s12 = scalar_select 0, %s11, %s9
  // Predicated region
  $region2: #{word_attention_forward.2} parent=0 // pred_check
    _
  $region3: #{word_attention_forward.2} parent=0 // pred_check_branch
    %14 = sbr.rel (0) target = $region5
  $region4: #{word_attention_forward.2} parent=0 // pred_region
    _
  $region5: #{word_attention_forward.2} parent=0 // pred_fallthru
    _
  // Predicated region
  $region6: #{word_attention_forward.2} parent=0 // pred_check
    _
  $region7: #{word_attention_forward.2} parent=0 // pred_check_branch
    %16 = sbr.rel (0) target = $region9
  $region8: #{word_attention_forward.2} parent=0 // pred_region
    _
  $region9: #{word_attention_forward.2} parent=0 // pred_fallthru
    _
  // Predicated region
  $region10: #{word_attention_forward.2} parent=0 // pred_check
    _
  $region11: #{word_attention_forward.2} parent=0 // pred_check_branch
    %18 = sbr.rel (0) target = $region13
  $region12: #{word_attention_forward.2} parent=0 // pred_region
    _
  $region13: #{word_attention_forward.2} parent=0 // pred_fallthru
    _
  // Predicated region
  $region14: #{word_attention_forward.2} parent=0 // pred_check
    _
  $region15: #{word_attention_forward.2} parent=0 // pred_check_branch
    %20 = sbr.rel (0) target = $region17
  $region16: #{word_attention_forward.2} parent=0 // pred_region
    _
  $region17: #{word_attention_forward.2} parent=0 // pred_fallthru
    _
  // Predicated region
  $region18: #{word_attention_forward.2} parent=0 // pred_check
    _
  $region19: #{word_attention_forward.2} parent=0 // pred_check_branch
    %22 = sbr.rel (0) target = $region21
  $region20: #{word_attention_forward.2} parent=0 // pred_region
    _
  $region21: #{word_attention_forward.2} parent=0 // pred_fallthru
    _
  // Predicated region
  $region22: #{word_attention_forward.2} parent=0 // pred_check
    _
  $region23: #{word_attention_forward.2} parent=0 // pred_check_branch
    %24 = sbr.rel (0) target = $region25
  $region24: #{word_attention_forward.2} parent=0 // pred_region
    _
  $region25: #{word_attention_forward.2} parent=0 // pred_fallthru
    _
  // Predicated region
  $region26: #{word_attention_forward.2} parent=0 // pred_check
    _
  $region27: #{word_attention_forward.2} parent=0 // pred_check_branch
    %26 = sbr.rel (0) target = $region29
  $region28: #{word_attention_forward.2} parent=0 // pred_region
    _
  $region29: #{word_attention_forward.2} parent=0 // pred_fallthru
    _
  // Predicated region
  $region30: #{word_attention_forward.2} parent=0 // pred_check
    _
  $region31: #{word_attention_forward.2} parent=0 // pred_check_branch
    %28 = sbr.rel (0) target = $region33
  $region32: #{word_attention_forward.2} parent=0 // pred_region
    _
  $region33: #{word_attention_forward.2} parent=0 // pred_fallthru
    _
  %v30 = vld [vmem:[%s1] sm:$0xf]
  %v31 = vld [vmem:[%s0] sm:$0xff]
  %v32 = vld [vmem:[%s0 + $0x8] sm:$0xff]
  %v33 = vld [vmem:[%s0 + $0x10] sm:$0xff]
  %v34 = vld [vmem:[%s0 + $0x18] sm:$0xff]
  %v35 = vpack.c.bf16 %v31, %v31
  %v36 = vpack.c.bf16 %v32, %v32
  %v37 = vpack.c.bf16 %v33, %v33
  %v38 = vpack.c.bf16 %v34, %v34
  %v43 = vunpack.c.l.b16 %v35
  %v44 = vunpack.c.l.b16 %v36
  %v45 = vunpack.c.l.b16 %v37
  %v46 = vunpack.c.l.b16 %v38
  %v47 = vrot.slane %v44, 7
  %vm48 = vcmask 1041409
  %v49 = vsel %vm48, %v47, %v43
  %v50 = vrot.slane %v45, 6
  %vm51 = vcmask 1042434
  %v52 = vsel %vm51, %v50, %v49
  %v53 = vrot.slane %v46, 5
  %vm54 = vcmask 1043459
  %v55 = vsel %vm54, %v53, %v52
  %v56 = vpack.c.b16 %v55, %v55
  %v57 = vrot.slane %v43, 5
  %v58 = vrot.slane %v44, 4
  %vm59 = vcmask 1045509
  %v60 = vsel %vm59, %v58, %v57
  %v61 = vrot.slane %v45, 3
  %vm62 = vcmask 1046534
  %v63 = vsel %vm62, %v61, %v60
  %v64 = vrot.slane %v46, 2
  %vm65 = vcmask 1047559
  %v66 = vsel %vm65, %v64, %v63
  %v67 = vpack.c.b16 %v66, %v66
  %v68 = vrot.slane %v43, 2
  %v69 = vrot.slane %v44, 1
  %v70 = vsel %vm48, %v69, %v68
  %v71 = vsel %vm51, %v45, %v70
  %v72 = vrot.slane %v46, 7
  %v73 = vsel %vm54, %v72, %v71
  %v74 = vpack.c.b16 %v73, %v73
  %v75 = vrot.slane %v43, 7
  %v76 = vrot.slane %v44, 6
  %v77 = vsel %vm59, %v76, %v75
  %v78 = vrot.slane %v45, 5
  %v79 = vsel %vm62, %v78, %v77
  %v80 = vrot.slane %v46, 4
  %v81 = vsel %vm65, %v80, %v79
  %v82 = vpack.c.b16 %v81, %v81
  %v83 = vrot.slane %v43, 4
  %v84 = vrot.slane %v44, 3
  %v85 = vsel %vm48, %v84, %v83
  %v86 = vrot.slane %v45, 2
  %v87 = vsel %vm51, %v86, %v85
  %v88 = vrot.slane %v46, 1
  %v89 = vsel %vm54, %v88, %v87
  %v90 = vpack.c.b16 %v89, %v89
  %v91 = vrot.slane %v43, 1
  %v92 = vsel %vm59, %v44, %v91
  %v93 = vrot.slane %v45, 7
  %v94 = vsel %vm62, %v93, %v92
  %v95 = vrot.slane %v46, 6
  %v96 = vsel %vm65, %v95, %v94
  %v97 = vpack.c.b16 %v96, %v96
  %v98 = vrot.slane %v43, 6
  %v99 = vrot.slane %v44, 5
  %v100 = vsel %vm48, %v99, %v98
  %v101 = vrot.slane %v45, 4
  %v102 = vsel %vm51, %v101, %v100
  %v103 = vrot.slane %v46, 3
  %v104 = vsel %vm54, %v103, %v102
  %v105 = vpack.c.b16 %v104, %v104
  %v106 = vrot.slane %v43, 3
  %v107 = vrot.slane %v44, 2
  %v108 = vsel %vm59, %v107, %v106
  %v109 = vrot.slane %v45, 1
  %v110 = vsel %vm62, %v109, %v108
  %v111 = vsel %vm65, %v46, %v110
  %v112 = vpack.c.b16 %v111, %v111
  %vm113 = vcmask 1041408
  %v116 = vsel %vm113, %v56, %v67
  %vm117 = vcmask 1043456
  %v119 = vsel %vm117, %v116, %v74
  %vm120 = vcmask 1045504
  %v122 = vsel %vm120, %v119, %v82
  %v125 = vsel %vm113, %v90, %v97
  %v127 = vsel %vm117, %v125, %v105
  %v129 = vsel %vm120, %v127, %v112
  %v130 = vld [vmem:[%s2] sm:$0xff]
  %v131 = vld [vmem:[%s2 + $0x8] sm:$0xf]
  %v132 = vld [vmem:[%s2 + $0xc] sm:$0xff]
  %v133 = vld [vmem:[%s2 + $0x14] sm:$0xf]
  %v134 = vld [vmem:[%s2 + $0x18] sm:$0xff]
  %v135 = vld [vmem:[%s2 + $0x20] sm:$0xf]
  %v136 = vld [vmem:[%s2 + $0x24] sm:$0xff]
  %v137 = vld [vmem:[%s2 + $0x2c] sm:$0xf]
  %v138 = vld [vmem:[%s3] sm:$0x7]
  %v140 = vlaneseq
  %v141 = vshrl.u32 %v140, 7
  %v142 = vsub.s32 0, %v141
  %v143 = vrot.slane %v138, %v142
  %v144 = vlaneseq
  %v145 = vshrl.u32 %v144, 7
  %v146 = vsub.s32 1, %v145
  %v147 = vrot.slane %v138, %v146
  %v148 = vlaneseq
  %v149 = vshrl.u32 %v148, 7
  %v150 = vsub.s32 2, %v149
  %v151 = vrot.slane %v138, %v150
  %v163 = vunpack.c.l.b16 %v130
  %v164 = vunpack.c.h.b16 %v130
  %v165 = vunpack.c.l.b16 %v131
  %v166 = vunpack.c.l.b16 %v132
  %v167 = vunpack.c.h.b16 %v132
  %v168 = vunpack.c.l.b16 %v133
  %v169 = vunpack.c.l.b16 %v134
  %v170 = vunpack.c.h.b16 %v134
  %v171 = vunpack.c.l.b16 %v135
  %v172 = vunpack.c.l.b16 %v136
  %v173 = vunpack.c.h.b16 %v136
  %v174 = vunpack.c.l.b16 %v137
  %v175 = vpack.c.b16 %v166, %v163
  %v176 = vpack.c.b16 %v167, %v164
  %v177 = vpack.c.b16 %v168, %v165
  %v178 = vpack.c.b16 %v172, %v169
  %v179 = vpack.c.b16 %v173, %v170
  %v180 = vpack.c.b16 %v174, %v171
  %vm187 = vcmask 261120
  %v188 = vsel %vm187, %v122, 0
  %v190 = vsel %vm187, %v129, 0
  %192 = vmatprep.subr.bf16.mxu0 %v176
  %193 = vmatpush1.bf16.msra.mxu0 %v175
  %194 = vmatprep.subr.bf16.mxu0 %v179
  %195 = vmatpush1.bf16.msra.mxu0 %v178
  %196 = vmatprep.subr.bf16.mxu0 0
  %197 = vmatpush1.bf16.msra.mxu0 0
  %198 = vmatprep.subr.bf16.mxu0 0
  %199 = vmatpush1.bf16.msra.mxu0 0
  %200 = vmatprep.subr.bf16.mxu0 0
  %201 = vmatpush1.bf16.msra.mxu0 0
  %202 = vmatprep.subr.bf16.mxu0 0
  %203 = vmatpush1.bf16.msra.mxu0 0
  %204 = vmatprep.subr.bf16.mxu0 0
  %205 = vmatpush1.bf16.msra.mxu0 0
  %206 = vmatprep.subr.bf16.mxu0 0
  %207 = vmatpush1.bf16.msra.mxu0 0
  %208 = vmatprep.subr.bf16.mxu0 0
  %209 = vmatpush1.bf16.msra.mxu0 0
  %210 = vmatprep.subr.bf16.mxu0 0
  %211 = vmatpush1.bf16.msra.mxu0 0
  %212 = vmatprep.subr.bf16.mxu0 0
  %213 = vmatpush1.bf16.msra.mxu0 0
  %214 = vmatprep.subr.bf16.mxu0 0
  %215 = vmatpush1.bf16.msra.mxu0 0
  %216 = vmatprep.subr.bf16.mxu0 0
  %217 = vmatpush1.bf16.msra.mxu0 0
  %218 = vmatprep.subr.bf16.mxu0 0
  %219 = vmatpush1.bf16.msra.mxu0 0
  %220 = vmatprep.subr.bf16.mxu0 0
  %221 = vmatpush1.bf16.msra.mxu0 0
  %222 = vmatprep.subr.bf16.mxu0 0
  %223 = vmatpush1.bf16.msra.mxu0 0
  %224 = vmatprep.mubr.bf16.mxu0 0
  %225 = vmatmul.mubr.bf16.gmra.mrb[0].mxu0 %v188
  %v226 = vpop.f32.mrb[0].mxu0
  %v227 = vadd.f32 %v143, %v226
  %v228 = vpop.f32.mrb[0].mxu0
  %v229 = vadd.f32 %v147, %v228
  %v230 = vpop.f32.mrb[0].mxu0
  %v231 = vadd.f32 %v143, %v230
  %v232 = vpop.f32.mrb[0].mxu0
  %v233 = vadd.f32 %v147, %v232
  %234 = vmatprep.mubr.bf16.mxu0 0
  %235 = vmatmul.mubr.bf16.gmra.mrb[0].mxu0 %v190
  %v236 = vpop.f32.mrb[0].mxu0
  %v237 = vadd.f32 %v143, %v236
  %v238 = vpop.f32.mrb[0].mxu0
  %v239 = vadd.f32 %v147, %v238
  %v240 = vpop.f32.mrb[0].mxu0
  %v241 = vadd.f32 %v143, %v240
  %v242 = vpop.f32.mrb[0].mxu0
  %v243 = vadd.f32 %v147, %v242
  %244 = vdwg.mxu0
  %245 = vmatprep.subr.bf16.mxu0 0
  %246 = vmatpush1.bf16.msra.mxu0 %v177
  %247 = vmatprep.subr.bf16.mxu0 0
  %248 = vmatpush1.bf16.msra.mxu0 %v180
  %249 = vmatprep.subr.bf16.mxu0 0
  %250 = vmatpush1.bf16.msra.mxu0 0
  %251 = vmatprep.subr.bf16.mxu0 0
  %252 = vmatpush1.bf16.msra.mxu0 0
  %253 = vmatprep.subr.bf16.mxu0 0
  %254 = vmatpush1.bf16.msra.mxu0 0
  %255 = vmatprep.subr.bf16.mxu0 0
  %256 = vmatpush1.bf16.msra.mxu0 0
  %257 = vmatprep.subr.bf16.mxu0 0
  %258 = vmatpush1.bf16.msra.mxu0 0
  %259 = vmatprep.subr.bf16.mxu0 0
  %260 = vmatpush1.bf16.msra.mxu0 0
  %261 = vmatprep.subr.bf16.mxu0 0
  %262 = vmatpush1.bf16.msra.mxu0 0
  %263 = vmatprep.subr.bf16.mxu0 0
  %264 = vmatpush1.bf16.msra.mxu0 0
  %265 = vmatprep.subr.bf16.mxu0 0
  %266 = vmatpush1.bf16.msra.mxu0 0
  %267 = vmatprep.subr.bf16.mxu0 0
  %268 = vmatpush1.bf16.msra.mxu0 0
  %269 = vmatprep.subr.bf16.mxu0 0
  %270 = vmatpush1.bf16.msra.mxu0 0
  %271 = vmatprep.subr.bf16.mxu0 0
  %272 = vmatpush1.bf16.msra.mxu0 0
  %273 = vmatprep.subr.bf16.mxu0 0
  %274 = vmatpush1.bf16.msra.mxu0 0
  %275 = vmatprep.subr.bf16.mxu0 0
  %276 = vmatpush1.bf16.msra.mxu0 0
  %277 = vmatprep.mubr.bf16.mxu0 0
  %278 = vmatmul.mubr.bf16.gmra.mrb[0].mxu0 %v188
  %v279 = vpop.f32.mrb[0].mxu0
  %v280 = vadd.f32 %v151, %v279
  %v281 = vpop.f32.mrb[0].mxu0
  %v282 = vpop.f32.mrb[0].mxu0
  %v283 = vadd.f32 %v151, %v282
  %v284 = vpop.f32.mrb[0].mxu0
  %285 = vmatprep.mubr.bf16.mxu0 0
  %286 = vmatmul.mubr.bf16.gmra.mrb[0].mxu0 %v190
  %v287 = vpop.f32.mrb[0].mxu0
  %v288 = vadd.f32 %v151, %v287
  %v289 = vpop.f32.mrb[0].mxu0
  %v290 = vpop.f32.mrb[0].mxu0
  %v291 = vadd.f32 %v151, %v290
  %v292 = vpop.f32.mrb[0].mxu0
  %293 = vdwg.mxu0
  %v306 = vcombine.low %v227, %v229
  %v307 = vcombine.high %v227, %v229
  %v308 = vcombine.high %v280, %v280
  %v309 = vcombine.low %v231, %v233
  %v310 = vcombine.high %v231, %v233
  %v311 = vcombine.high %v283, %v283
  %v312 = vcombine.low %v237, %v239
  %v313 = vcombine.high %v237, %v239
  %v314 = vcombine.high %v288, %v288
  %v315 = vcombine.low %v241, %v243
  %v316 = vcombine.high %v241, %v243
  %v317 = vcombine.high %v291, %v291
  %vm326 = vcmask 523268
  %vm327 = vmor %vm326, %vm117
  %328 = vst.msk [vmem:[#allocation2] sm:$0xff] %vm327, %v306
  %329 = vst.msk [vmem:[#allocation2 + $0x8] sm:$0xff] %vm327, %v307
  %330 = vst.msk [vmem:[#allocation2 + $0x10] sm:$0xff] %vm327, %v309
  %331 = vst.msk [vmem:[#allocation2 + $0x18] sm:$0xff] %vm327, %v310
  %332 = vst.msk [vmem:[#allocation2 + $0x20] sm:$0xff] %vm327, %v312
  %333 = vst.msk [vmem:[#allocation2 + $0x28] sm:$0xff] %vm327, %v313
  %334 = vst.msk [vmem:[#allocation2 + $0x30] sm:$0xff] %vm327, %v315
  %335 = vst.msk [vmem:[#allocation2 + $0x38] sm:$0xff] %vm327, %v316
  %336 = vrot.lane.b32.xlu0 %v306, 64
  %v337 = vpop.permute.xlu0 %336
  %338 = vrot.lane.b32.xlu0 %v280, 64
  %v339 = vpop.permute.xlu0 %338
  %340 = vrot.lane.b32.xlu0 %v307, 64
  %v341 = vpop.permute.xlu0 %340
  %342 = vrot.lane.b32.xlu0 %v308, 64
  %v343 = vpop.permute.xlu0 %342
  %344 = vrot.lane.b32.xlu0 %v309, 64
  %v345 = vpop.permute.xlu0 %344
  %346 = vrot.lane.b32.xlu0 %v283, 64
  %v347 = vpop.permute.xlu0 %346
  %348 = vrot.lane.b32.xlu0 %v310, 64
  %v349 = vpop.permute.xlu0 %348
  %350 = vrot.lane.b32.xlu0 %v311, 64
  %v351 = vpop.permute.xlu0 %350
  %352 = vrot.lane.b32.xlu0 %v312, 64
  %v353 = vpop.permute.xlu0 %352
  %354 = vrot.lane.b32.xlu0 %v288, 64
  %v355 = vpop.permute.xlu0 %354
  %356 = vrot.lane.b32.xlu0 %v313, 64
  %v357 = vpop.permute.xlu0 %356
  %358 = vrot.lane.b32.xlu0 %v314, 64
  %v359 = vpop.permute.xlu0 %358
  %360 = vrot.lane.b32.xlu0 %v315, 64
  %v361 = vpop.permute.xlu0 %360
  %362 = vrot.lane.b32.xlu0 %v291, 64
  %v363 = vpop.permute.xlu0 %362
  %364 = vrot.lane.b32.xlu0 %v316, 64
  %v365 = vpop.permute.xlu0 %364
  %366 = vrot.lane.b32.xlu0 %v317, 64
  %v367 = vpop.permute.xlu0 %366
  %v368 = vrot.slane %v337, 4
  %v369 = vrot.slane %v339, 4
  %v370 = vrot.slane %v341, 4
  %v371 = vrot.slane %v343, 4
  %v372 = vrot.slane %v345, 4
  %v373 = vrot.slane %v347, 4
  %v374 = vrot.slane %v349, 4
  %v375 = vrot.slane %v351, 4
  %v376 = vrot.slane %v353, 4
  %v377 = vrot.slane %v355, 4
  %v378 = vrot.slane %v357, 4
  %v379 = vrot.slane %v359, 4
  %v380 = vrot.slane %v361, 4
  %v381 = vrot.slane %v363, 4
  %v382 = vrot.slane %v365, 4
  %v383 = vrot.slane %v367, 4
  %v384 = vsel %vm117, %v368, %v369
  %vm385 = vcmask 523264
  %v386 = vsel %vm385, %v384, %v339
  %v387 = vsel %vm117, %v370, %v371
  %v388 = vsel %vm385, %v387, %v343
  %v389 = vsel %vm117, %v372, %v373
  %v390 = vsel %vm385, %v389, %v347
  %v391 = vsel %vm117, %v374, %v375
  %v392 = vsel %vm385, %v391, %v351
  %v393 = vsel %vm117, %v376, %v377
  %v394 = vsel %vm385, %v393, %v355
  %v395 = vsel %vm117, %v378, %v379
  %v396 = vsel %vm385, %v395, %v359
  %v397 = vsel %vm117, %v380, %v381
  %v398 = vsel %vm385, %v397, %v363
  %v399 = vsel %vm117, %v382, %v383
  %v400 = vsel %vm385, %v399, %v367
  %409 = vst.msk [vmem:[#allocation3] sm:$0xff] %vm327, %v386
  %410 = vst.msk [vmem:[#allocation3 + $0x8] sm:$0xff] %vm327, %v388
  %411 = vst.msk [vmem:[#allocation3 + $0x10] sm:$0xff] %vm327, %v390
  %412 = vst.msk [vmem:[#allocation3 + $0x18] sm:$0xff] %vm327, %v392
  %413 = vst.msk [vmem:[#allocation3 + $0x20] sm:$0xff] %vm327, %v394
  %414 = vst.msk [vmem:[#allocation3 + $0x28] sm:$0xff] %vm327, %v396
  %415 = vst.msk [vmem:[#allocation3 + $0x30] sm:$0xff] %vm327, %v398
  %416 = vst.msk [vmem:[#allocation3 + $0x38] sm:$0xff] %vm327, %v400
  %v417 = vld [vmem:[%s4] sm:$0xff]
  %v418 = vld [vmem:[%s4 + $0x8] sm:$0xff]
  %v419 = vld [vmem:[%s4 + $0x10] sm:$0xff]
  %v420 = vld [vmem:[%s4 + $0x18] sm:$0xff]
  %v421 = vld [vmem:[%s4 + $0x20] sm:$0xff]
  %v422 = vld [vmem:[%s4 + $0x28] sm:$0xff]
  %v423 = vld [vmem:[%s4 + $0x30] sm:$0xff]
  %v424 = vld [vmem:[%s4 + $0x38] sm:$0xff]
  %v425 = vld [vmem:[%s6] sm:$0xff]
  %v426 = vld [vmem:[%s6 + $0x8] sm:$0xff]
  %v427 = vld [vmem:[%s6 + $0x10] sm:$0xff]
  %v428 = vld [vmem:[%s6 + $0x18] sm:$0xff]
  %v429 = vld [vmem:[%s6 + $0x20] sm:$0xff]
  %v430 = vld [vmem:[%s6 + $0x28] sm:$0xff]
  %v431 = vld [vmem:[%s6 + $0x30] sm:$0xff]
  %v432 = vld [vmem:[%s6 + $0x38] sm:$0xff]
  %v433 = vld [vmem:[%s5] sm:$0x1]
  %v434 = vld [vmem:[%s7] sm:$0x1]
  %v435 = vld [vmem:[#allocation2] sm:$0xff]
  %v444 = vunpack.c.l.b16 %v417
  %v445 = vunpack.c.h.b16 %v417
  %v446 = vunpack.c.l.b16 %v418
  %v447 = vunpack.c.h.b16 %v418
  %v448 = vunpack.c.l.b16 %v419
  %v449 = vunpack.c.h.b16 %v419
  %v450 = vunpack.c.l.b16 %v420
  %v451 = vunpack.c.h.b16 %v420
  %v452 = vunpack.c.l.b16 %v421
  %v453 = vunpack.c.h.b16 %v421
  %v454 = vunpack.c.l.b16 %v422
  %v455 = vunpack.c.h.b16 %v422
  %v456 = vunpack.c.l.b16 %v423
  %v457 = vunpack.c.h.b16 %v423
  %v458 = vunpack.c.l.b16 %v424
  %v459 = vunpack.c.h.b16 %v424
  %v460 = vpack.c.b16 %v446, %v444
  %v461 = vpack.c.b16 %v447, %v445
  %v462 = vpack.c.b16 %v450, %v448
  %v463 = vpack.c.b16 %v451, %v449
  %v464 = vpack.c.b16 %v454, %v452
  %v465 = vpack.c.b16 %v455, %v453
  %v466 = vpack.c.b16 %v458, %v456
  %v467 = vpack.c.b16 %v459, %v457
  %v477 = vsel %vm385, 0, 0
  %479 = vmatprep.subr.bf16.mxu0 %v461
  %480 = vmatpush1.bf16.msra.mxu0 %v460
  %481 = vmatprep.subr.bf16.mxu0 %v463
  %482 = vmatpush1.bf16.msra.mxu0 %v462
  %483 = vmatprep.subr.bf16.mxu0 %v465
  %484 = vmatpush1.bf16.msra.mxu0 %v464
  %485 = vmatprep.subr.bf16.mxu0 %v467
  %486 = vmatpush1.bf16.msra.mxu0 %v466
  %487 = vmatprep.subr.bf16.mxu0 0
  %488 = vmatpush1.bf16.msra.mxu0 0
  %489 = vmatprep.subr.bf16.mxu0 0
  %490 = vmatpush1.bf16.msra.mxu0 0
  %491 = vmatprep.subr.bf16.mxu0 0
  %492 = vmatpush1.bf16.msra.mxu0 0
  %493 = vmatprep.subr.bf16.mxu0 0
  %494 = vmatpush1.bf16.msra.mxu0 0
  %495 = vmatprep.subr.bf16.mxu0 0
  %496 = vmatpush1.bf16.msra.mxu0 0
  %497 = vmatprep.subr.bf16.mxu0 0
  %498 = vmatpush1.bf16.msra.mxu0 0
  %499 = vmatprep.subr.bf16.mxu0 0
  %500 = vmatpush1.bf16.msra.mxu0 0
  %501 = vmatprep.subr.bf16.mxu0 0
  %502 = vmatpush1.bf16.msra.mxu0 0
  %503 = vmatprep.subr.bf16.mxu0 0
  %504 = vmatpush1.bf16.msra.mxu0 0
  %505 = vmatprep.subr.bf16.mxu0 0
  %506 = vmatpush1.bf16.msra.mxu0 0
  %507 = vmatprep.subr.bf16.mxu0 0
  %508 = vmatpush1.bf16.msra.mxu0 0
  %509 = vmatprep.subr.bf16.mxu0 0
  %510 = vmatpush1.bf16.msra.mxu0 0
  %511 = vmatprep.mubr.bf16.mxu0 0
  %512 = vmatmul.mubr.bf16.gmra.mrb[0].mxu0 %v477
  %v513 = vpop.f32.mrb[0].mxu0
  %v514 = vadd.f32 0.0, %v513
  %v515 = vpop.f32.mrb[0].mxu0
  %v516 = vadd.f32 0.0, %v515
  %v517 = vpop.f32.mrb[0].mxu0
  %v518 = vpop.f32.mrb[0].mxu0
  %519 = vdwg.mxu0
  %v520 = vadd.f32 %v435, %v514
  %v521 = vxor.u32 %v520, 2147483648
  %v522 = vmul.f32 %v521, 1.442695
  %v523 = vpow.pop %v522
  %v524 = vadd.f32 %v523, 1.0
  %v525 = vrcp.pop %v524
  %v526 = vmul.f32 1.0, %v525
  %v528 = vlaneseq
  %v529 = vshrl.u32 %v528, 7
  %v530 = vsub.s32 0, %v529
  %v531 = vrot.slane %v433, %v530
  %v533 = vadd.f32 %v516, %v531
  %v534 = vmul.f32 %v526, %v533
  %v536 = vrot.slane %v435, 4
  %v538 = vadd.f32 %v536, %v534
  %v539 = vtanh.pop %v538
  %v540 = vsub.f32 1.0, %v526
  %542 = vrot.lane.b32.xlu0 %v539, 64
  %v543 = vpop.permute.xlu0 %542
  %v545 = vmul.f32 %v540, %v543
  %v546 = vmul.f32 %v526, 0.0
  %v547 = vadd.f32 %v545, %v546
  %s548 = scalar_lea.vmem [#allocation3], 56
  %v549 = vld [vmem:[%s548] sm:$0xff]
  %v558 = vunpack.c.l.b16 %v425
  %v559 = vunpack.c.h.b16 %v425
  %v560 = vunpack.c.l.b16 %v426
  %v561 = vunpack.c.h.b16 %v426
  %v562 = vunpack.c.l.b16 %v427
  %v563 = vunpack.c.h.b16 %v427
  %v564 = vunpack.c.l.b16 %v428
  %v565 = vunpack.c.h.b16 %v428
  %v566 = vunpack.c.l.b16 %v429
  %v567 = vunpack.c.h.b16 %v429
  %v568 = vunpack.c.l.b16 %v430
  %v569 = vunpack.c.h.b16 %v430
  %v570 = vunpack.c.l.b16 %v431
  %v571 = vunpack.c.h.b16 %v431
  %v572 = vunpack.c.l.b16 %v432
  %v573 = vunpack.c.h.b16 %v432
  %v574 = vpack.c.b16 %v560, %v558
  %v575 = vpack.c.b16 %v561, %v559
  %v576 = vpack.c.b16 %v564, %v562
  %v577 = vpack.c.b16 %v565, %v563
  %v578 = vpack.c.b16 %v568, %v566
  %v579 = vpack.c.b16 %v569, %v567
  %v580 = vpack.c.b16 %v572, %v570
  %v581 = vpack.c.b16 %v573, %v571
  %590 = vmatprep.subr.bf16.mxu0 %v575
  %591 = vmatpush1.bf16.msra.mxu0 %v574
  %592 = vmatprep.subr.bf16.mxu0 %v577
  %593 = vmatpush1.bf16.msra.mxu0 %v576
  %594 = vmatprep.subr.bf16.mxu0 %v579
  %595 = vmatpush1.bf16.msra.mxu0 %v578
  %596 = vmatprep.subr.bf16.mxu0 %v581
  %597 = vmatpush1.bf16.msra.mxu0 %v580
  %598 = vmatprep.subr.bf16.mxu0 0
  %599 = vmatpush1.bf16.msra.mxu0 0
  %600 = vmatprep.subr.bf16.mxu0 0
  %601 = vmatpush1.bf16.msra.mxu0 0
  %602 = vmatprep.subr.bf16.mxu0 0
  %603 = vmatpush1.bf16.msra.mxu0 0
  %604 = vmatprep.subr.bf16.mxu0 0
  %605 = vmatpush1.bf16.msra.mxu0 0
  %606 = vmatprep.subr.bf16.mxu0 0
  %607 = vmatpush1.bf16.msra.mxu0 0
  %608 = vmatprep.subr.bf16.mxu0 0
  %609 = vmatpush1.bf16.msra.mxu0 0
  %610 = vmatprep.subr.bf16.mxu0 0
  %611 = vmatpush1.bf16.msra.mxu0 0
  %612 = vmatprep.subr.bf16.mxu0 0
  %613 = vmatpush1.bf16.msra.mxu0 0
  %614 = vmatprep.subr.bf16.mxu0 0
  %615 = vmatpush1.bf16.msra.mxu0 0
  %616 = vmatprep.subr.bf16.mxu0 0
  %617 = vmatpush1.bf16.msra.mxu0 0
  %618 = vmatprep.subr.bf16.mxu0 0
  %619 = vmatpush1.bf16.msra.mxu0 0
  %620 = vmatprep.subr.bf16.mxu0 0
  %621 = vmatpush1.bf16.msra.mxu0 0
  %622 = vmatprep.mubr.bf16.mxu0 0
  %623 = vmatmul.mubr.bf16.gmra.mrb[0].mxu0 %v477
  %v624 = vpop.f32.mrb[0].mxu0
  %v625 = vadd.f32 0.0, %v624
  %v626 = vpop.f32.mrb[0].mxu0
  %v627 = vadd.f32 0.0, %v626
  %v628 = vpop.f32.mrb[0].mxu0
  %v629 = vpop.f32.mrb[0].mxu0
  %630 = vdwg.mxu0
  %v631 = vadd.f32 %v549, %v625
  %v632 = vxor.u32 %v631, 2147483648
  %v633 = vmul.f32 %v632, 1.442695
  %v634 = vpow.pop %v633
  %v635 = vadd.f32 %v634, 1.0
  %v636 = vrcp.pop %v635
  %v637 = vmul.f32 1.0, %v636
  %v639 = vlaneseq
  %v640 = vshrl.u32 %v639, 7
  %v641 = vsub.s32 0, %v640
  %v642 = vrot.slane %v434, %v641
  %v644 = vadd.f32 %v627, %v642
  %v645 = vmul.f32 %v637, %v644
  %v647 = vrot.slane %v549, 4
  %v649 = vadd.f32 %v647, %v645
  %v650 = vtanh.pop %v649
  %v651 = vsub.f32 1.0, %v637
  %653 = vrot.lane.b32.xlu0 %v650, 64
  %v654 = vpop.permute.xlu0 %653
  %v656 = vmul.f32 %v651, %v654
  %v657 = vmul.f32 %v637, 0.0
  %v658 = vadd.f32 %v656, %v657
  %vm659 = vcmp.gt.s32.totalorder %v30, 0
  %v660 = vsel %vm659, 1, 0
  %v661 = vcvt.s32.f32 %v660
  %vm662 = vcmp.gt.s32.totalorder %v30, 7
  %v663 = vsel %vm662, 1, 0
  %v664 = vcvt.s32.f32 %v663
  %666 = vset.pattern.permute.xlu0 0
  %667 = vperm.xlu0 %666, %v661
  %v668 = vpop.permute.xlu0 %667
  %671 = vrot.lane.b32.xlu0 %v547, 64
  %v672 = vpop.permute.xlu0 %671
  %v674 = vmul.f32 %v668, %v672
  %v675 = vsub.f32 1.0, %v661
  %677 = vset.pattern.permute.xlu0 0
  %678 = vperm.xlu0 %677, %v675
  %v679 = vpop.permute.xlu0 %678
  %v681 = vmul.f32 %v679, 0.0
  %v682 = vadd.f32 %v674, %v681
  %684 = vset.pattern.permute.xlu0 0
  %685 = vperm.xlu0 %684, %v664
  %v686 = vpop.permute.xlu0 %685
  %689 = vrot.lane.b32.xlu0 %v658, 64
  %v690 = vpop.permute.xlu0 %689
  %v692 = vmul.f32 %v686, %v690
  %v693 = vsub.f32 1.0, %v664
  %695 = vset.pattern.permute.xlu0 0
  %696 = vperm.xlu0 %695, %v693
  %v697 = vpop.permute.xlu0 %696
  %v699 = vmul.f32 %v697, 0.0
  %v700 = vadd.f32 %v692, %v699
  %v701 = vmul.f32 %v682, %v668
  %vm702 = vcmask 519168
  %703 = vst.msk [vmem:[#allocation4] sm:$0xf] %vm702, %v701
  %v704 = vmul.f32 %v700, %v686
  %s705 = scalar_lea.vmem [#allocation5], 28
  %706 = vst.msk [vmem:[%s705] sm:$0xf] %vm702, %v704
  %s707 = scalar_lea.vmem [#allocation2], 8
  %v708 = vld [vmem:[%s707] sm:$0xff]
  %v709 = vpack.c.bf16 %v682, %v682
  %v711 = vsel %vm385, %v709, 0
  %713 = vmatprep.subr.bf16.mxu0 %v461
  %714 = vmatpush1.bf16.msra.mxu0 %v460
  %715 = vmatprep.subr.bf16.mxu0 %v463
  %716 = vmatpush1.bf16.msra.mxu0 %v462
  %717 = vmatprep.subr.bf16.mxu0 %v465
  %718 = vmatpush1.bf16.msra.mxu0 %v464
  %719 = vmatprep.subr.bf16.mxu0 %v467
  %720 = vmatpush1.bf16.msra.mxu0 %v466
  %721 = vmatprep.subr.bf16.mxu0 0
  %722 = vmatpush1.bf16.msra.mxu0 0
  %723 = vmatprep.subr.bf16.mxu0 0
  %724 = vmatpush1.bf16.msra.mxu0 0
  %725 = vmatprep.subr.bf16.mxu0 0
  %726 = vmatpush1.bf16.msra.mxu0 0
  %727 = vmatprep.subr.bf16.mxu0 0
  %728 = vmatpush1.bf16.msra.mxu0 0
  %729 = vmatprep.subr.bf16.mxu0 0
  %730 = vmatpush1.bf16.msra.mxu0 0
  %731 = vmatprep.subr.bf16.mxu0 0
  %732 = vmatpush1.bf16.msra.mxu0 0
  %733 = vmatprep.subr.bf16.mxu0 0
  %734 = vmatpush1.bf16.msra.mxu0 0
  %735 = vmatprep.subr.bf16.mxu0 0
  %736 = vmatpush1.bf16.msra.mxu0 0
  %737 = vmatprep.subr.bf16.mxu0 0
  %738 = vmatpush1.bf16.msra.mxu0 0
  %739 = vmatprep.subr.bf16.mxu0 0
  %740 = vmatpush1.bf16.msra.mxu0 0
  %741 = vmatprep.subr.bf16.mxu0 0
  %742 = vmatpush1.bf16.msra.mxu0 0
  %743 = vmatprep.subr.bf16.mxu0 0
  %744 = vmatpush1.bf16.msra.mxu0 0
  %745 = vmatprep.mubr.bf16.mxu0 0
  %746 = vmatmul.mubr.bf16.gmra.mrb[0].mxu0 %v711
  %v747 = vpop.f32.mrb[0].mxu0
  %v748 = vadd.f32 0.0, %v747
  %v749 = vpop.f32.mrb[0].mxu0
  %v750 = vadd.f32 0.0, %v749
  %v751 = vpop.f32.mrb[0].mxu0
  %v752 = vpop.f32.mrb[0].mxu0
  %753 = vdwg.mxu0
  %v754 = vadd.f32 %v708, %v748
  %v755 = vxor.u32 %v754, 2147483648
  %v756 = vmul.f32 %v755, 1.442695
  %v757 = vpow.pop %v756
  %v758 = vadd.f32 %v757, 1.0
  %v759 = vrcp.pop %v758
  %v760 = vmul.f32 1.0, %v759
  %v761 = vadd.f32 %v750, %v531
  %v762 = vmul.f32 %v760, %v761
  %v764 = vrot.slane %v708, 4
  %v766 = vadd.f32 %v764, %v762
  %v767 = vtanh.pop %v766
  %v768 = vsub.f32 1.0, %v760
  %770 = vrot.lane.b32.xlu0 %v767, 64
  %v771 = vpop.permute.xlu0 %770
  %v773 = vmul.f32 %v768, %v771
  %775 = vrot.lane.b32.xlu0 %v682, 64
  %v776 = vpop.permute.xlu0 %775
  %v778 = vmul.f32 %v760, %v776
  %v779 = vadd.f32 %v773, %v778
  %s780 = scalar_lea.vmem [#allocation3], 48
  %v781 = vld [vmem:[%s780] sm:$0xff]
  %v782 = vpack.c.bf16 %v700, %v700
  %v784 = vsel %vm385, %v782, 0
  %786 = vmatprep.subr.bf16.mxu0 %v575
  %787 = vmatpush1.bf16.msra.mxu0 %v574
  %788 = vmatprep.subr.bf16.mxu0 %v577
  %789 = vmatpush1.bf16.msra.mxu0 %v576
  %790 = vmatprep.subr.bf16.mxu0 %v579
  %791 = vmatpush1.bf16.msra.mxu0 %v578
  %792 = vmatprep.subr.bf16.mxu0 %v581
  %793 = vmatpush1.bf16.msra.mxu0 %v580
  %794 = vmatprep.subr.bf16.mxu0 0
  %795 = vmatpush1.bf16.msra.mxu0 0
  %796 = vmatprep.subr.bf16.mxu0 0
  %797 = vmatpush1.bf16.msra.mxu0 0
  %798 = vmatprep.subr.bf16.mxu0 0
  %799 = vmatpush1.bf16.msra.mxu0 0
  %800 = vmatprep.subr.bf16.mxu0 0
  %801 = vmatpush1.bf16.msra.mxu0 0
  %802 = vmatprep.subr.bf16.mxu0 0
  %803 = vmatpush1.bf16.msra.mxu0 0
  %804 = vmatprep.subr.bf16.mxu0 0
  %805 = vmatpush1.bf16.msra.mxu0 0
  %806 = vmatprep.subr.bf16.mxu0 0
  %807 = vmatpush1.bf16.msra.mxu0 0
  %808 = vmatprep.subr.bf16.mxu0 0
  %809 = vmatpush1.bf16.msra.mxu0 0
  %810 = vmatprep.subr.bf16.mxu0 0
  %811 = vmatpush1.bf16.msra.mxu0 0
  %812 = vmatprep.subr.bf16.mxu0 0
  %813 = vmatpush1.bf16.msra.mxu0 0
  %814 = vmatprep.subr.bf16.mxu0 0
  %815 = vmatpush1.bf16.msra.mxu0 0
  %816 = vmatprep.subr.bf16.mxu0 0
  %817 = vmatpush1.bf16.msra.mxu0 0
  %818 = vmatprep.mubr.bf16.mxu0 0
  %819 = vmatmul.mubr.bf16.gmra.mrb[0].mxu0 %v784
  %v820 = vpop.f32.mrb[0].mxu0
  %v821 = vadd.f32 0.0, %v820
  %v822 = vpop.f32.mrb[0].mxu0
  %v823 = vadd.f32 0.0, %v822
  %v824 = vpop.f32.mrb[0].mxu0
  %v825 = vpop.f32.mrb[0].mxu0
  %826 = vdwg.mxu0
  %v827 = vadd.f32 %v781, %v821
  %v828 = vxor.u32 %v827, 2147483648
  %v829 = vmul.f32 %v828, 1.442695
  %v830 = vpow.pop %v829
  %v831 = vadd.f32 %v830, 1.0
  %v832 = vrcp.pop %v831
  %v833 = vmul.f32 1.0, %v832
  %v834 = vadd.f32 %v823, %v642
  %v835 = vmul.f32 %v833, %v834
  %v837 = vrot.slane %v781, 4
  %v839 = vadd.f32 %v837, %v835
  %v840 = vtanh.pop %v839
  %v841 = vsub.f32 1.0, %v833
  %843 = vrot.lane.b32.xlu0 %v840, 64
  %v844 = vpop.permute.xlu0 %843
  %v846 = vmul.f32 %v841, %v844
  %848 = vrot.lane.b32.xlu0 %v700, 64
  %v849 = vpop.permute.xlu0 %848
  %v851 = vmul.f32 %v833, %v849
  %v852 = vadd.f32 %v846, %v851
  %vm853 = vcmp.gt.s32.totalorder %v30, 1
  %v854 = vsel %vm853, 1, 0
  %v855 = vcvt.s32.f32 %v854
  %vm856 = vcmp.gt.s32.totalorder %v30, 6
  %v857 = vsel %vm856, 1, 0
  %v858 = vcvt.s32.f32 %v857
  %860 = vset.pattern.permute.xlu0 0
  %861 = vperm.xlu0 %860, %v855
  %v862 = vpop.permute.xlu0 %861
  %865 = vrot.lane.b32.xlu0 %v779, 64
  %v866 = vpop.permute.xlu0 %865
  %v868 = vmul.f32 %v862, %v866
  %v869 = vsub.f32 1.0, %v855
  %871 = vset.pattern.permute.xlu0 0
  %872 = vperm.xlu0 %871, %v869
  %v873 = vpop.permute.xlu0 %872
  %v875 = vmul.f32 %v873, %v682
  %v876 = vadd.f32 %v868, %v875
  %878 = vset.pattern.permute.xlu0 0
  %879 = vperm.xlu0 %878, %v858
  %v880 = vpop.permute.xlu0 %879
  %883 = vrot.lane.b32.xlu0 %v852, 64
  %v884 = vpop.permute.xlu0 %883
  %v886 = vmul.f32 %v880, %v884
  %v887 = vsub.f32 1.0, %v858
  %889 = vset.pattern.permute.xlu0 0
  %890 = vperm.xlu0 %889, %v887
  %v891 = vpop.permute.xlu0 %890
  %v893 = vmul.f32 %v891, %v700
  %v894 = vadd.f32 %v886, %v893
  %v895 = vmul.f32 %v876, %v862
  %s896 = scalar_lea.vmem [#allocation4], 4
  %897 = vst.msk [vmem:[%s896] sm:$0xf] %vm702, %v895
  %v898 = vmul.f32 %v894, %v880
  %s899 = scalar_lea.vmem [#allocation5], 24
  %900 = vst.msk [vmem:[%s899] sm:$0xf] %vm702, %v898
  %s901 = scalar_lea.vmem [#allocation2], 16
  %v902 = vld [vmem:[%s901] sm:$0xff]
  %v903 = vpack.c.bf16 %v876, %v876
  %v905 = vsel %vm385, %v903, 0
  %907 = vmatprep.subr.bf16.mxu0 %v461
  %908 = vmatpush1.bf16.msra.mxu0 %v460
  %909 = vmatprep.subr.bf16.mxu0 %v463
  %910 = vmatpush1.bf16.msra.mxu0 %v462
  %911 = vmatprep.subr.bf16.mxu0 %v465
  %912 = vmatpush1.bf16.msra.mxu0 %v464
  %913 = vmatprep.subr.bf16.mxu0 %v467
  %914 = vmatpush1.bf16.msra.mxu0 %v466
  %915 = vmatprep.subr.bf16.mxu0 0
  %916 = vmatpush1.bf16.msra.mxu0 0
  %917 = vmatprep.subr.bf16.mxu0 0
  %918 = vmatpush1.bf16.msra.mxu0 0
  %919 = vmatprep.subr.bf16.mxu0 0
  %920 = vmatpush1.bf16.msra.mxu0 0
  %921 = vmatprep.subr.bf16.mxu0 0
  %922 = vmatpush1.bf16.msra.mxu0 0
  %923 = vmatprep.subr.bf16.mxu0 0
  %924 = vmatpush1.bf16.msra.mxu0 0
  %925 = vmatprep.subr.bf16.mxu0 0
  %926 = vmatpush1.bf16.msra.mxu0 0
  %927 = vmatprep.subr.bf16.mxu0 0
  %928 = vmatpush1.bf16.msra.mxu0 0
  %929 = vmatprep.subr.bf16.mxu0 0
  %930 = vmatpush1.bf16.msra.mxu0 0
  %931 = vmatprep.subr.bf16.mxu0 0
  %932 = vmatpush1.bf16.msra.mxu0 0
  %933 = vmatprep.subr.bf16.mxu0 0
  %934 = vmatpush1.bf16.msra.mxu0 0
  %935 = vmatprep.subr.bf16.mxu0 0
  %936 = vmatpush1.bf16.msra.mxu0 0
  %937 = vmatprep.subr.bf16.mxu0 0
  %938 = vmatpush1.bf16.msra.mxu0 0
  %939 = vmatprep.mubr.bf16.mxu0 0
  %940 = vmatmul.mubr.bf16.gmra.mrb[0].mxu0 %v905
  %v941 = vpop.f32.mrb[0].mxu0
  %v942 = vadd.f32 0.0, %v941
  %v943 = vpop.f32.mrb[0].mxu0
  %v944 = vadd.f32 0.0, %v943
  %v945 = vpop.f32.mrb[0].mxu0
  %v946 = vpop.f32.mrb[0].mxu0
  %947 = vdwg.mxu0
  %v948 = vadd.f32 %v902, %v942
  %v949 = vxor.u32 %v948, 2147483648
  %v950 = vmul.f32 %v949, 1.442695
  %v951 = vpow.pop %v950
  %v952 = vadd.f32 %v951, 1.0
  %v953 = vrcp.pop %v952
  %v954 = vmul.f32 1.0, %v953
  %v955 = vadd.f32 %v944, %v531
  %v956 = vmul.f32 %v954, %v955
  %v958 = vrot.slane %v902, 4
  %v960 = vadd.f32 %v958, %v956
  %v961 = vtanh.pop %v960
  %v962 = vsub.f32 1.0, %v954
  %964 = vrot.lane.b32.xlu0 %v961, 64
  %v965 = vpop.permute.xlu0 %964
  %v967 = vmul.f32 %v962, %v965
  %969 = vrot.lane.b32.xlu0 %v876, 64
  %v970 = vpop.permute.xlu0 %969
  %v972 = vmul.f32 %v954, %v970
  %v973 = vadd.f32 %v967, %v972
  %s974 = scalar_lea.vmem [#allocation3], 40
  %v975 = vld [vmem:[%s974] sm:$0xff]
  %v976 = vpack.c.bf16 %v894, %v894
  %v978 = vsel %vm385, %v976, 0
  %980 = vmatprep.subr.bf16.mxu0 %v575
  %981 = vmatpush1.bf16.msra.mxu0 %v574
  %982 = vmatprep.subr.bf16.mxu0 %v577
  %983 = vmatpush1.bf16.msra.mxu0 %v576
  %984 = vmatprep.subr.bf16.mxu0 %v579
  %985 = vmatpush1.bf16.msra.mxu0 %v578
  %986 = vmatprep.subr.bf16.mxu0 %v581
  %987 = vmatpush1.bf16.msra.mxu0 %v580
  %988 = vmatprep.subr.bf16.mxu0 0
  %989 = vmatpush1.bf16.msra.mxu0 0
  %990 = vmatprep.subr.bf16.mxu0 0
  %991 = vmatpush1.bf16.msra.mxu0 0
  %992 = vmatprep.subr.bf16.mxu0 0
  %993 = vmatpush1.bf16.msra.mxu0 0
  %994 = vmatprep.subr.bf16.mxu0 0
  %995 = vmatpush1.bf16.msra.mxu0 0
  %996 = vmatprep.subr.bf16.mxu0 0
  %997 = vmatpush1.bf16.msra.mxu0 0
  %998 = vmatprep.subr.bf16.mxu0 0
  %999 = vmatpush1.bf16.msra.mxu0 0
  %1000 = vmatprep.subr.bf16.mxu0 0
  %1001 = vmatpush1.bf16.msra.mxu0 0
  %1002 = vmatprep.subr.bf16.mxu0 0
  %1003 = vmatpush1.bf16.msra.mxu0 0
  %1004 = vmatprep.subr.bf16.mxu0 0
  %1005 = vmatpush1.bf16.msra.mxu0 0
  %1006 = vmatprep.subr.bf16.mxu0 0
  %1007 = vmatpush1.bf16.msra.mxu0 0
  %1008 = vmatprep.subr.bf16.mxu0 0
  %1009 = vmatpush1.bf16.msra.mxu0 0
  %1010 = vmatprep.subr.bf16.mxu0 0
  %1011 = vmatpush1.bf16.msra.mxu0 0
  %1012 = vmatprep.mubr.bf16.mxu0 0
  %1013 = vmatmul.mubr.bf16.gmra.mrb[0].mxu0 %v978
  %v1014 = vpop.f32.mrb[0].mxu0
  %v1015 = vadd.f32 0.0, %v1014
  %v1016 = vpop.f32.mrb[0].mxu0
  %v1017 = vadd.f32 0.0, %v1016
  %v1018 = vpop.f32.mrb[0].mxu0
  %v1019 = vpop.f32.mrb[0].mxu0
  %1020 = vdwg.mxu0
  %v1021 = vadd.f32 %v975, %v1015
  %v1022 = vxor.u32 %v1021, 2147483648
  %v1023 = vmul.f32 %v1022, 1.442695
  %v1024 = vpow.pop %v1023
  %v1025 = vadd.f32 %v1024, 1.0
  %v1026 = vrcp.pop %v1025
  %v1027 = vmul.f32 1.0, %v1026
  %v1028 = vadd.f32 %v1017, %v642
  %v1029 = vmul.f32 %v1027, %v1028
  %v1031 = vrot.slane %v975, 4
  %v1033 = vadd.f32 %v1031, %v1029
  %v1034 = vtanh.pop %v1033
  %v1035 = vsub.f32 1.0, %v1027
  %1037 = vrot.lane.b32.xlu0 %v1034, 64
  %v1038 = vpop.permute.xlu0 %1037
  %v1040 = vmul.f32 %v1035, %v1038
  %1042 = vrot.lane.b32.xlu0 %v894, 64
  %v1043 = vpop.permute.xlu0 %1042
  %v1045 = vmul.f32 %v1027, %v1043
  %v1046 = vadd.f32 %v1040, %v1045
  %vm1047 = vcmp.gt.s32.totalorder %v30, 2
  %v1048 = vsel %vm1047, 1, 0
  %v1049 = vcvt.s32.f32 %v1048
  %vm1050 = vcmp.gt.s32.totalorder %v30, 5
  %v1051 = vsel %vm1050, 1, 0
  %v1052 = vcvt.s32.f32 %v1051
  %1054 = vset.pattern.permute.xlu0 0
  %1055 = vperm.xlu0 %1054, %v1049
  %v1056 = vpop.permute.xlu0 %1055
  %1059 = vrot.lane.b32.xlu0 %v973, 64
  %v1060 = vpop.permute.xlu0 %1059
  %v1062 = vmul.f32 %v1056, %v1060
  %v1063 = vsub.f32 1.0, %v1049
  %1065 = vset.pattern.permute.xlu0 0
  %1066 = vperm.xlu0 %1065, %v1063
  %v1067 = vpop.permute.xlu0 %1066
  %v1069 = vmul.f32 %v1067, %v876
  %v1070 = vadd.f32 %v1062, %v1069
  %1072 = vset.pattern.permute.xlu0 0
  %1073 = vperm.xlu0 %1072, %v1052
  %v1074 = vpop.permute.xlu0 %1073
  %1077 = vrot.lane.b32.xlu0 %v1046, 64
  %v1078 = vpop.permute.xlu0 %1077
  %v1080 = vmul.f32 %v1074, %v1078
  %v1081 = vsub.f32 1.0, %v1052
  %1083 = vset.pattern.permute.xlu0 0
  %1084 = vperm.xlu0 %1083, %v1081
  %v1085 = vpop.permute.xlu0 %1084
  %v1087 = vmul.f32 %v1085, %v894
  %v1088 = vadd.f32 %v1080, %v1087
  %v1089 = vmul.f32 %v1070, %v1056
  %s1090 = scalar_lea.vmem [#allocation4], 8
  %1091 = vst.msk [vmem:[%s1090] sm:$0xf] %vm702, %v1089
  %v1092 = vmul.f32 %v1088, %v1074
  %s1093 = scalar_lea.vmem [#allocation5], 20
  %1094 = vst.msk [vmem:[%s1093] sm:$0xf] %vm702, %v1092
  %s1095 = scalar_lea.vmem [#allocation2], 24
  %v1096 = vld [vmem:[%s1095] sm:$0xff]
  %v1097 = vpack.c.bf16 %v1070, %v1070
  %v1099 = vsel %vm385, %v1097, 0
  %1101 = vmatprep.subr.bf16.mxu0 %v461
  %1102 = vmatpush1.bf16.msra.mxu0 %v460
  %1103 = vmatprep.subr.bf16.mxu0 %v463
  %1104 = vmatpush1.bf16.msra.mxu0 %v462
  %1105 = vmatprep.subr.bf16.mxu0 %v465
  %1106 = vmatpush1.bf16.msra.mxu0 %v464
  %1107 = vmatprep.subr.bf16.mxu0 %v467
  %1108 = vmatpush1.bf16.msra.mxu0 %v466
  %1109 = vmatprep.subr.bf16.mxu0 0
  %1110 = vmatpush1.bf16.msra.mxu0 0
  %1111 = vmatprep.subr.bf16.mxu0 0
  %1112 = vmatpush1.bf16.msra.mxu0 0
  %1113 = vmatprep.subr.bf16.mxu0 0
  %1114 = vmatpush1.bf16.msra.mxu0 0
  %1115 = vmatprep.subr.bf16.mxu0 0
  %1116 = vmatpush1.bf16.msra.mxu0 0
  %1117 = vmatprep.subr.bf16.mxu0 0
  %1118 = vmatpush1.bf16.msra.mxu0 0
  %1119 = vmatprep.subr.bf16.mxu0 0
  %1120 = vmatpush1.bf16.msra.mxu0 0
  %1121 = vmatprep.subr.bf16.mxu0 0
  %1122 = vmatpush1.bf16.msra.mxu0 0
  %1123 = vmatprep.subr.bf16.mxu0 0
  %1124 = vmatpush1.bf16.msra.mxu0 0
  %1125 = vmatprep.subr.bf16.mxu0 0
  %1126 = vmatpush1.bf16.msra.mxu0 0
  %1127 = vmatprep.subr.bf16.mxu0 0
  %1128 = vmatpush1.bf16.msra.mxu0 0
  %1129 = vmatprep.subr.bf16.mxu0 0
  %1130 = vmatpush1.bf16.msra.mxu0 0
  %1131 = vmatprep.subr.bf16.mxu0 0
  %1132 = vmatpush1.bf16.msra.mxu0 0
  %1133 = vmatprep.mubr.bf16.mxu0 0
  %1134 = vmatmul.mubr.bf16.gmra.mrb[0].mxu0 %v1099
  %v1135 = vpop.f32.mrb[0].mxu0
  %v1136 = vadd.f32 0.0, %v1135
  %v1137 = vpop.f32.mrb[0].mxu0
  %v1138 = vadd.f32 0.0, %v1137
  %v1139 = vpop.f32.mrb[0].mxu0
  %v1140 = vpop.f32.mrb[0].mxu0
  %1141 = vdwg.mxu0
  %v1142 = vadd.f32 %v1096, %v1136
  %v1143 = vxor.u32 %v1142, 2147483648
  %v1144 = vmul.f32 %v1143, 1.442695
  %v1145 = vpow.pop %v1144
  %v1146 = vadd.f32 %v1145, 1.0
  %v1147 = vrcp.pop %v1146
  %v1148 = vmul.f32 1.0, %v1147
  %v1149 = vadd.f32 %v1138, %v531
  %v1150 = vmul.f32 %v1148, %v1149
  %v1152 = vrot.slane %v1096, 4
  %v1154 = vadd.f32 %v1152, %v1150
  %v1155 = vtanh.pop %v1154
  %v1156 = vsub.f32 1.0, %v1148
  %1158 = vrot.lane.b32.xlu0 %v1155, 64
  %v1159 = vpop.permute.xlu0 %1158
  %v1161 = vmul.f32 %v1156, %v1159
  %1163 = vrot.lane.b32.xlu0 %v1070, 64
  %v1164 = vpop.permute.xlu0 %1163
  %v1166 = vmul.f32 %v1148, %v1164
  %v1167 = vadd.f32 %v1161, %v1166
  %s1168 = scalar_lea.vmem [#allocation3], 32
  %v1169 = vld [vmem:[%s1168] sm:$0xff]
  %v1170 = vpack.c.bf16 %v1088, %v1088
  %v1172 = vsel %vm385, %v1170, 0
  %1174 = vmatprep.subr.bf16.mxu0 %v575
  %1175 = vmatpush1.bf16.msra.mxu0 %v574
  %1176 = vmatprep.subr.bf16.mxu0 %v577
  %1177 = vmatpush1.bf16.msra.mxu0 %v576
  %1178 = vmatprep.subr.bf16.mxu0 %v579
  %1179 = vmatpush1.bf16.msra.mxu0 %v578
  %1180 = vmatprep.subr.bf16.mxu0 %v581
  %1181 = vmatpush1.bf16.msra.mxu0 %v580
  %1182 = vmatprep.subr.bf16.mxu0 0
  %1183 = vmatpush1.bf16.msra.mxu0 0
  %1184 = vmatprep.subr.bf16.mxu0 0
  %1185 = vmatpush1.bf16.msra.mxu0 0
  %1186 = vmatprep.subr.bf16.mxu0 0
  %1187 = vmatpush1.bf16.msra.mxu0 0
  %1188 = vmatprep.subr.bf16.mxu0 0
  %1189 = vmatpush1.bf16.msra.mxu0 0
  %1190 = vmatprep.subr.bf16.mxu0 0
  %1191 = vmatpush1.bf16.msra.mxu0 0
  %1192 = vmatprep.subr.bf16.mxu0 0
  %1193 = vmatpush1.bf16.msra.mxu0 0
  %1194 = vmatprep.subr.bf16.mxu0 0
  %1195 = vmatpush1.bf16.msra.mxu0 0
  %1196 = vmatprep.subr.bf16.mxu0 0
  %1197 = vmatpush1.bf16.msra.mxu0 0
  %1198 = vmatprep.subr.bf16.mxu0 0
  %1199 = vmatpush1.bf16.msra.mxu0 0
  %1200 = vmatprep.subr.bf16.mxu0 0
  %1201 = vmatpush1.bf16.msra.mxu0 0
  %1202 = vmatprep.subr.bf16.mxu0 0
  %1203 = vmatpush1.bf16.msra.mxu0 0
  %1204 = vmatprep.subr.bf16.mxu0 0
  %1205 = vmatpush1.bf16.msra.mxu0 0
  %1206 = vmatprep.mubr.bf16.mxu0 0
  %1207 = vmatmul.mubr.bf16.gmra.mrb[0].mxu0 %v1172
  %v1208 = vpop.f32.mrb[0].mxu0
  %v1209 = vadd.f32 0.0, %v1208
  %v1210 = vpop.f32.mrb[0].mxu0
  %v1211 = vadd.f32 0.0, %v1210
  %v1212 = vpop.f32.mrb[0].mxu0
  %v1213 = vpop.f32.mrb[0].mxu0
  %1214 = vdwg.mxu0
  %v1215 = vadd.f32 %v1169, %v1209
  %v1216 = vxor.u32 %v1215, 2147483648
  %v1217 = vmul.f32 %v1216, 1.442695
  %v1218 = vpow.pop %v1217
  %v1219 = vadd.f32 %v1218, 1.0
  %v1220 = vrcp.pop %v1219
  %v1221 = vmul.f32 1.0, %v1220
  %v1222 = vadd.f32 %v1211, %v642
  %v1223 = vmul.f32 %v1221, %v1222
  %v1225 = vrot.slane %v1169, 4
  %v1227 = vadd.f32 %v1225, %v1223
  %v1228 = vtanh.pop %v1227
  %v1229 = vsub.f32 1.0, %v1221
  %1231 = vrot.lane.b32.xlu0 %v1228, 64
  %v1232 = vpop.permute.xlu0 %1231
  %v1234 = vmul.f32 %v1229, %v1232
  %1236 = vrot.lane.b32.xlu0 %v1088, 64
  %v1237 = vpop.permute.xlu0 %1236
  %v1239 = vmul.f32 %v1221, %v1237
  %v1240 = vadd.f32 %v1234, %v1239
  %vm1241 = vcmp.gt.s32.totalorder %v30, 3
  %v1242 = vsel %vm1241, 1, 0
  %v1243 = vcvt.s32.f32 %v1242
  %vm1244 = vcmp.gt.s32.totalorder %v30, 4
  %v1245 = vsel %vm1244, 1, 0
  %v1246 = vcvt.s32.f32 %v1245
  %1248 = vset.pattern.permute.xlu0 0
  %1249 = vperm.xlu0 %1248, %v1243
  %v1250 = vpop.permute.xlu0 %1249
  %1253 = vrot.lane.b32.xlu0 %v1167, 64
  %v1254 = vpop.permute.xlu0 %1253
  %v1256 = vmul.f32 %v1250, %v1254
  %v1257 = vsub.f32 1.0, %v1243
  %1259 = vset.pattern.permute.xlu0 0
  %1260 = vperm.xlu0 %1259, %v1257
  %v1261 = vpop.permute.xlu0 %1260
  %v1263 = vmul.f32 %v1261, %v1070
  %v1264 = vadd.f32 %v1256, %v1263
  %1266 = vset.pattern.permute.xlu0 0
  %1267 = vperm.xlu0 %1266, %v1246
  %v1268 = vpop.permute.xlu0 %1267
  %1271 = vrot.lane.b32.xlu0 %v1240, 64
  %v1272 = vpop.permute.xlu0 %1271
  %v1274 = vmul.f32 %v1268, %v1272
  %v1275 = vsub.f32 1.0, %v1246
  %1277 = vset.pattern.permute.xlu0 0
  %1278 = vperm.xlu0 %1277, %v1275
  %v1279 = vpop.permute.xlu0 %1278
  %v1281 = vmul.f32 %v1279, %v1088
  %v1282 = vadd.f32 %v1274, %v1281
  %v1283 = vmul.f32 %v1264, %v1250
  %s1284 = scalar_lea.vmem [#allocation4], 12
  %1285 = vst.msk [vmem:[%s1284] sm:$0xf] %vm702, %v1283
  %v1286 = vmul.f32 %v1282, %v1268
  %s1287 = scalar_lea.vmem [#allocation5], 16
  %1288 = vst.msk [vmem:[%s1287] sm:$0xf] %vm702, %v1286
  %s1289 = scalar_lea.vmem [#allocation2], 32
  %v1290 = vld [vmem:[%s1289] sm:$0xff]
  %v1291 = vpack.c.bf16 %v1264, %v1264
  %v1293 = vsel %vm385, %v1291, 0
  %1295 = vmatprep.subr.bf16.mxu0 %v461
  %1296 = vmatpush1.bf16.msra.mxu0 %v460
  %1297 = vmatprep.subr.bf16.mxu0 %v463
  %1298 = vmatpush1.bf16.msra.mxu0 %v462
  %1299 = vmatprep.subr.bf16.mxu0 %v465
  %1300 = vmatpush1.bf16.msra.mxu0 %v464
  %1301 = vmatprep.subr.bf16.mxu0 %v467
  %1302 = vmatpush1.bf16.msra.mxu0 %v466
  %1303 = vmatprep.subr.bf16.mxu0 0
  %1304 = vmatpush1.bf16.msra.mxu0 0
  %1305 = vmatprep.subr.bf16.mxu0 0
  %1306 = vmatpush1.bf16.msra.mxu0 0
  %1307 = vmatprep.subr.bf16.mxu0 0
  %1308 = vmatpush1.bf16.msra.mxu0 0
  %1309 = vmatprep.subr.bf16.mxu0 0
  %1310 = vmatpush1.bf16.msra.mxu0 0
  %1311 = vmatprep.subr.bf16.mxu0 0
  %1312 = vmatpush1.bf16.msra.mxu0 0
  %1313 = vmatprep.subr.bf16.mxu0 0
  %1314 = vmatpush1.bf16.msra.mxu0 0
  %1315 = vmatprep.subr.bf16.mxu0 0
  %1316 = vmatpush1.bf16.msra.mxu0 0
  %1317 = vmatprep.subr.bf16.mxu0 0
  %1318 = vmatpush1.bf16.msra.mxu0 0
  %1319 = vmatprep.subr.bf16.mxu0 0
  %1320 = vmatpush1.bf16.msra.mxu0 0
  %1321 = vmatprep.subr.bf16.mxu0 0
  %1322 = vmatpush1.bf16.msra.mxu0 0
  %1323 = vmatprep.subr.bf16.mxu0 0
  %1324 = vmatpush1.bf16.msra.mxu0 0
  %1325 = vmatprep.subr.bf16.mxu0 0
  %1326 = vmatpush1.bf16.msra.mxu0 0
  %1327 = vmatprep.mubr.bf16.mxu0 0
  %1328 = vmatmul.mubr.bf16.gmra.mrb[0].mxu0 %v1293
  %v1329 = vpop.f32.mrb[0].mxu0
  %v1330 = vadd.f32 0.0, %v1329
  %v1331 = vpop.f32.mrb[0].mxu0
  %v1332 = vadd.f32 0.0, %v1331
  %v1333 = vpop.f32.mrb[0].mxu0
  %v1334 = vpop.f32.mrb[0].mxu0
  %1335 = vdwg.mxu0
  %v1336 = vadd.f32 %v1290, %v1330
  %v1337 = vxor.u32 %v1336, 2147483648
  %v1338 = vmul.f32 %v1337, 1.442695
  %v1339 = vpow.pop %v1338
  %v1340 = vadd.f32 %v1339, 1.0
  %v1341 = vrcp.pop %v1340
  %v1342 = vmul.f32 1.0, %v1341
  %v1343 = vadd.f32 %v1332, %v531
  %v1344 = vmul.f32 %v1342, %v1343
  %v1346 = vrot.slane %v1290, 4
  %v1348 = vadd.f32 %v1346, %v1344
  %v1349 = vtanh.pop %v1348
  %v1350 = vsub.f32 1.0, %v1342
  %1352 = vrot.lane.b32.xlu0 %v1349, 64
  %v1353 = vpop.permute.xlu0 %1352
  %v1355 = vmul.f32 %v1350, %v1353
  %1357 = vrot.lane.b32.xlu0 %v1264, 64
  %v1358 = vpop.permute.xlu0 %1357
  %v1360 = vmul.f32 %v1342, %v1358
  %v1361 = vadd.f32 %v1355, %v1360
  %s1362 = scalar_lea.vmem [#allocation3], 24
  %v1363 = vld [vmem:[%s1362] sm:$0xff]
  %v1364 = vpack.c.bf16 %v1282, %v1282
  %v1366 = vsel %vm385, %v1364, 0
  %1368 = vmatprep.subr.bf16.mxu0 %v575
  %1369 = vmatpush1.bf16.msra.mxu0 %v574
  %1370 = vmatprep.subr.bf16.mxu0 %v577
  %1371 = vmatpush1.bf16.msra.mxu0 %v576
  %1372 = vmatprep.subr.bf16.mxu0 %v579
  %1373 = vmatpush1.bf16.msra.mxu0 %v578
  %1374 = vmatprep.subr.bf16.mxu0 %v581
  %1375 = vmatpush1.bf16.msra.mxu0 %v580
  %1376 = vmatprep.subr.bf16.mxu0 0
  %1377 = vmatpush1.bf16.msra.mxu0 0
  %1378 = vmatprep.subr.bf16.mxu0 0
  %1379 = vmatpush1.bf16.msra.mxu0 0
  %1380 = vmatprep.subr.bf16.mxu0 0
  %1381 = vmatpush1.bf16.msra.mxu0 0
  %1382 = vmatprep.subr.bf16.mxu0 0
  %1383 = vmatpush1.bf16.msra.mxu0 0
  %1384 = vmatprep.subr.bf16.mxu0 0
  %1385 = vmatpush1.bf16.msra.mxu0 0
  %1386 = vmatprep.subr.bf16.mxu0 0
  %1387 = vmatpush1.bf16.msra.mxu0 0
  %1388 = vmatprep.subr.bf16.mxu0 0
  %1389 = vmatpush1.bf16.msra.mxu0 0
  %1390 = vmatprep.subr.bf16.mxu0 0
  %1391 = vmatpush1.bf16.msra.mxu0 0
  %1392 = vmatprep.subr.bf16.mxu0 0
  %1393 = vmatpush1.bf16.msra.mxu0 0
  %1394 = vmatprep.subr.bf16.mxu0 0
  %1395 = vmatpush1.bf16.msra.mxu0 0
  %1396 = vmatprep.subr.bf16.mxu0 0
  %1397 = vmatpush1.bf16.msra.mxu0 0
  %1398 = vmatprep.subr.bf16.mxu0 0
  %1399 = vmatpush1.bf16.msra.mxu0 0
  %1400 = vmatprep.mubr.bf16.mxu0 0
  %1401 = vmatmul.mubr.bf16.gmra.mrb[0].mxu0 %v1366
  %v1402 = vpop.f32.mrb[0].mxu0
  %v1403 = vadd.f32 0.0, %v1402
  %v1404 = vpop.f32.mrb[0].mxu0
  %v1405 = vadd.f32 0.0, %v1404
  %v1406 = vpop.f32.mrb[0].mxu0
  %v1407 = vpop.f32.mrb[0].mxu0
  %1408 = vdwg.mxu0
  %v1409 = vadd.f32 %v1363, %v1403
  %v1410 = vxor.u32 %v1409, 2147483648
  %v1411 = vmul.f32 %v1410, 1.442695
  %v1412 = vpow.pop %v1411
  %v1413 = vadd.f32 %v1412, 1.0
  %v1414 = vrcp.pop %v1413
  %v1415 = vmul.f32 1.0, %v1414
  %v1416 = vadd.f32 %v1405, %v642
  %v1417 = vmul.f32 %v1415, %v1416
  %v1419 = vrot.slane %v1363, 4
  %v1421 = vadd.f32 %v1419, %v1417
  %v1422 = vtanh.pop %v1421
  %v1423 = vsub.f32 1.0, %v1415
  %1425 = vrot.lane.b32.xlu0 %v1422, 64
  %v1426 = vpop.permute.xlu0 %1425
  %v1428 = vmul.f32 %v1423, %v1426
  %1430 = vrot.lane.b32.xlu0 %v1282, 64
  %v1431 = vpop.permute.xlu0 %1430
  %v1433 = vmul.f32 %v1415, %v1431
  %v1434 = vadd.f32 %v1428, %v1433
  %1436 = vrot.lane.b32.xlu0 %v1361, 64
  %v1437 = vpop.permute.xlu0 %1436
  %v1439 = vmul.f32 %v1268, %v1437
  %v1440 = vmul.f32 %v1279, %v1264
  %v1441 = vadd.f32 %v1439, %v1440
  %1443 = vrot.lane.b32.xlu0 %v1434, 64
  %v1444 = vpop.permute.xlu0 %1443
  %v1446 = vmul.f32 %v1250, %v1444
  %v1447 = vmul.f32 %v1261, %v1282
  %v1448 = vadd.f32 %v1446, %v1447
  %v1449 = vmul.f32 %v1441, %v1268
  %s1450 = scalar_lea.vmem [#allocation4], 16
  %1451 = vst.msk [vmem:[%s1450] sm:$0xf] %vm702, %v1449
  %v1452 = vmul.f32 %v1448, %v1250
  %s1453 = scalar_lea.vmem [#allocation5], 12
  %1454 = vst.msk [vmem:[%s1453] sm:$0xf] %vm702, %v1452
  %s1455 = scalar_lea.vmem [#allocation2], 40
  %v1456 = vld [vmem:[%s1455] sm:$0xff]
  %v1457 = vpack.c.bf16 %v1441, %v1441
  %v1459 = vsel %vm385, %v1457, 0
  %1461 = vmatprep.subr.bf16.mxu0 %v461
  %1462 = vmatpush1.bf16.msra.mxu0 %v460
  %1463 = vmatprep.subr.bf16.mxu0 %v463
  %1464 = vmatpush1.bf16.msra.mxu0 %v462
  %1465 = vmatprep.subr.bf16.mxu0 %v465
  %1466 = vmatpush1.bf16.msra.mxu0 %v464
  %1467 = vmatprep.subr.bf16.mxu0 %v467
  %1468 = vmatpush1.bf16.msra.mxu0 %v466
  %1469 = vmatprep.subr.bf16.mxu0 0
  %1470 = vmatpush1.bf16.msra.mxu0 0
  %1471 = vmatprep.subr.bf16.mxu0 0
  %1472 = vmatpush1.bf16.msra.mxu0 0
  %1473 = vmatprep.subr.bf16.mxu0 0
  %1474 = vmatpush1.bf16.msra.mxu0 0
  %1475 = vmatprep.subr.bf16.mxu0 0
  %1476 = vmatpush1.bf16.msra.mxu0 0
  %1477 = vmatprep.subr.bf16.mxu0 0
  %1478 = vmatpush1.bf16.msra.mxu0 0
  %1479 = vmatprep.subr.bf16.mxu0 0
  %1480 = vmatpush1.bf16.msra.mxu0 0
  %1481 = vmatprep.subr.bf16.mxu0 0
  %1482 = vmatpush1.bf16.msra.mxu0 0
  %1483 = vmatprep.subr.bf16.mxu0 0
  %1484 = vmatpush1.bf16.msra.mxu0 0
  %1485 = vmatprep.subr.bf16.mxu0 0
  %1486 = vmatpush1.bf16.msra.mxu0 0
  %1487 = vmatprep.subr.bf16.mxu0 0
  %1488 = vmatpush1.bf16.msra.mxu0 0
  %1489 = vmatprep.subr.bf16.mxu0 0
  %1490 = vmatpush1.bf16.msra.mxu0 0
  %1491 = vmatprep.subr.bf16.mxu0 0
  %1492 = vmatpush1.bf16.msra.mxu0 0
  %1493 = vmatprep.mubr.bf16.mxu0 0
  %1494 = vmatmul.mubr.bf16.gmra.mrb[0].mxu0 %v1459
  %v1495 = vpop.f32.mrb[0].mxu0
  %v1496 = vadd.f32 0.0, %v1495
  %v1497 = vpop.f32.mrb[0].mxu0
  %v1498 = vadd.f32 0.0, %v1497
  %v1499 = vpop.f32.mrb[0].mxu0
  %v1500 = vpop.f32.mrb[0].mxu0
  %1501 = vdwg.mxu0
  %v1502 = vadd.f32 %v1456, %v1496
  %v1503 = vxor.u32 %v1502, 2147483648
  %v1504 = vmul.f32 %v1503, 1.442695
  %v1505 = vpow.pop %v1504
  %v1506 = vadd.f32 %v1505, 1.0
  %v1507 = vrcp.pop %v1506
  %v1508 = vmul.f32 1.0, %v1507
  %v1509 = vadd.f32 %v1498, %v531
  %v1510 = vmul.f32 %v1508, %v1509
  %v1512 = vrot.slane %v1456, 4
  %v1514 = vadd.f32 %v1512, %v1510
  %v1515 = vtanh.pop %v1514
  %v1516 = vsub.f32 1.0, %v1508
  %1518 = vrot.lane.b32.xlu0 %v1515, 64
  %v1519 = vpop.permute.xlu0 %1518
  %v1521 = vmul.f32 %v1516, %v1519
  %1523 = vrot.lane.b32.xlu0 %v1441, 64
  %v1524 = vpop.permute.xlu0 %1523
  %v1526 = vmul.f32 %v1508, %v1524
  %v1527 = vadd.f32 %v1521, %v1526
  %s1528 = scalar_lea.vmem [#allocation3], 16
  %v1529 = vld [vmem:[%s1528] sm:$0xff]
  %v1530 = vpack.c.bf16 %v1448, %v1448
  %v1532 = vsel %vm385, %v1530, 0
  %1534 = vmatprep.subr.bf16.mxu0 %v575
  %1535 = vmatpush1.bf16.msra.mxu0 %v574
  %1536 = vmatprep.subr.bf16.mxu0 %v577
  %1537 = vmatpush1.bf16.msra.mxu0 %v576
  %1538 = vmatprep.subr.bf16.mxu0 %v579
  %1539 = vmatpush1.bf16.msra.mxu0 %v578
  %1540 = vmatprep.subr.bf16.mxu0 %v581
  %1541 = vmatpush1.bf16.msra.mxu0 %v580
  %1542 = vmatprep.subr.bf16.mxu0 0
  %1543 = vmatpush1.bf16.msra.mxu0 0
  %1544 = vmatprep.subr.bf16.mxu0 0
  %1545 = vmatpush1.bf16.msra.mxu0 0
  %1546 = vmatprep.subr.bf16.mxu0 0
  %1547 = vmatpush1.bf16.msra.mxu0 0
  %1548 = vmatprep.subr.bf16.mxu0 0
  %1549 = vmatpush1.bf16.msra.mxu0 0
  %1550 = vmatprep.subr.bf16.mxu0 0
  %1551 = vmatpush1.bf16.msra.mxu0 0
  %1552 = vmatprep.subr.bf16.mxu0 0
  %1553 = vmatpush1.bf16.msra.mxu0 0
  %1554 = vmatprep.subr.bf16.mxu0 0
  %1555 = vmatpush1.bf16.msra.mxu0 0
  %1556 = vmatprep.subr.bf16.mxu0 0
  %1557 = vmatpush1.bf16.msra.mxu0 0
  %1558 = vmatprep.subr.bf16.mxu0 0
  %1559 = vmatpush1.bf16.msra.mxu0 0
  %1560 = vmatprep.subr.bf16.mxu0 0
  %1561 = vmatpush1.bf16.msra.mxu0 0
  %1562 = vmatprep.subr.bf16.mxu0 0
  %1563 = vmatpush1.bf16.msra.mxu0 0
  %1564 = vmatprep.subr.bf16.mxu0 0
  %1565 = vmatpush1.bf16.msra.mxu0 0
  %1566 = vmatprep.mubr.bf16.mxu0 0
  %1567 = vmatmul.mubr.bf16.gmra.mrb[0].mxu0 %v1532
  %v1568 = vpop.f32.mrb[0].mxu0
  %v1569 = vadd.f32 0.0, %v1568
  %v1570 = vpop.f32.mrb[0].mxu0
  %v1571 = vadd.f32 0.0, %v1570
  %v1572 = vpop.f32.mrb[0].mxu0
  %v1573 = vpop.f32.mrb[0].mxu0
  %1574 = vdwg.mxu0
  %v1575 = vadd.f32 %v1529, %v1569
  %v1576 = vxor.u32 %v1575, 2147483648
  %v1577 = vmul.f32 %v1576, 1.442695
  %v1578 = vpow.pop %v1577
  %v1579 = vadd.f32 %v1578, 1.0
  %v1580 = vrcp.pop %v1579
  %v1581 = vmul.f32 1.0, %v1580
  %v1582 = vadd.f32 %v1571, %v642
  %v1583 = vmul.f32 %v1581, %v1582
  %v1585 = vrot.slane %v1529, 4
  %v1587 = vadd.f32 %v1585, %v1583
  %v1588 = vtanh.pop %v1587
  %v1589 = vsub.f32 1.0, %v1581
  %1591 = vrot.lane.b32.xlu0 %v1588, 64
  %v1592 = vpop.permute.xlu0 %1591
  %v1594 = vmul.f32 %v1589, %v1592
  %1596 = vrot.lane.b32.xlu0 %v1448, 64
  %v1597 = vpop.permute.xlu0 %1596
  %v1599 = vmul.f32 %v1581, %v1597
  %v1600 = vadd.f32 %v1594, %v1599
  %1602 = vrot.lane.b32.xlu0 %v1527, 64
  %v1603 = vpop.permute.xlu0 %1602
  %v1605 = vmul.f32 %v1074, %v1603
  %v1606 = vmul.f32 %v1085, %v1441
  %v1607 = vadd.f32 %v1605, %v1606
  %1609 = vrot.lane.b32.xlu0 %v1600, 64
  %v1610 = vpop.permute.xlu0 %1609
  %v1612 = vmul.f32 %v1056, %v1610
  %v1613 = vmul.f32 %v1067, %v1448
  %v1614 = vadd.f32 %v1612, %v1613
  %v1615 = vmul.f32 %v1607, %v1074
  %s1616 = scalar_lea.vmem [#allocation4], 20
  %1617 = vst.msk [vmem:[%s1616] sm:$0xf] %vm702, %v1615
  %v1618 = vmul.f32 %v1614, %v1056
  %s1619 = scalar_lea.vmem [#allocation5], 8
  %1620 = vst.msk [vmem:[%s1619] sm:$0xf] %vm702, %v1618
  %s1621 = scalar_lea.vmem [#allocation2], 48
  %v1622 = vld [vmem:[%s1621] sm:$0xff]
  %v1623 = vpack.c.bf16 %v1607, %v1607
  %v1625 = vsel %vm385, %v1623, 0
  %1627 = vmatprep.subr.bf16.mxu0 %v461
  %1628 = vmatpush1.bf16.msra.mxu0 %v460
  %1629 = vmatprep.subr.bf16.mxu0 %v463
  %1630 = vmatpush1.bf16.msra.mxu0 %v462
  %1631 = vmatprep.subr.bf16.mxu0 %v465
  %1632 = vmatpush1.bf16.msra.mxu0 %v464
  %1633 = vmatprep.subr.bf16.mxu0 %v467
  %1634 = vmatpush1.bf16.msra.mxu0 %v466
  %1635 = vmatprep.subr.bf16.mxu0 0
  %1636 = vmatpush1.bf16.msra.mxu0 0
  %1637 = vmatprep.subr.bf16.mxu0 0
  %1638 = vmatpush1.bf16.msra.mxu0 0
  %1639 = vmatprep.subr.bf16.mxu0 0
  %1640 = vmatpush1.bf16.msra.mxu0 0
  %1641 = vmatprep.subr.bf16.mxu0 0
  %1642 = vmatpush1.bf16.msra.mxu0 0
  %1643 = vmatprep.subr.bf16.mxu0 0
  %1644 = vmatpush1.bf16.msra.mxu0 0
  %1645 = vmatprep.subr.bf16.mxu0 0
  %1646 = vmatpush1.bf16.msra.mxu0 0
  %1647 = vmatprep.subr.bf16.mxu0 0
  %1648 = vmatpush1.bf16.msra.mxu0 0
  %1649 = vmatprep.subr.bf16.mxu0 0
  %1650 = vmatpush1.bf16.msra.mxu0 0
  %1651 = vmatprep.subr.bf16.mxu0 0
  %1652 = vmatpush1.bf16.msra.mxu0 0
  %1653 = vmatprep.subr.bf16.mxu0 0
  %1654 = vmatpush1.bf16.msra.mxu0 0
  %1655 = vmatprep.subr.bf16.mxu0 0
  %1656 = vmatpush1.bf16.msra.mxu0 0
  %1657 = vmatprep.subr.bf16.mxu0 0
  %1658 = vmatpush1.bf16.msra.mxu0 0
  %1659 = vmatprep.mubr.bf16.mxu0 0
  %1660 = vmatmul.mubr.bf16.gmra.mrb[0].mxu0 %v1625
  %v1661 = vpop.f32.mrb[0].mxu0
  %v1662 = vadd.f32 0.0, %v1661
  %v1663 = vpop.f32.mrb[0].mxu0
  %v1664 = vadd.f32 0.0, %v1663
  %v1665 = vpop.f32.mrb[0].mxu0
  %v1666 = vpop.f32.mrb[0].mxu0
  %1667 = vdwg.mxu0
  %v1668 = vadd.f32 %v1622, %v1662
  %v1669 = vxor.u32 %v1668, 2147483648
  %v1670 = vmul.f32 %v1669, 1.442695
  %v1671 = vpow.pop %v1670
  %v1672 = vadd.f32 %v1671, 1.0
  %v1673 = vrcp.pop %v1672
  %v1674 = vmul.f32 1.0, %v1673
  %v1675 = vadd.f32 %v1664, %v531
  %v1676 = vmul.f32 %v1674, %v1675
  %v1678 = vrot.slane %v1622, 4
  %v1680 = vadd.f32 %v1678, %v1676
  %v1681 = vtanh.pop %v1680
  %v1682 = vsub.f32 1.0, %v1674
  %1684 = vrot.lane.b32.xlu0 %v1681, 64
  %v1685 = vpop.permute.xlu0 %1684
  %v1687 = vmul.f32 %v1682, %v1685
  %1689 = vrot.lane.b32.xlu0 %v1607, 64
  %v1690 = vpop.permute.xlu0 %1689
  %v1692 = vmul.f32 %v1674, %v1690
  %v1693 = vadd.f32 %v1687, %v1692
  %s1694 = scalar_lea.vmem [#allocation3], 8
  %v1695 = vld [vmem:[%s1694] sm:$0xff]
  %v1696 = vpack.c.bf16 %v1614, %v1614
  %v1698 = vsel %vm385, %v1696, 0
  %1700 = vmatprep.subr.bf16.mxu0 %v575
  %1701 = vmatpush1.bf16.msra.mxu0 %v574
  %1702 = vmatprep.subr.bf16.mxu0 %v577
  %1703 = vmatpush1.bf16.msra.mxu0 %v576
  %1704 = vmatprep.subr.bf16.mxu0 %v579
  %1705 = vmatpush1.bf16.msra.mxu0 %v578
  %1706 = vmatprep.subr.bf16.mxu0 %v581
  %1707 = vmatpush1.bf16.msra.mxu0 %v580
  %1708 = vmatprep.subr.bf16.mxu0 0
  %1709 = vmatpush1.bf16.msra.mxu0 0
  %1710 = vmatprep.subr.bf16.mxu0 0
  %1711 = vmatpush1.bf16.msra.mxu0 0
  %1712 = vmatprep.subr.bf16.mxu0 0
  %1713 = vmatpush1.bf16.msra.mxu0 0
  %1714 = vmatprep.subr.bf16.mxu0 0
  %1715 = vmatpush1.bf16.msra.mxu0 0
  %1716 = vmatprep.subr.bf16.mxu0 0
  %1717 = vmatpush1.bf16.msra.mxu0 0
  %1718 = vmatprep.subr.bf16.mxu0 0
  %1719 = vmatpush1.bf16.msra.mxu0 0
  %1720 = vmatprep.subr.bf16.mxu0 0
  %1721 = vmatpush1.bf16.msra.mxu0 0
  %1722 = vmatprep.subr.bf16.mxu0 0
  %1723 = vmatpush1.bf16.msra.mxu0 0
  %1724 = vmatprep.subr.bf16.mxu0 0
  %1725 = vmatpush1.bf16.msra.mxu0 0
  %1726 = vmatprep.subr.bf16.mxu0 0
  %1727 = vmatpush1.bf16.msra.mxu0 0
  %1728 = vmatprep.subr.bf16.mxu0 0
  %1729 = vmatpush1.bf16.msra.mxu0 0
  %1730 = vmatprep.subr.bf16.mxu0 0
  %1731 = vmatpush1.bf16.msra.mxu0 0
  %1732 = vmatprep.mubr.bf16.mxu0 0
  %1733 = vmatmul.mubr.bf16.gmra.mrb[0].mxu0 %v1698
  %v1734 = vpop.f32.mrb[0].mxu0
  %v1735 = vadd.f32 0.0, %v1734
  %v1736 = vpop.f32.mrb[0].mxu0
  %v1737 = vadd.f32 0.0, %v1736
  %v1738 = vpop.f32.mrb[0].mxu0
  %v1739 = vpop.f32.mrb[0].mxu0
  %1740 = vdwg.mxu0
  %v1741 = vadd.f32 %v1695, %v1735
  %v1742 = vxor.u32 %v1741, 2147483648
  %v1743 = vmul.f32 %v1742, 1.442695
  %v1744 = vpow.pop %v1743
  %v1745 = vadd.f32 %v1744, 1.0
  %v1746 = vrcp.pop %v1745
  %v1747 = vmul.f32 1.0, %v1746
  %v1748 = vadd.f32 %v1737, %v642
  %v1749 = vmul.f32 %v1747, %v1748
  %v1751 = vrot.slane %v1695, 4
  %v1753 = vadd.f32 %v1751, %v1749
  %v1754 = vtanh.pop %v1753
  %v1755 = vsub.f32 1.0, %v1747
  %1757 = vrot.lane.b32.xlu0 %v1754, 64
  %v1758 = vpop.permute.xlu0 %1757
  %v1760 = vmul.f32 %v1755, %v1758
  %1762 = vrot.lane.b32.xlu0 %v1614, 64
  %v1763 = vpop.permute.xlu0 %1762
  %v1765 = vmul.f32 %v1747, %v1763
  %v1766 = vadd.f32 %v1760, %v1765
  %1768 = vrot.lane.b32.xlu0 %v1693, 64
  %v1769 = vpop.permute.xlu0 %1768
  %v1771 = vmul.f32 %v880, %v1769
  %v1772 = vmul.f32 %v891, %v1607
  %v1773 = vadd.f32 %v1771, %v1772
  %1775 = vrot.lane.b32.xlu0 %v1766, 64
  %v1776 = vpop.permute.xlu0 %1775
  %v1778 = vmul.f32 %v862, %v1776
  %v1779 = vmul.f32 %v873, %v1614
  %v1780 = vadd.f32 %v1778, %v1779
  %v1781 = vmul.f32 %v1773, %v880
  %s1782 = scalar_lea.vmem [#allocation4], 24
  %1783 = vst.msk [vmem:[%s1782] sm:$0xf] %vm702, %v1781
  %v1784 = vmul.f32 %v1780, %v862
  %s1785 = scalar_lea.vmem [#allocation5], 4
  %1786 = vst.msk [vmem:[%s1785] sm:$0xf] %vm702, %v1784
  %s1787 = scalar_lea.vmem [#allocation2], 56
  %v1788 = vld [vmem:[%s1787] sm:$0xff]
  %v1789 = vpack.c.bf16 %v1773, %v1773
  %v1791 = vsel %vm385, %v1789, 0
  %1793 = vmatprep.subr.bf16.mxu0 %v461
  %1794 = vmatpush1.bf16.msra.mxu0 %v460
  %1795 = vmatprep.subr.bf16.mxu0 %v463
  %1796 = vmatpush1.bf16.msra.mxu0 %v462
  %1797 = vmatprep.subr.bf16.mxu0 %v465
  %1798 = vmatpush1.bf16.msra.mxu0 %v464
  %1799 = vmatprep.subr.bf16.mxu0 %v467
  %1800 = vmatpush1.bf16.msra.mxu0 %v466
  %1801 = vmatprep.subr.bf16.mxu0 0
  %1802 = vmatpush1.bf16.msra.mxu0 0
  %1803 = vmatprep.subr.bf16.mxu0 0
  %1804 = vmatpush1.bf16.msra.mxu0 0
  %1805 = vmatprep.subr.bf16.mxu0 0
  %1806 = vmatpush1.bf16.msra.mxu0 0
  %1807 = vmatprep.subr.bf16.mxu0 0
  %1808 = vmatpush1.bf16.msra.mxu0 0
  %1809 = vmatprep.subr.bf16.mxu0 0
  %1810 = vmatpush1.bf16.msra.mxu0 0
  %1811 = vmatprep.subr.bf16.mxu0 0
  %1812 = vmatpush1.bf16.msra.mxu0 0
  %1813 = vmatprep.subr.bf16.mxu0 0
  %1814 = vmatpush1.bf16.msra.mxu0 0
  %1815 = vmatprep.subr.bf16.mxu0 0
  %1816 = vmatpush1.bf16.msra.mxu0 0
  %1817 = vmatprep.subr.bf16.mxu0 0
  %1818 = vmatpush1.bf16.msra.mxu0 0
  %1819 = vmatprep.subr.bf16.mxu0 0
  %1820 = vmatpush1.bf16.msra.mxu0 0
  %1821 = vmatprep.subr.bf16.mxu0 0
  %1822 = vmatpush1.bf16.msra.mxu0 0
  %1823 = vmatprep.subr.bf16.mxu0 0
  %1824 = vmatpush1.bf16.msra.mxu0 0
  %1825 = vmatprep.mubr.bf16.mxu0 0
  %1826 = vmatmul.mubr.bf16.gmra.mrb[0].mxu0 %v1791
  %v1827 = vpop.f32.mrb[0].mxu0
  %v1828 = vadd.f32 0.0, %v1827
  %v1829 = vpop.f32.mrb[0].mxu0
  %v1830 = vadd.f32 0.0, %v1829
  %v1831 = vpop.f32.mrb[0].mxu0
  %v1832 = vpop.f32.mrb[0].mxu0
  %1833 = vdwg.mxu0
  %v1834 = vadd.f32 %v1788, %v1828
  %v1835 = vxor.u32 %v1834, 2147483648
  %v1836 = vmul.f32 %v1835, 1.442695
  %v1837 = vpow.pop %v1836
  %v1838 = vadd.f32 %v1837, 1.0
  %v1839 = vrcp.pop %v1838
  %v1840 = vmul.f32 1.0, %v1839
  %v1841 = vadd.f32 %v1830, %v531
  %v1842 = vmul.f32 %v1840, %v1841
  %v1844 = vrot.slane %v1788, 4
  %v1846 = vadd.f32 %v1844, %v1842
  %v1847 = vtanh.pop %v1846
  %v1848 = vsub.f32 1.0, %v1840
  %1850 = vrot.lane.b32.xlu0 %v1847, 64
  %v1851 = vpop.permute.xlu0 %1850
  %v1853 = vmul.f32 %v1848, %v1851
  %1855 = vrot.lane.b32.xlu0 %v1773, 64
  %v1856 = vpop.permute.xlu0 %1855
  %v1858 = vmul.f32 %v1840, %v1856
  %v1859 = vadd.f32 %v1853, %v1858
  %v1860 = vld [vmem:[#allocation3] sm:$0xff]
  %v1861 = vpack.c.bf16 %v1780, %v1780
  %v1863 = vsel %vm385, %v1861, 0
  %1865 = vmatprep.subr.bf16.mxu0 %v575
  %1866 = vmatpush1.bf16.msra.mxu0 %v574
  %1867 = vmatprep.subr.bf16.mxu0 %v577
  %1868 = vmatpush1.bf16.msra.mxu0 %v576
  %1869 = vmatprep.subr.bf16.mxu0 %v579
  %1870 = vmatpush1.bf16.msra.mxu0 %v578
  %1871 = vmatprep.subr.bf16.mxu0 %v581
  %1872 = vmatpush1.bf16.msra.mxu0 %v580
  %1873 = vmatprep.subr.bf16.mxu0 0
  %1874 = vmatpush1.bf16.msra.mxu0 0
  %1875 = vmatprep.subr.bf16.mxu0 0
  %1876 = vmatpush1.bf16.msra.mxu0 0
  %1877 = vmatprep.subr.bf16.mxu0 0
  %1878 = vmatpush1.bf16.msra.mxu0 0
  %1879 = vmatprep.subr.bf16.mxu0 0
  %1880 = vmatpush1.bf16.msra.mxu0 0
  %1881 = vmatprep.subr.bf16.mxu0 0
  %1882 = vmatpush1.bf16.msra.mxu0 0
  %1883 = vmatprep.subr.bf16.mxu0 0
  %1884 = vmatpush1.bf16.msra.mxu0 0
  %1885 = vmatprep.subr.bf16.mxu0 0
  %1886 = vmatpush1.bf16.msra.mxu0 0
  %1887 = vmatprep.subr.bf16.mxu0 0
  %1888 = vmatpush1.bf16.msra.mxu0 0
  %1889 = vmatprep.subr.bf16.mxu0 0
  %1890 = vmatpush1.bf16.msra.mxu0 0
  %1891 = vmatprep.subr.bf16.mxu0 0
  %1892 = vmatpush1.bf16.msra.mxu0 0
  %1893 = vmatprep.subr.bf16.mxu0 0
  %1894 = vmatpush1.bf16.msra.mxu0 0
  %1895 = vmatprep.subr.bf16.mxu0 0
  %1896 = vmatpush1.bf16.msra.mxu0 0
  %1897 = vmatprep.mubr.bf16.mxu0 0
  %1898 = vmatmul.mubr.bf16.gmra.mrb[0].mxu0 %v1863
  %v1899 = vpop.f32.mrb[0].mxu0
  %v1900 = vadd.f32 0.0, %v1899
  %v1901 = vpop.f32.mrb[0].mxu0
  %v1902 = vadd.f32 0.0, %v1901
  %v1903 = vpop.f32.mrb[0].mxu0
  %v1904 = vpop.f32.mrb[0].mxu0
  %1905 = vdwg.mxu0
  %v1906 = vadd.f32 %v1860, %v1900
  %v1907 = vxor.u32 %v1906, 2147483648
  %v1908 = vmul.f32 %v1907, 1.442695
  %v1909 = vpow.pop %v1908
  %v1910 = vadd.f32 %v1909, 1.0
  %v1911 = vrcp.pop %v1910
  %v1912 = vmul.f32 1.0, %v1911
  %v1913 = vadd.f32 %v1902, %v642
  %v1914 = vmul.f32 %v1912, %v1913
  %v1916 = vrot.slane %v1860, 4
  %v1918 = vadd.f32 %v1916, %v1914
  %v1919 = vtanh.pop %v1918
  %v1920 = vsub.f32 1.0, %v1912
  %1922 = vrot.lane.b32.xlu0 %v1919, 64
  %v1923 = vpop.permute.xlu0 %1922
  %v1925 = vmul.f32 %v1920, %v1923
  %1927 = vrot.lane.b32.xlu0 %v1780, 64
  %v1928 = vpop.permute.xlu0 %1927
  %v1930 = vmul.f32 %v1912, %v1928
  %v1931 = vadd.f32 %v1925, %v1930
  %1933 = vrot.lane.b32.xlu0 %v1859, 64
  %v1934 = vpop.permute.xlu0 %1933
  %v1936 = vmul.f32 %v686, %v1934
  %v1937 = vmul.f32 %v697, %v1773
  %v1938 = vadd.f32 %v1936, %v1937
  %1940 = vrot.lane.b32.xlu0 %v1931, 64
  %v1941 = vpop.permute.xlu0 %1940
  %v1943 = vmul.f32 %v668, %v1941
  %v1944 = vmul.f32 %v679, %v1780
  %v1945 = vadd.f32 %v1943, %v1944
  %v1946 = vmul.f32 %v1938, %v686
  %s1947 = scalar_lea.vmem [#allocation4], 28
  %1948 = vst.msk [vmem:[%s1947] sm:$0xf] %vm702, %v1946
  %v1949 = vmul.f32 %v1945, %v668
  %1950 = vst.msk [vmem:[#allocation5] sm:$0xf] %vm702, %v1949
  %v1951 = vld [vmem:[#allocation4] sm:$0xf]
  %v1952 = vld [vmem:[#allocation4 + $0x4] sm:$0xf]
  %v1953 = vld [vmem:[#allocation4 + $0x8] sm:$0xf]
  %v1954 = vld [vmem:[#allocation4 + $0xc] sm:$0xf]
  %v1955 = vld [vmem:[#allocation4 + $0x10] sm:$0xf]
  %v1956 = vld [vmem:[#allocation4 + $0x14] sm:$0xf]
  %v1957 = vld [vmem:[#allocation4 + $0x18] sm:$0xf]
  %v1958 = vld [vmem:[#allocation4 + $0x1c] sm:$0xf]
  %v1959 = vld [vmem:[#allocation5] sm:$0xf]
  %v1960 = vld [vmem:[#allocation5 + $0x4] sm:$0xf]
  %v1961 = vld [vmem:[#allocation5 + $0x8] sm:$0xf]
  %v1962 = vld [vmem:[#allocation5 + $0xc] sm:$0xf]
  %v1963 = vld [vmem:[#allocation5 + $0x10] sm:$0xf]
  %v1964 = vld [vmem:[#allocation5 + $0x14] sm:$0xf]
  %v1965 = vld [vmem:[#allocation5 + $0x18] sm:$0xf]
  %v1966 = vld [vmem:[#allocation5 + $0x1c] sm:$0xf]
  %1975 = vrot.lane.b32.xlu0 %v1959, 64
  %v1976 = vpop.permute.xlu0 %1975
  %1977 = vrot.lane.b32.xlu0 %v1960, 64
  %v1978 = vpop.permute.xlu0 %1977
  %1979 = vrot.lane.b32.xlu0 %v1961, 64
  %v1980 = vpop.permute.xlu0 %1979
  %1981 = vrot.lane.b32.xlu0 %v1962, 64
  %v1982 = vpop.permute.xlu0 %1981
  %1983 = vrot.lane.b32.xlu0 %v1963, 64
  %v1984 = vpop.permute.xlu0 %1983
  %1985 = vrot.lane.b32.xlu0 %v1964, 64
  %v1986 = vpop.permute.xlu0 %1985
  %1987 = vrot.lane.b32.xlu0 %v1965, 64
  %v1988 = vpop.permute.xlu0 %1987
  %1989 = vrot.lane.b32.xlu0 %v1966, 64
  %v1990 = vpop.permute.xlu0 %1989
  %v1999 = vsel %vm385, %v1951, %v1976
  %v2000 = vsel %vm385, %v1952, %v1978
  %v2001 = vsel %vm385, %v1953, %v1980
  %v2002 = vsel %vm385, %v1954, %v1982
  %v2003 = vsel %vm385, %v1955, %v1984
  %v2004 = vsel %vm385, %v1956, %v1986
  %v2005 = vsel %vm385, %v1957, %v1988
  %v2006 = vsel %vm385, %v1958, %v1990
  %2007 = vst [vmem:[%s8] sm:$0xf] %v1999
  %2008 = vst [vmem:[%s8 + $0x4] sm:$0xf] %v2000
  %2009 = vst [vmem:[%s8 + $0x8] sm:$0xf] %v2001
  %2010 = vst [vmem:[%s8 + $0xc] sm:$0xf] %v2002
  %2011 = vst [vmem:[%s8 + $0x10] sm:$0xf] %v2003
  %2012 = vst [vmem:[%s8 + $0x14] sm:$0xf] %v2004
  %2013 = vst [vmem:[%s8 + $0x18] sm:$0xf] %v2005
  %2014 = vst [vmem:[%s8 + $0x1c] sm:$0xf] %v2006
  // Predicated region
  $region34: #{word_attention_forward.2} parent=0 // pred_check
    _
  $region35: #{word_attention_forward.2} parent=0 // pred_check_branch
    %2016 = sbr.rel (0) target = $region37
  $region36: #{word_attention_forward.2} parent=0 // pred_region
    _
  $region37: #{word_attention_forward.2} parent=0 // pred_fallthru
    _
  // Predicated region
  $region38: #{word_attention_forward.2} parent=0 // pred_check
    _
  $region39: #{word_attention_forward.2} parent=0 // pred_check_branch
    %2018 = sbr.rel (0) target = $region41
  $region40: #{word_attention_forward.2} parent=0 // pred_region
    _
  $region41: #{word_attention_forward.2} parent=0 // pred_fallthru
    _

</llo_original>
